<compile_context>
chip_gen: v7x
topology: tpu7x:2x2x1
jax: 0.10.0
libtpu: 0.0.40
codegen_flags: <defaults>
</compile_context>

<pallas_src>
import functools

import jax
import jax.numpy as jnp
from jax.experimental import pallas as pl
from jax.experimental.pallas import tpu as pltpu

BTL_SIZE = 2
BN_EPS = 1e-5
IN_DIM = 28 * 28  # 784
LANE = 128


def pad_to(x, m):
    return ((x + m - 1) // m) * m


def build_plan(btl_size=BTL_SIZE):
    """Static layer config + packed-parameter layout (all Python ints)."""
    dims_enc = [IN_DIM, 500, 200, 100, 50, 20, 10, btl_size]
    dims_dec = [btl_size, 10, 20, 50, 100, 200, 500, IN_DIM]
    layers = []
    for dims in (dims_enc, dims_dec):
        n = len(dims) - 1
        for i in range(n):
            # last Linear of encoder / decoder has no ReLU/BN
            layers.append((dims[i], dims[i + 1], i < n - 1))

    meta = []
    widths_seen = []
    prev_p = pad_to(IN_DIM, LANE)  # padded input width (896)
    for i, (din, dout, bn) in enumerate(layers):
        dout_p = pad_to(dout, LANE)
        meta.append(dict(layer=i, din=din, dout=dout, bn=bn,
                         din_p=prev_p, dout_p=dout_p))
        if dout_p not in widths_seen:
            widths_seen.append(dout_p)
        prev_p = dout_p

    # Group weights into one blob per padded output width; rows stacked.
    widths = sorted(widths_seen)                    # [128, 256, 512, 896]
    rows = {w: 0 for w in widths}
    for m in meta:
        w = m["dout_p"]
        m["blob"] = widths.index(w)
        m["row"] = rows[w]                          # all offsets are multiples of 16
        rows[w] += m["din_p"]
    blob_shapes = tuple((rows[w], w) for w in widths)

    max_w = max(widths)
    n_vec_rows = pad_to(3 * len(layers), 8)         # bias/gamma/beta rows, padded
    return tuple(layers), tuple(meta), blob_shapes, max_w, n_vec_rows


def init_raw_params(key, layers):
    """Deterministic synthetic parameters (PyTorch-like Linear / BN init)."""
    params = []
    for (din, dout, bn) in layers:
        key, kw, kb, kg, kbe = jax.random.split(key, 5)
        bound = 1.0 / (din ** 0.5)
        w = jax.random.uniform(kw, (din, dout), jnp.float32, -bound, bound)
        b = jax.random.uniform(kb, (dout,), jnp.float32, -bound, bound)
        if bn:
            gamma = 1.0 + 0.1 * jax.random.normal(kg, (dout,), jnp.float32)
            beta = 0.1 * jax.random.normal(kbe, (dout,), jnp.float32)
        else:
            gamma = beta = None
        params.append((w, b, gamma, beta))
    return params


def pack_params(raw, meta, blob_shapes, max_w, n_vec_rows):
    """Pack weights into bf16 blobs and all per-feature vectors into one f32 array.
    Padded rows/columns are zero, which keeps padded activation lanes exactly 0."""
    blobs = [jnp.zeros(s, jnp.bfloat16) for s in blob_shapes]
    vec = jnp.zeros((n_vec_rows, max_w), jnp.float32)
    for m, (w, b, gamma, beta) in zip(meta, raw):
        i, r = m["blob"], m["row"]
        blobs[i] = blobs[i].at[r:r + m["din"], :m["dout"]].set(w.astype(jnp.bfloat16))
        vec = vec.at[3 * m["layer"], :m["dout"]].set(b)
        if m["bn"]:
            vec = vec.at[3 * m["layer"] + 1, :m["dout"]].set(gamma)
            vec = vec.at[3 * m["layer"] + 2, :m["dout"]].set(beta)
    return blobs, vec


def autoencoder_kernel(meta, x_ref, *refs):
    """Whole forward pass in one kernel. refs = (*weight_blobs, vec, out)."""
    out_ref = refs[-1]
    vec_ref = refs[-2]
    blob_refs = refs[:-2]

    h = x_ref[...]                                               # (B, 896) f32
    for m in meta:
        r, dp, wp, l = m["row"], m["din_p"], m["dout_p"], m["layer"]
        w = blob_refs[m["blob"]][r:r + dp, :]                    # (din_p, dout_p) bf16
        b = vec_ref[3 * l:3 * l + 1, :wp]                        # (1, dout_p) f32
        h = jnp.dot(h.astype(jnp.bfloat16), w,
                    preferred_element_type=jnp.float32) + b      # f32 accumulation
        if m["bn"]:
            h = jnp.maximum(h, 0.0)                              # ReLU
            gamma = vec_ref[3 * l + 1:3 * l + 2, :wp]
            beta = vec_ref[3 * l + 2:3 * l + 3, :wp]
            mean = jnp.mean(h, axis=0, keepdims=True)
            msq = jnp.mean(h * h, axis=0, keepdims=True)
            var = jnp.maximum(msq - mean * mean, 0.0)            # biased variance
            scale = gamma * jax.lax.rsqrt(var + BN_EPS)          # EUP rsqrt
            shift = beta - mean * scale
            h = h * scale + shift
    out_ref[...] = h


def autoencoder_forward(x, blobs, vec, meta):
    """Pallas entry: single grid point, everything resident in VMEM (~3 MB)."""
    B = x.shape[0]
    pad_in = pad_to(IN_DIM, LANE)
    x_p = jnp.pad(x.astype(jnp.float32), ((0, 0), (0, pad_in - IN_DIM)))
    kernel = functools.partial(autoencoder_kernel, meta)
    vmem = pl.BlockSpec(memory_space=pltpu.MemorySpace.VMEM)
    y_p = pl.pallas_call(
        kernel,
        out_shape=jax.ShapeDtypeStruct((B, pad_in), jnp.float32),  # lane-dense (896)
        in_specs=[vmem] * (2 + len(blobs)),
        out_specs=vmem,
        compiler_params=pltpu.CompilerParams(vmem_limit_bytes=32 << 20),
    )(x_p, *blobs, vec)
    return y_p[:, :IN_DIM]


def reference_forward(x, blobs, vec, meta):
    """Pure-JAX reference using the same packed (bf16) parameters.
    Mirrors the module's math (two-pass BN variance); the only deviation from
    exact f32 PyTorch output is the review-approved bf16 weight/matmul path."""
    pad_in = pad_to(IN_DIM, LANE)
    h = jnp.pad(x.astype(jnp.float32), ((0, 0), (0, pad_in - IN_DIM)))
    for m in meta:
        r, dp, wp, l = m["row"], m["din_p"], m["dout_p"], m["layer"]
        w = blobs[m["blob"]][r:r + dp, :]
        b = vec[3 * l, :wp][None, :]
        h = jnp.dot(h.astype(jnp.bfloat16), w, preferred_element_type=jnp.float32) + b
        if m["bn"]:
            h = jnp.maximum(h, 0.0)
            gamma = vec[3 * l + 1, :wp][None, :]
            beta = vec[3 * l + 2, :wp][None, :]
            mean = jnp.mean(h, axis=0, keepdims=True)
            var = jnp.mean((h - mean) ** 2, axis=0, keepdims=True)
            h = (h - mean) * jax.lax.rsqrt(var + BN_EPS) * gamma + beta
    return h[:, :IN_DIM]


if __name__ == "__main__":
    layers, meta, blob_shapes, max_w, n_vec_rows = build_plan()

    key = jax.random.PRNGKey(0)
    kx, kp = jax.random.split(key)

    B = 8
    x = jax.random.normal(kx, (B, IN_DIM), jnp.float32)
    raw = init_raw_params(kp, layers)
    blobs, vec = pack_params(raw, meta, blob_shapes, max_w, n_vec_rows)

    y = jax.block_until_ready(autoencoder_forward(x, blobs, vec, meta))
    y_ref = jax.block_until_ready(reference_forward(x, blobs, vec, meta))

    assert y.shape == (B, IN_DIM) and y.dtype == jnp.float32
    err = float(jnp.max(jnp.abs(y - y_ref)))
    assert err < 1e-2, err

    print("KERNEL_OK")
</pallas_src>

<mosaic_0001>
module attributes {stable_mosaic.version = 11 : i64} {
  func.func @autoencoder_kernel(%arg0: memref<8x896xf32, #tpu.memory_space<vmem>>, %arg1: memref<1280x128xbf16, #tpu.memory_space<vmem>>, %arg2: memref<640x256xbf16, #tpu.memory_space<vmem>>, %arg3: memref<1152x512xbf16, #tpu.memory_space<vmem>>, %arg4: memref<512x896xbf16, #tpu.memory_space<vmem>>, %arg5: memref<48x896xf32, #tpu.memory_space<vmem>>, %arg6: memref<8x896xf32, #tpu.memory_space<vmem>>) attributes {dimension_semantics = [], scalar_prefetch = 0 : i64, scratch_operands = 0 : i64, tpu.core_type = #tpu.core_type<tc>} {
    %c0 = arith.constant 0 : index
    %c0_0 = arith.constant 0 : index
    %0 = vector.load %arg0[%c0, %c0_0] : memref<8x896xf32, #tpu.memory_space<vmem>>, vector<8x896xf32>
    %c0_1 = arith.constant 0 : index
    %c0_2 = arith.constant 0 : index
    %1 = vector.load %arg3[%c0_1, %c0_2] : memref<1152x512xbf16, #tpu.memory_space<vmem>>, vector<896x512xbf16>
    %c0_3 = arith.constant 0 : index
    %c0_4 = arith.constant 0 : index
    %2 = vector.load %arg5[%c0_3, %c0_4] : memref<48x896xf32, #tpu.memory_space<vmem>>, vector<1x512xf32>
    %3 = arith.truncf %0 : vector<8x896xf32> to vector<8x896xbf16>
    %cst = arith.constant dense<0.000000e+00> : vector<8x512xf32>
    %4 = tpu.matmul %3, %1, %cst {dimension_numbers = #tpu.dot_dimension_numbers<[1], [0], [0], [1], [0, 0, 1, 1], [], []>} : vector<8x896xbf16>, vector<896x512xbf16>, vector<8x512xf32> -> vector<8x512xf32>
    %5 = vector.broadcast %2 : vector<1x512xf32> to vector<8x512xf32>
    %6 = arith.addf %4, %5 : vector<8x512xf32>
    %cst_5 = arith.constant 0.000000e+00 : f32
    %7 = vector.broadcast %cst_5 : f32 to vector<8x512xf32>
    %8 = arith.maximumf %6, %7 : vector<8x512xf32>
    %c1 = arith.constant 1 : index
    %c0_6 = arith.constant 0 : index
    %9 = vector.load %arg5[%c1, %c0_6] : memref<48x896xf32, #tpu.memory_space<vmem>>, vector<1x512xf32>
    %c2 = arith.constant 2 : index
    %c0_7 = arith.constant 0 : index
    %10 = vector.load %arg5[%c2, %c0_7] : memref<48x896xf32, #tpu.memory_space<vmem>>, vector<1x512xf32>
    %cst_8 = arith.constant dense<0.000000e+00> : vector<512xf32>
    %11 = vector.multi_reduction <add>, %8, %cst_8 [0] : vector<8x512xf32> to vector<512xf32>
    %12 = vector.shape_cast %11 : vector<512xf32> to vector<1x512xf32>
    %cst_9 = arith.constant 8.000000e+00 : f32
    %13 = vector.broadcast %cst_9 : f32 to vector<1x512xf32>
    %14 = arith.divf %12, %13 : vector<1x512xf32>
    %15 = arith.mulf %8, %8 : vector<8x512xf32>
    %cst_10 = arith.constant dense<0.000000e+00> : vector<512xf32>
    %16 = vector.multi_reduction <add>, %15, %cst_10 [0] : vector<8x512xf32> to vector<512xf32>
    %17 = vector.shape_cast %16 : vector<512xf32> to vector<1x512xf32>
    %cst_11 = arith.constant 8.000000e+00 : f32
    %18 = vector.broadcast %cst_11 : f32 to vector<1x512xf32>
    %19 = arith.divf %17, %18 : vector<1x512xf32>
    %20 = arith.mulf %14, %14 : vector<1x512xf32>
    %21 = arith.subf %19, %20 : vector<1x512xf32>
    %cst_12 = arith.constant 0.000000e+00 : f32
    %22 = vector.broadcast %cst_12 : f32 to vector<1x512xf32>
    %23 = arith.maximumf %21, %22 : vector<1x512xf32>
    %cst_13 = arith.constant 9.99999974E-6 : f32
    %24 = vector.broadcast %cst_13 : f32 to vector<1x512xf32>
    %25 = arith.addf %23, %24 : vector<1x512xf32>
    %26 = math.rsqrt %25 : vector<1x512xf32>
    %27 = arith.mulf %9, %26 : vector<1x512xf32>
    %28 = arith.mulf %14, %27 : vector<1x512xf32>
    %29 = arith.subf %10, %28 : vector<1x512xf32>
    %30 = vector.broadcast %27 : vector<1x512xf32> to vector<8x512xf32>
    %31 = arith.mulf %8, %30 : vector<8x512xf32>
    %32 = vector.broadcast %29 : vector<1x512xf32> to vector<8x512xf32>
    %33 = arith.addf %31, %32 : vector<8x512xf32>
    %c0_14 = arith.constant 0 : index
    %c0_15 = arith.constant 0 : index
    %34 = vector.load %arg2[%c0_14, %c0_15] : memref<640x256xbf16, #tpu.memory_space<vmem>>, vector<512x256xbf16>
    %c3 = arith.constant 3 : index
    %c0_16 = arith.constant 0 : index
    %35 = vector.load %arg5[%c3, %c0_16] : memref<48x896xf32, #tpu.memory_space<vmem>>, vector<1x256xf32>
    %36 = arith.truncf %33 : vector<8x512xf32> to vector<8x512xbf16>
    %cst_17 = arith.constant dense<0.000000e+00> : vector<8x256xf32>
    %37 = tpu.matmul %36, %34, %cst_17 {dimension_numbers = #tpu.dot_dimension_numbers<[1], [0], [0], [1], [0, 0, 1, 1], [], []>} : vector<8x512xbf16>, vector<512x256xbf16>, vector<8x256xf32> -> vector<8x256xf32>
    %38 = vector.broadcast %35 : vector<1x256xf32> to vector<8x256xf32>
    %39 = arith.addf %37, %38 : vector<8x256xf32>
    %cst_18 = arith.constant 0.000000e+00 : f32
    %40 = vector.broadcast %cst_18 : f32 to vector<8x256xf32>
    %41 = arith.maximumf %39, %40 : vector<8x256xf32>
    %c4 = arith.constant 4 : index
    %c0_19 = arith.constant 0 : index
    %42 = vector.load %arg5[%c4, %c0_19] : memref<48x896xf32, #tpu.memory_space<vmem>>, vector<1x256xf32>
    %c5 = arith.constant 5 : index
    %c0_20 = arith.constant 0 : index
    %43 = vector.load %arg5[%c5, %c0_20] : memref<48x896xf32, #tpu.memory_space<vmem>>, vector<1x256xf32>
    %cst_21 = arith.constant dense<0.000000e+00> : vector<256xf32>
    %44 = vector.multi_reduction <add>, %41, %cst_21 [0] : vector<8x256xf32> to vector<256xf32>
    %45 = vector.shape_cast %44 : vector<256xf32> to vector<1x256xf32>
    %cst_22 = arith.constant 8.000000e+00 : f32
    %46 = vector.broadcast %cst_22 : f32 to vector<1x256xf32>
    %47 = arith.divf %45, %46 : vector<1x256xf32>
    %48 = arith.mulf %41, %41 : vector<8x256xf32>
    %cst_23 = arith.constant dense<0.000000e+00> : vector<256xf32>
    %49 = vector.multi_reduction <add>, %48, %cst_23 [0] : vector<8x256xf32> to vector<256xf32>
    %50 = vector.shape_cast %49 : vector<256xf32> to vector<1x256xf32>
    %cst_24 = arith.constant 8.000000e+00 : f32
    %51 = vector.broadcast %cst_24 : f32 to vector<1x256xf32>
    %52 = arith.divf %50, %51 : vector<1x256xf32>
    %53 = arith.mulf %47, %47 : vector<1x256xf32>
    %54 = arith.subf %52, %53 : vector<1x256xf32>
    %cst_25 = arith.constant 0.000000e+00 : f32
    %55 = vector.broadcast %cst_25 : f32 to vector<1x256xf32>
    %56 = arith.maximumf %54, %55 : vector<1x256xf32>
    %cst_26 = arith.constant 9.99999974E-6 : f32
    %57 = vector.broadcast %cst_26 : f32 to vector<1x256xf32>
    %58 = arith.addf %56, %57 : vector<1x256xf32>
    %59 = math.rsqrt %58 : vector<1x256xf32>
    %60 = arith.mulf %42, %59 : vector<1x256xf32>
    %61 = arith.mulf %47, %60 : vector<1x256xf32>
    %62 = arith.subf %43, %61 : vector<1x256xf32>
    %63 = vector.broadcast %60 : vector<1x256xf32> to vector<8x256xf32>
    %64 = arith.mulf %41, %63 : vector<8x256xf32>
    %65 = vector.broadcast %62 : vector<1x256xf32> to vector<8x256xf32>
    %66 = arith.addf %64, %65 : vector<8x256xf32>
    %c0_27 = arith.constant 0 : index
    %c0_28 = arith.constant 0 : index
    %67 = vector.load %arg1[%c0_27, %c0_28] : memref<1280x128xbf16, #tpu.memory_space<vmem>>, vector<256x128xbf16>
    %c6 = arith.constant 6 : index
    %c0_29 = arith.constant 0 : index
    %68 = vector.load %arg5[%c6, %c0_29] : memref<48x896xf32, #tpu.memory_space<vmem>>, vector<1x128xf32>
    %69 = arith.truncf %66 : vector<8x256xf32> to vector<8x256xbf16>
    %cst_30 = arith.constant dense<0.000000e+00> : vector<8x128xf32>
    %70 = tpu.matmul %69, %67, %cst_30 {dimension_numbers = #tpu.dot_dimension_numbers<[1], [0], [0], [1], [0, 0, 1, 1], [], []>} : vector<8x256xbf16>, vector<256x128xbf16>, vector<8x128xf32> -> vector<8x128xf32>
    %71 = vector.broadcast %68 : vector<1x128xf32> to vector<8x128xf32>
    %72 = arith.addf %70, %71 : vector<8x128xf32>
    %cst_31 = arith.constant 0.000000e+00 : f32
    %73 = vector.broadcast %cst_31 : f32 to vector<8x128xf32>
    %74 = arith.maximumf %72, %73 : vector<8x128xf32>
    %c7 = arith.constant 7 : index
    %c0_32 = arith.constant 0 : index
    %75 = vector.load %arg5[%c7, %c0_32] : memref<48x896xf32, #tpu.memory_space<vmem>>, vector<1x128xf32>
    %c8 = arith.constant 8 : index
    %c0_33 = arith.constant 0 : index
    %76 = vector.load %arg5[%c8, %c0_33] : memref<48x896xf32, #tpu.memory_space<vmem>>, vector<1x128xf32>
    %cst_34 = arith.constant dense<0.000000e+00> : vector<128xf32>
    %77 = vector.multi_reduction <add>, %74, %cst_34 [0] : vector<8x128xf32> to vector<128xf32>
    %78 = vector.shape_cast %77 : vector<128xf32> to vector<1x128xf32>
    %cst_35 = arith.constant 8.000000e+00 : f32
    %79 = vector.broadcast %cst_35 : f32 to vector<1x128xf32>
    %80 = arith.divf %78, %79 : vector<1x128xf32>
    %81 = arith.mulf %74, %74 : vector<8x128xf32>
    %cst_36 = arith.constant dense<0.000000e+00> : vector<128xf32>
    %82 = vector.multi_reduction <add>, %81, %cst_36 [0] : vector<8x128xf32> to vector<128xf32>
    %83 = vector.shape_cast %82 : vector<128xf32> to vector<1x128xf32>
    %cst_37 = arith.constant 8.000000e+00 : f32
    %84 = vector.broadcast %cst_37 : f32 to vector<1x128xf32>
    %85 = arith.divf %83, %84 : vector<1x128xf32>
    %86 = arith.mulf %80, %80 : vector<1x128xf32>
    %87 = arith.subf %85, %86 : vector<1x128xf32>
    %cst_38 = arith.constant 0.000000e+00 : f32
    %88 = vector.broadcast %cst_38 : f32 to vector<1x128xf32>
    %89 = arith.maximumf %87, %88 : vector<1x128xf32>
    %cst_39 = arith.constant 9.99999974E-6 : f32
    %90 = vector.broadcast %cst_39 : f32 to vector<1x128xf32>
    %91 = arith.addf %89, %90 : vector<1x128xf32>
    %92 = math.rsqrt %91 : vector<1x128xf32>
    %93 = arith.mulf %75, %92 : vector<1x128xf32>
    %94 = arith.mulf %80, %93 : vector<1x128xf32>
    %95 = arith.subf %76, %94 : vector<1x128xf32>
    %96 = vector.broadcast %93 : vector<1x128xf32> to vector<8x128xf32>
    %97 = arith.mulf %74, %96 : vector<8x128xf32>
    %98 = vector.broadcast %95 : vector<1x128xf32> to vector<8x128xf32>
    %99 = arith.addf %97, %98 : vector<8x128xf32>
    %c256 = arith.constant 256 : index
    %c0_40 = arith.constant 0 : index
    %100 = vector.load %arg1[%c256, %c0_40] : memref<1280x128xbf16, #tpu.memory_space<vmem>>, vector<128x128xbf16>
    %c9 = arith.constant 9 : index
    %c0_41 = arith.constant 0 : index
    %101 = vector.load %arg5[%c9, %c0_41] : memref<48x896xf32, #tpu.memory_space<vmem>>, vector<1x128xf32>
    %102 = arith.truncf %99 : vector<8x128xf32> to vector<8x128xbf16>
    %cst_42 = arith.constant dense<0.000000e+00> : vector<8x128xf32>
    %103 = tpu.matmul %102, %100, %cst_42 {dimension_numbers = #tpu.dot_dimension_numbers<[1], [0], [0], [1], [0, 0, 1, 1], [], []>} : vector<8x128xbf16>, vector<128x128xbf16>, vector<8x128xf32> -> vector<8x128xf32>
    %104 = vector.broadcast %101 : vector<1x128xf32> to vector<8x128xf32>
    %105 = arith.addf %103, %104 : vector<8x128xf32>
    %cst_43 = arith.constant 0.000000e+00 : f32
    %106 = vector.broadcast %cst_43 : f32 to vector<8x128xf32>
    %107 = arith.maximumf %105, %106 : vector<8x128xf32>
    %c10 = arith.constant 10 : index
    %c0_44 = arith.constant 0 : index
    %108 = vector.load %arg5[%c10, %c0_44] : memref<48x896xf32, #tpu.memory_space<vmem>>, vector<1x128xf32>
    %c11 = arith.constant 11 : index
    %c0_45 = arith.constant 0 : index
    %109 = vector.load %arg5[%c11, %c0_45] : memref<48x896xf32, #tpu.memory_space<vmem>>, vector<1x128xf32>
    %cst_46 = arith.constant dense<0.000000e+00> : vector<128xf32>
    %110 = vector.multi_reduction <add>, %107, %cst_46 [0] : vector<8x128xf32> to vector<128xf32>
    %111 = vector.shape_cast %110 : vector<128xf32> to vector<1x128xf32>
    %cst_47 = arith.constant 8.000000e+00 : f32
    %112 = vector.broadcast %cst_47 : f32 to vector<1x128xf32>
    %113 = arith.divf %111, %112 : vector<1x128xf32>
    %114 = arith.mulf %107, %107 : vector<8x128xf32>
    %cst_48 = arith.constant dense<0.000000e+00> : vector<128xf32>
    %115 = vector.multi_reduction <add>, %114, %cst_48 [0] : vector<8x128xf32> to vector<128xf32>
    %116 = vector.shape_cast %115 : vector<128xf32> to vector<1x128xf32>
    %cst_49 = arith.constant 8.000000e+00 : f32
    %117 = vector.broadcast %cst_49 : f32 to vector<1x128xf32>
    %118 = arith.divf %116, %117 : vector<1x128xf32>
    %119 = arith.mulf %113, %113 : vector<1x128xf32>
    %120 = arith.subf %118, %119 : vector<1x128xf32>
    %cst_50 = arith.constant 0.000000e+00 : f32
    %121 = vector.broadcast %cst_50 : f32 to vector<1x128xf32>
    %122 = arith.maximumf %120, %121 : vector<1x128xf32>
    %cst_51 = arith.constant 9.99999974E-6 : f32
    %123 = vector.broadcast %cst_51 : f32 to vector<1x128xf32>
    %124 = arith.addf %122, %123 : vector<1x128xf32>
    %125 = math.rsqrt %124 : vector<1x128xf32>
    %126 = arith.mulf %108, %125 : vector<1x128xf32>
    %127 = arith.mulf %113, %126 : vector<1x128xf32>
    %128 = arith.subf %109, %127 : vector<1x128xf32>
    %129 = vector.broadcast %126 : vector<1x128xf32> to vector<8x128xf32>
    %130 = arith.mulf %107, %129 : vector<8x128xf32>
    %131 = vector.broadcast %128 : vector<1x128xf32> to vector<8x128xf32>
    %132 = arith.addf %130, %131 : vector<8x128xf32>
    %c384 = arith.constant 384 : index
    %c0_52 = arith.constant 0 : index
    %133 = vector.load %arg1[%c384, %c0_52] : memref<1280x128xbf16, #tpu.memory_space<vmem>>, vector<128x128xbf16>
    %c12 = arith.constant 12 : index
    %c0_53 = arith.constant 0 : index
    %134 = vector.load %arg5[%c12, %c0_53] : memref<48x896xf32, #tpu.memory_space<vmem>>, vector<1x128xf32>
    %135 = arith.truncf %132 : vector<8x128xf32> to vector<8x128xbf16>
    %cst_54 = arith.constant dense<0.000000e+00> : vector<8x128xf32>
    %136 = tpu.matmul %135, %133, %cst_54 {dimension_numbers = #tpu.dot_dimension_numbers<[1], [0], [0], [1], [0, 0, 1, 1], [], []>} : vector<8x128xbf16>, vector<128x128xbf16>, vector<8x128xf32> -> vector<8x128xf32>
    %137 = vector.broadcast %134 : vector<1x128xf32> to vector<8x128xf32>
    %138 = arith.addf %136, %137 : vector<8x128xf32>
    %cst_55 = arith.constant 0.000000e+00 : f32
    %139 = vector.broadcast %cst_55 : f32 to vector<8x128xf32>
    %140 = arith.maximumf %138, %139 : vector<8x128xf32>
    %c13 = arith.constant 13 : index
    %c0_56 = arith.constant 0 : index
    %141 = vector.load %arg5[%c13, %c0_56] : memref<48x896xf32, #tpu.memory_space<vmem>>, vector<1x128xf32>
    %c14 = arith.constant 14 : index
    %c0_57 = arith.constant 0 : index
    %142 = vector.load %arg5[%c14, %c0_57] : memref<48x896xf32, #tpu.memory_space<vmem>>, vector<1x128xf32>
    %cst_58 = arith.constant dense<0.000000e+00> : vector<128xf32>
    %143 = vector.multi_reduction <add>, %140, %cst_58 [0] : vector<8x128xf32> to vector<128xf32>
    %144 = vector.shape_cast %143 : vector<128xf32> to vector<1x128xf32>
    %cst_59 = arith.constant 8.000000e+00 : f32
    %145 = vector.broadcast %cst_59 : f32 to vector<1x128xf32>
    %146 = arith.divf %144, %145 : vector<1x128xf32>
    %147 = arith.mulf %140, %140 : vector<8x128xf32>
    %cst_60 = arith.constant dense<0.000000e+00> : vector<128xf32>
    %148 = vector.multi_reduction <add>, %147, %cst_60 [0] : vector<8x128xf32> to vector<128xf32>
    %149 = vector.shape_cast %148 : vector<128xf32> to vector<1x128xf32>
    %cst_61 = arith.constant 8.000000e+00 : f32
    %150 = vector.broadcast %cst_61 : f32 to vector<1x128xf32>
    %151 = arith.divf %149, %150 : vector<1x128xf32>
    %152 = arith.mulf %146, %146 : vector<1x128xf32>
    %153 = arith.subf %151, %152 : vector<1x128xf32>
    %cst_62 = arith.constant 0.000000e+00 : f32
    %154 = vector.broadcast %cst_62 : f32 to vector<1x128xf32>
    %155 = arith.maximumf %153, %154 : vector<1x128xf32>
    %cst_63 = arith.constant 9.99999974E-6 : f32
    %156 = vector.broadcast %cst_63 : f32 to vector<1x128xf32>
    %157 = arith.addf %155, %156 : vector<1x128xf32>
    %158 = math.rsqrt %157 : vector<1x128xf32>
    %159 = arith.mulf %141, %158 : vector<1x128xf32>
    %160 = arith.mulf %146, %159 : vector<1x128xf32>
    %161 = arith.subf %142, %160 : vector<1x128xf32>
    %162 = vector.broadcast %159 : vector<1x128xf32> to vector<8x128xf32>
    %163 = arith.mulf %140, %162 : vector<8x128xf32>
    %164 = vector.broadcast %161 : vector<1x128xf32> to vector<8x128xf32>
    %165 = arith.addf %163, %164 : vector<8x128xf32>
    %c512 = arith.constant 512 : index
    %c0_64 = arith.constant 0 : index
    %166 = vector.load %arg1[%c512, %c0_64] : memref<1280x128xbf16, #tpu.memory_space<vmem>>, vector<128x128xbf16>
    %c15 = arith.constant 15 : index
    %c0_65 = arith.constant 0 : index
    %167 = vector.load %arg5[%c15, %c0_65] : memref<48x896xf32, #tpu.memory_space<vmem>>, vector<1x128xf32>
    %168 = arith.truncf %165 : vector<8x128xf32> to vector<8x128xbf16>
    %cst_66 = arith.constant dense<0.000000e+00> : vector<8x128xf32>
    %169 = tpu.matmul %168, %166, %cst_66 {dimension_numbers = #tpu.dot_dimension_numbers<[1], [0], [0], [1], [0, 0, 1, 1], [], []>} : vector<8x128xbf16>, vector<128x128xbf16>, vector<8x128xf32> -> vector<8x128xf32>
    %170 = vector.broadcast %167 : vector<1x128xf32> to vector<8x128xf32>
    %171 = arith.addf %169, %170 : vector<8x128xf32>
    %cst_67 = arith.constant 0.000000e+00 : f32
    %172 = vector.broadcast %cst_67 : f32 to vector<8x128xf32>
    %173 = arith.maximumf %171, %172 : vector<8x128xf32>
    %c16 = arith.constant 16 : index
    %c0_68 = arith.constant 0 : index
    %174 = vector.load %arg5[%c16, %c0_68] : memref<48x896xf32, #tpu.memory_space<vmem>>, vector<1x128xf32>
    %c17 = arith.constant 17 : index
    %c0_69 = arith.constant 0 : index
    %175 = vector.load %arg5[%c17, %c0_69] : memref<48x896xf32, #tpu.memory_space<vmem>>, vector<1x128xf32>
    %cst_70 = arith.constant dense<0.000000e+00> : vector<128xf32>
    %176 = vector.multi_reduction <add>, %173, %cst_70 [0] : vector<8x128xf32> to vector<128xf32>
    %177 = vector.shape_cast %176 : vector<128xf32> to vector<1x128xf32>
    %cst_71 = arith.constant 8.000000e+00 : f32
    %178 = vector.broadcast %cst_71 : f32 to vector<1x128xf32>
    %179 = arith.divf %177, %178 : vector<1x128xf32>
    %180 = arith.mulf %173, %173 : vector<8x128xf32>
    %cst_72 = arith.constant dense<0.000000e+00> : vector<128xf32>
    %181 = vector.multi_reduction <add>, %180, %cst_72 [0] : vector<8x128xf32> to vector<128xf32>
    %182 = vector.shape_cast %181 : vector<128xf32> to vector<1x128xf32>
    %cst_73 = arith.constant 8.000000e+00 : f32
    %183 = vector.broadcast %cst_73 : f32 to vector<1x128xf32>
    %184 = arith.divf %182, %183 : vector<1x128xf32>
    %185 = arith.mulf %179, %179 : vector<1x128xf32>
    %186 = arith.subf %184, %185 : vector<1x128xf32>
    %cst_74 = arith.constant 0.000000e+00 : f32
    %187 = vector.broadcast %cst_74 : f32 to vector<1x128xf32>
    %188 = arith.maximumf %186, %187 : vector<1x128xf32>
    %cst_75 = arith.constant 9.99999974E-6 : f32
    %189 = vector.broadcast %cst_75 : f32 to vector<1x128xf32>
    %190 = arith.addf %188, %189 : vector<1x128xf32>
    %191 = math.rsqrt %190 : vector<1x128xf32>
    %192 = arith.mulf %174, %191 : vector<1x128xf32>
    %193 = arith.mulf %179, %192 : vector<1x128xf32>
    %194 = arith.subf %175, %193 : vector<1x128xf32>
    %195 = vector.broadcast %192 : vector<1x128xf32> to vector<8x128xf32>
    %196 = arith.mulf %173, %195 : vector<8x128xf32>
    %197 = vector.broadcast %194 : vector<1x128xf32> to vector<8x128xf32>
    %198 = arith.addf %196, %197 : vector<8x128xf32>
    %c640 = arith.constant 640 : index
    %c0_76 = arith.constant 0 : index
    %199 = vector.load %arg1[%c640, %c0_76] : memref<1280x128xbf16, #tpu.memory_space<vmem>>, vector<128x128xbf16>
    %c18 = arith.constant 18 : index
    %c0_77 = arith.constant 0 : index
    %200 = vector.load %arg5[%c18, %c0_77] : memref<48x896xf32, #tpu.memory_space<vmem>>, vector<1x128xf32>
    %201 = arith.truncf %198 : vector<8x128xf32> to vector<8x128xbf16>
    %cst_78 = arith.constant dense<0.000000e+00> : vector<8x128xf32>
    %202 = tpu.matmul %201, %199, %cst_78 {dimension_numbers = #tpu.dot_dimension_numbers<[1], [0], [0], [1], [0, 0, 1, 1], [], []>} : vector<8x128xbf16>, vector<128x128xbf16>, vector<8x128xf32> -> vector<8x128xf32>
    %203 = vector.broadcast %200 : vector<1x128xf32> to vector<8x128xf32>
    %204 = arith.addf %202, %203 : vector<8x128xf32>
    %c768 = arith.constant 768 : index
    %c0_79 = arith.constant 0 : index
    %205 = vector.load %arg1[%c768, %c0_79] : memref<1280x128xbf16, #tpu.memory_space<vmem>>, vector<128x128xbf16>
    %c21 = arith.constant 21 : index
    %c0_80 = arith.constant 0 : index
    %206 = vector.load %arg5[%c21, %c0_80] : memref<48x896xf32, #tpu.memory_space<vmem>>, vector<1x128xf32>
    %207 = arith.truncf %204 : vector<8x128xf32> to vector<8x128xbf16>
    %cst_81 = arith.constant dense<0.000000e+00> : vector<8x128xf32>
    %208 = tpu.matmul %207, %205, %cst_81 {dimension_numbers = #tpu.dot_dimension_numbers<[1], [0], [0], [1], [0, 0, 1, 1], [], []>} : vector<8x128xbf16>, vector<128x128xbf16>, vector<8x128xf32> -> vector<8x128xf32>
    %209 = vector.broadcast %206 : vector<1x128xf32> to vector<8x128xf32>
    %210 = arith.addf %208, %209 : vector<8x128xf32>
    %cst_82 = arith.constant 0.000000e+00 : f32
    %211 = vector.broadcast %cst_82 : f32 to vector<8x128xf32>
    %212 = arith.maximumf %210, %211 : vector<8x128xf32>
    %c22 = arith.constant 22 : index
    %c0_83 = arith.constant 0 : index
    %213 = vector.load %arg5[%c22, %c0_83] : memref<48x896xf32, #tpu.memory_space<vmem>>, vector<1x128xf32>
    %c23 = arith.constant 23 : index
    %c0_84 = arith.constant 0 : index
    %214 = vector.load %arg5[%c23, %c0_84] : memref<48x896xf32, #tpu.memory_space<vmem>>, vector<1x128xf32>
    %cst_85 = arith.constant dense<0.000000e+00> : vector<128xf32>
    %215 = vector.multi_reduction <add>, %212, %cst_85 [0] : vector<8x128xf32> to vector<128xf32>
    %216 = vector.shape_cast %215 : vector<128xf32> to vector<1x128xf32>
    %cst_86 = arith.constant 8.000000e+00 : f32
    %217 = vector.broadcast %cst_86 : f32 to vector<1x128xf32>
    %218 = arith.divf %216, %217 : vector<1x128xf32>
    %219 = arith.mulf %212, %212 : vector<8x128xf32>
    %cst_87 = arith.constant dense<0.000000e+00> : vector<128xf32>
    %220 = vector.multi_reduction <add>, %219, %cst_87 [0] : vector<8x128xf32> to vector<128xf32>
    %221 = vector.shape_cast %220 : vector<128xf32> to vector<1x128xf32>
    %cst_88 = arith.constant 8.000000e+00 : f32
    %222 = vector.broadcast %cst_88 : f32 to vector<1x128xf32>
    %223 = arith.divf %221, %222 : vector<1x128xf32>
    %224 = arith.mulf %218, %218 : vector<1x128xf32>
    %225 = arith.subf %223, %224 : vector<1x128xf32>
    %cst_89 = arith.constant 0.000000e+00 : f32
    %226 = vector.broadcast %cst_89 : f32 to vector<1x128xf32>
    %227 = arith.maximumf %225, %226 : vector<1x128xf32>
    %cst_90 = arith.constant 9.99999974E-6 : f32
    %228 = vector.broadcast %cst_90 : f32 to vector<1x128xf32>
    %229 = arith.addf %227, %228 : vector<1x128xf32>
    %230 = math.rsqrt %229 : vector<1x128xf32>
    %231 = arith.mulf %213, %230 : vector<1x128xf32>
    %232 = arith.mulf %218, %231 : vector<1x128xf32>
    %233 = arith.subf %214, %232 : vector<1x128xf32>
    %234 = vector.broadcast %231 : vector<1x128xf32> to vector<8x128xf32>
    %235 = arith.mulf %212, %234 : vector<8x128xf32>
    %236 = vector.broadcast %233 : vector<1x128xf32> to vector<8x128xf32>
    %237 = arith.addf %235, %236 : vector<8x128xf32>
    %c896 = arith.constant 896 : index
    %c0_91 = arith.constant 0 : index
    %238 = vector.load %arg1[%c896, %c0_91] : memref<1280x128xbf16, #tpu.memory_space<vmem>>, vector<128x128xbf16>
    %c24 = arith.constant 24 : index
    %c0_92 = arith.constant 0 : index
    %239 = vector.load %arg5[%c24, %c0_92] : memref<48x896xf32, #tpu.memory_space<vmem>>, vector<1x128xf32>
    %240 = arith.truncf %237 : vector<8x128xf32> to vector<8x128xbf16>
    %cst_93 = arith.constant dense<0.000000e+00> : vector<8x128xf32>
    %241 = tpu.matmul %240, %238, %cst_93 {dimension_numbers = #tpu.dot_dimension_numbers<[1], [0], [0], [1], [0, 0, 1, 1], [], []>} : vector<8x128xbf16>, vector<128x128xbf16>, vector<8x128xf32> -> vector<8x128xf32>
    %242 = vector.broadcast %239 : vector<1x128xf32> to vector<8x128xf32>
    %243 = arith.addf %241, %242 : vector<8x128xf32>
    %cst_94 = arith.constant 0.000000e+00 : f32
    %244 = vector.broadcast %cst_94 : f32 to vector<8x128xf32>
    %245 = arith.maximumf %243, %244 : vector<8x128xf32>
    %c25 = arith.constant 25 : index
    %c0_95 = arith.constant 0 : index
    %246 = vector.load %arg5[%c25, %c0_95] : memref<48x896xf32, #tpu.memory_space<vmem>>, vector<1x128xf32>
    %c26 = arith.constant 26 : index
    %c0_96 = arith.constant 0 : index
    %247 = vector.load %arg5[%c26, %c0_96] : memref<48x896xf32, #tpu.memory_space<vmem>>, vector<1x128xf32>
    %cst_97 = arith.constant dense<0.000000e+00> : vector<128xf32>
    %248 = vector.multi_reduction <add>, %245, %cst_97 [0] : vector<8x128xf32> to vector<128xf32>
    %249 = vector.shape_cast %248 : vector<128xf32> to vector<1x128xf32>
    %cst_98 = arith.constant 8.000000e+00 : f32
    %250 = vector.broadcast %cst_98 : f32 to vector<1x128xf32>
    %251 = arith.divf %249, %250 : vector<1x128xf32>
    %252 = arith.mulf %245, %245 : vector<8x128xf32>
    %cst_99 = arith.constant dense<0.000000e+00> : vector<128xf32>
    %253 = vector.multi_reduction <add>, %252, %cst_99 [0] : vector<8x128xf32> to vector<128xf32>
    %254 = vector.shape_cast %253 : vector<128xf32> to vector<1x128xf32>
    %cst_100 = arith.constant 8.000000e+00 : f32
    %255 = vector.broadcast %cst_100 : f32 to vector<1x128xf32>
    %256 = arith.divf %254, %255 : vector<1x128xf32>
    %257 = arith.mulf %251, %251 : vector<1x128xf32>
    %258 = arith.subf %256, %257 : vector<1x128xf32>
    %cst_101 = arith.constant 0.000000e+00 : f32
    %259 = vector.broadcast %cst_101 : f32 to vector<1x128xf32>
    %260 = arith.maximumf %258, %259 : vector<1x128xf32>
    %cst_102 = arith.constant 9.99999974E-6 : f32
    %261 = vector.broadcast %cst_102 : f32 to vector<1x128xf32>
    %262 = arith.addf %260, %261 : vector<1x128xf32>
    %263 = math.rsqrt %262 : vector<1x128xf32>
    %264 = arith.mulf %246, %263 : vector<1x128xf32>
    %265 = arith.mulf %251, %264 : vector<1x128xf32>
    %266 = arith.subf %247, %265 : vector<1x128xf32>
    %267 = vector.broadcast %264 : vector<1x128xf32> to vector<8x128xf32>
    %268 = arith.mulf %245, %267 : vector<8x128xf32>
    %269 = vector.broadcast %266 : vector<1x128xf32> to vector<8x128xf32>
    %270 = arith.addf %268, %269 : vector<8x128xf32>
    %c1024 = arith.constant 1024 : index
    %c0_103 = arith.constant 0 : index
    %271 = vector.load %arg1[%c1024, %c0_103] : memref<1280x128xbf16, #tpu.memory_space<vmem>>, vector<128x128xbf16>
    %c27 = arith.constant 27 : index
    %c0_104 = arith.constant 0 : index
    %272 = vector.load %arg5[%c27, %c0_104] : memref<48x896xf32, #tpu.memory_space<vmem>>, vector<1x128xf32>
    %273 = arith.truncf %270 : vector<8x128xf32> to vector<8x128xbf16>
    %cst_105 = arith.constant dense<0.000000e+00> : vector<8x128xf32>
    %274 = tpu.matmul %273, %271, %cst_105 {dimension_numbers = #tpu.dot_dimension_numbers<[1], [0], [0], [1], [0, 0, 1, 1], [], []>} : vector<8x128xbf16>, vector<128x128xbf16>, vector<8x128xf32> -> vector<8x128xf32>
    %275 = vector.broadcast %272 : vector<1x128xf32> to vector<8x128xf32>
    %276 = arith.addf %274, %275 : vector<8x128xf32>
    %cst_106 = arith.constant 0.000000e+00 : f32
    %277 = vector.broadcast %cst_106 : f32 to vector<8x128xf32>
    %278 = arith.maximumf %276, %277 : vector<8x128xf32>
    %c28 = arith.constant 28 : index
    %c0_107 = arith.constant 0 : index
    %279 = vector.load %arg5[%c28, %c0_107] : memref<48x896xf32, #tpu.memory_space<vmem>>, vector<1x128xf32>
    %c29 = arith.constant 29 : index
    %c0_108 = arith.constant 0 : index
    %280 = vector.load %arg5[%c29, %c0_108] : memref<48x896xf32, #tpu.memory_space<vmem>>, vector<1x128xf32>
    %cst_109 = arith.constant dense<0.000000e+00> : vector<128xf32>
    %281 = vector.multi_reduction <add>, %278, %cst_109 [0] : vector<8x128xf32> to vector<128xf32>
    %282 = vector.shape_cast %281 : vector<128xf32> to vector<1x128xf32>
    %cst_110 = arith.constant 8.000000e+00 : f32
    %283 = vector.broadcast %cst_110 : f32 to vector<1x128xf32>
    %284 = arith.divf %282, %283 : vector<1x128xf32>
    %285 = arith.mulf %278, %278 : vector<8x128xf32>
    %cst_111 = arith.constant dense<0.000000e+00> : vector<128xf32>
    %286 = vector.multi_reduction <add>, %285, %cst_111 [0] : vector<8x128xf32> to vector<128xf32>
    %287 = vector.shape_cast %286 : vector<128xf32> to vector<1x128xf32>
    %cst_112 = arith.constant 8.000000e+00 : f32
    %288 = vector.broadcast %cst_112 : f32 to vector<1x128xf32>
    %289 = arith.divf %287, %288 : vector<1x128xf32>
    %290 = arith.mulf %284, %284 : vector<1x128xf32>
    %291 = arith.subf %289, %290 : vector<1x128xf32>
    %cst_113 = arith.constant 0.000000e+00 : f32
    %292 = vector.broadcast %cst_113 : f32 to vector<1x128xf32>
    %293 = arith.maximumf %291, %292 : vector<1x128xf32>
    %cst_114 = arith.constant 9.99999974E-6 : f32
    %294 = vector.broadcast %cst_114 : f32 to vector<1x128xf32>
    %295 = arith.addf %293, %294 : vector<1x128xf32>
    %296 = math.rsqrt %295 : vector<1x128xf32>
    %297 = arith.mulf %279, %296 : vector<1x128xf32>
    %298 = arith.mulf %284, %297 : vector<1x128xf32>
    %299 = arith.subf %280, %298 : vector<1x128xf32>
    %300 = vector.broadcast %297 : vector<1x128xf32> to vector<8x128xf32>
    %301 = arith.mulf %278, %300 : vector<8x128xf32>
    %302 = vector.broadcast %299 : vector<1x128xf32> to vector<8x128xf32>
    %303 = arith.addf %301, %302 : vector<8x128xf32>
    %c1152 = arith.constant 1152 : index
    %c0_115 = arith.constant 0 : index
    %304 = vector.load %arg1[%c1152, %c0_115] : memref<1280x128xbf16, #tpu.memory_space<vmem>>, vector<128x128xbf16>
    %c30 = arith.constant 30 : index
    %c0_116 = arith.constant 0 : index
    %305 = vector.load %arg5[%c30, %c0_116] : memref<48x896xf32, #tpu.memory_space<vmem>>, vector<1x128xf32>
    %306 = arith.truncf %303 : vector<8x128xf32> to vector<8x128xbf16>
    %cst_117 = arith.constant dense<0.000000e+00> : vector<8x128xf32>
    %307 = tpu.matmul %306, %304, %cst_117 {dimension_numbers = #tpu.dot_dimension_numbers<[1], [0], [0], [1], [0, 0, 1, 1], [], []>} : vector<8x128xbf16>, vector<128x128xbf16>, vector<8x128xf32> -> vector<8x128xf32>
    %308 = vector.broadcast %305 : vector<1x128xf32> to vector<8x128xf32>
    %309 = arith.addf %307, %308 : vector<8x128xf32>
    %cst_118 = arith.constant 0.000000e+00 : f32
    %310 = vector.broadcast %cst_118 : f32 to vector<8x128xf32>
    %311 = arith.maximumf %309, %310 : vector<8x128xf32>
    %c31 = arith.constant 31 : index
    %c0_119 = arith.constant 0 : index
    %312 = vector.load %arg5[%c31, %c0_119] : memref<48x896xf32, #tpu.memory_space<vmem>>, vector<1x128xf32>
    %c32 = arith.constant 32 : index
    %c0_120 = arith.constant 0 : index
    %313 = vector.load %arg5[%c32, %c0_120] : memref<48x896xf32, #tpu.memory_space<vmem>>, vector<1x128xf32>
    %cst_121 = arith.constant dense<0.000000e+00> : vector<128xf32>
    %314 = vector.multi_reduction <add>, %311, %cst_121 [0] : vector<8x128xf32> to vector<128xf32>
    %315 = vector.shape_cast %314 : vector<128xf32> to vector<1x128xf32>
    %cst_122 = arith.constant 8.000000e+00 : f32
    %316 = vector.broadcast %cst_122 : f32 to vector<1x128xf32>
    %317 = arith.divf %315, %316 : vector<1x128xf32>
    %318 = arith.mulf %311, %311 : vector<8x128xf32>
    %cst_123 = arith.constant dense<0.000000e+00> : vector<128xf32>
    %319 = vector.multi_reduction <add>, %318, %cst_123 [0] : vector<8x128xf32> to vector<128xf32>
    %320 = vector.shape_cast %319 : vector<128xf32> to vector<1x128xf32>
    %cst_124 = arith.constant 8.000000e+00 : f32
    %321 = vector.broadcast %cst_124 : f32 to vector<1x128xf32>
    %322 = arith.divf %320, %321 : vector<1x128xf32>
    %323 = arith.mulf %317, %317 : vector<1x128xf32>
    %324 = arith.subf %322, %323 : vector<1x128xf32>
    %cst_125 = arith.constant 0.000000e+00 : f32
    %325 = vector.broadcast %cst_125 : f32 to vector<1x128xf32>
    %326 = arith.maximumf %324, %325 : vector<1x128xf32>
    %cst_126 = arith.constant 9.99999974E-6 : f32
    %327 = vector.broadcast %cst_126 : f32 to vector<1x128xf32>
    %328 = arith.addf %326, %327 : vector<1x128xf32>
    %329 = math.rsqrt %328 : vector<1x128xf32>
    %330 = arith.mulf %312, %329 : vector<1x128xf32>
    %331 = arith.mulf %317, %330 : vector<1x128xf32>
    %332 = arith.subf %313, %331 : vector<1x128xf32>
    %333 = vector.broadcast %330 : vector<1x128xf32> to vector<8x128xf32>
    %334 = arith.mulf %311, %333 : vector<8x128xf32>
    %335 = vector.broadcast %332 : vector<1x128xf32> to vector<8x128xf32>
    %336 = arith.addf %334, %335 : vector<8x128xf32>
    %c512_127 = arith.constant 512 : index
    %c0_128 = arith.constant 0 : index
    %337 = vector.load %arg2[%c512_127, %c0_128] : memref<640x256xbf16, #tpu.memory_space<vmem>>, vector<128x256xbf16>
    %c33 = arith.constant 33 : index
    %c0_129 = arith.constant 0 : index
    %338 = vector.load %arg5[%c33, %c0_129] : memref<48x896xf32, #tpu.memory_space<vmem>>, vector<1x256xf32>
    %339 = arith.truncf %336 : vector<8x128xf32> to vector<8x128xbf16>
    %cst_130 = arith.constant dense<0.000000e+00> : vector<8x256xf32>
    %340 = tpu.matmul %339, %337, %cst_130 {dimension_numbers = #tpu.dot_dimension_numbers<[1], [0], [0], [1], [0, 0, 1, 1], [], []>} : vector<8x128xbf16>, vector<128x256xbf16>, vector<8x256xf32> -> vector<8x256xf32>
    %341 = vector.broadcast %338 : vector<1x256xf32> to vector<8x256xf32>
    %342 = arith.addf %340, %341 : vector<8x256xf32>
    %cst_131 = arith.constant 0.000000e+00 : f32
    %343 = vector.broadcast %cst_131 : f32 to vector<8x256xf32>
    %344 = arith.maximumf %342, %343 : vector<8x256xf32>
    %c34 = arith.constant 34 : index
    %c0_132 = arith.constant 0 : index
    %345 = vector.load %arg5[%c34, %c0_132] : memref<48x896xf32, #tpu.memory_space<vmem>>, vector<1x256xf32>
    %c35 = arith.constant 35 : index
    %c0_133 = arith.constant 0 : index
    %346 = vector.load %arg5[%c35, %c0_133] : memref<48x896xf32, #tpu.memory_space<vmem>>, vector<1x256xf32>
    %cst_134 = arith.constant dense<0.000000e+00> : vector<256xf32>
    %347 = vector.multi_reduction <add>, %344, %cst_134 [0] : vector<8x256xf32> to vector<256xf32>
    %348 = vector.shape_cast %347 : vector<256xf32> to vector<1x256xf32>
    %cst_135 = arith.constant 8.000000e+00 : f32
    %349 = vector.broadcast %cst_135 : f32 to vector<1x256xf32>
    %350 = arith.divf %348, %349 : vector<1x256xf32>
    %351 = arith.mulf %344, %344 : vector<8x256xf32>
    %cst_136 = arith.constant dense<0.000000e+00> : vector<256xf32>
    %352 = vector.multi_reduction <add>, %351, %cst_136 [0] : vector<8x256xf32> to vector<256xf32>
    %353 = vector.shape_cast %352 : vector<256xf32> to vector<1x256xf32>
    %cst_137 = arith.constant 8.000000e+00 : f32
    %354 = vector.broadcast %cst_137 : f32 to vector<1x256xf32>
    %355 = arith.divf %353, %354 : vector<1x256xf32>
    %356 = arith.mulf %350, %350 : vector<1x256xf32>
    %357 = arith.subf %355, %356 : vector<1x256xf32>
    %cst_138 = arith.constant 0.000000e+00 : f32
    %358 = vector.broadcast %cst_138 : f32 to vector<1x256xf32>
    %359 = arith.maximumf %357, %358 : vector<1x256xf32>
    %cst_139 = arith.constant 9.99999974E-6 : f32
    %360 = vector.broadcast %cst_139 : f32 to vector<1x256xf32>
    %361 = arith.addf %359, %360 : vector<1x256xf32>
    %362 = math.rsqrt %361 : vector<1x256xf32>
    %363 = arith.mulf %345, %362 : vector<1x256xf32>
    %364 = arith.mulf %350, %363 : vector<1x256xf32>
    %365 = arith.subf %346, %364 : vector<1x256xf32>
    %366 = vector.broadcast %363 : vector<1x256xf32> to vector<8x256xf32>
    %367 = arith.mulf %344, %366 : vector<8x256xf32>
    %368 = vector.broadcast %365 : vector<1x256xf32> to vector<8x256xf32>
    %369 = arith.addf %367, %368 : vector<8x256xf32>
    %c896_140 = arith.constant 896 : index
    %c0_141 = arith.constant 0 : index
    %370 = vector.load %arg3[%c896_140, %c0_141] : memref<1152x512xbf16, #tpu.memory_space<vmem>>, vector<256x512xbf16>
    %c36 = arith.constant 36 : index
    %c0_142 = arith.constant 0 : index
    %371 = vector.load %arg5[%c36, %c0_142] : memref<48x896xf32, #tpu.memory_space<vmem>>, vector<1x512xf32>
    %372 = arith.truncf %369 : vector<8x256xf32> to vector<8x256xbf16>
    %cst_143 = arith.constant dense<0.000000e+00> : vector<8x512xf32>
    %373 = tpu.matmul %372, %370, %cst_143 {dimension_numbers = #tpu.dot_dimension_numbers<[1], [0], [0], [1], [0, 0, 1, 1], [], []>} : vector<8x256xbf16>, vector<256x512xbf16>, vector<8x512xf32> -> vector<8x512xf32>
    %374 = vector.broadcast %371 : vector<1x512xf32> to vector<8x512xf32>
    %375 = arith.addf %373, %374 : vector<8x512xf32>
    %cst_144 = arith.constant 0.000000e+00 : f32
    %376 = vector.broadcast %cst_144 : f32 to vector<8x512xf32>
    %377 = arith.maximumf %375, %376 : vector<8x512xf32>
    %c37 = arith.constant 37 : index
    %c0_145 = arith.constant 0 : index
    %378 = vector.load %arg5[%c37, %c0_145] : memref<48x896xf32, #tpu.memory_space<vmem>>, vector<1x512xf32>
    %c38 = arith.constant 38 : index
    %c0_146 = arith.constant 0 : index
    %379 = vector.load %arg5[%c38, %c0_146] : memref<48x896xf32, #tpu.memory_space<vmem>>, vector<1x512xf32>
    %cst_147 = arith.constant dense<0.000000e+00> : vector<512xf32>
    %380 = vector.multi_reduction <add>, %377, %cst_147 [0] : vector<8x512xf32> to vector<512xf32>
    %381 = vector.shape_cast %380 : vector<512xf32> to vector<1x512xf32>
    %cst_148 = arith.constant 8.000000e+00 : f32
    %382 = vector.broadcast %cst_148 : f32 to vector<1x512xf32>
    %383 = arith.divf %381, %382 : vector<1x512xf32>
    %384 = arith.mulf %377, %377 : vector<8x512xf32>
    %cst_149 = arith.constant dense<0.000000e+00> : vector<512xf32>
    %385 = vector.multi_reduction <add>, %384, %cst_149 [0] : vector<8x512xf32> to vector<512xf32>
    %386 = vector.shape_cast %385 : vector<512xf32> to vector<1x512xf32>
    %cst_150 = arith.constant 8.000000e+00 : f32
    %387 = vector.broadcast %cst_150 : f32 to vector<1x512xf32>
    %388 = arith.divf %386, %387 : vector<1x512xf32>
    %389 = arith.mulf %383, %383 : vector<1x512xf32>
    %390 = arith.subf %388, %389 : vector<1x512xf32>
    %cst_151 = arith.constant 0.000000e+00 : f32
    %391 = vector.broadcast %cst_151 : f32 to vector<1x512xf32>
    %392 = arith.maximumf %390, %391 : vector<1x512xf32>
    %cst_152 = arith.constant 9.99999974E-6 : f32
    %393 = vector.broadcast %cst_152 : f32 to vector<1x512xf32>
    %394 = arith.addf %392, %393 : vector<1x512xf32>
    %395 = math.rsqrt %394 : vector<1x512xf32>
    %396 = arith.mulf %378, %395 : vector<1x512xf32>
    %397 = arith.mulf %383, %396 : vector<1x512xf32>
    %398 = arith.subf %379, %397 : vector<1x512xf32>
    %399 = vector.broadcast %396 : vector<1x512xf32> to vector<8x512xf32>
    %400 = arith.mulf %377, %399 : vector<8x512xf32>
    %401 = vector.broadcast %398 : vector<1x512xf32> to vector<8x512xf32>
    %402 = arith.addf %400, %401 : vector<8x512xf32>
    %c0_153 = arith.constant 0 : index
    %c0_154 = arith.constant 0 : index
    %403 = vector.load %arg4[%c0_153, %c0_154] : memref<512x896xbf16, #tpu.memory_space<vmem>>, vector<512x896xbf16>
    %c39 = arith.constant 39 : index
    %c0_155 = arith.constant 0 : index
    %404 = vector.load %arg5[%c39, %c0_155] : memref<48x896xf32, #tpu.memory_space<vmem>>, vector<1x896xf32>
    %405 = arith.truncf %402 : vector<8x512xf32> to vector<8x512xbf16>
    %cst_156 = arith.constant dense<0.000000e+00> : vector<8x896xf32>
    %406 = tpu.matmul %405, %403, %cst_156 {dimension_numbers = #tpu.dot_dimension_numbers<[1], [0], [0], [1], [0, 0, 1, 1], [], []>} : vector<8x512xbf16>, vector<512x896xbf16>, vector<8x896xf32> -> vector<8x896xf32>
    %407 = vector.broadcast %404 : vector<1x896xf32> to vector<8x896xf32>
    %408 = arith.addf %406, %407 : vector<8x896xf32>
    %c0_157 = arith.constant 0 : index
    %c0_158 = arith.constant 0 : index
    %409 = vector.load %arg6[%c0_157, %c0_158] : memref<8x896xf32, #tpu.memory_space<vmem>>, vector<8x896xf32>
    tpu.vector_store %arg6[%c0_157, %c0_158], %408 {strides = array<i32>} : memref<8x896xf32, #tpu.memory_space<vmem>>, vector<8x896xf32>,
    return
  }
}

</mosaic_0001>

<llo_original>
// kernel: tpu_custom_call.1
$region0: #{tpu_custom_call.1}
  #allocation0 [shape = 'u32[]', space=smem, size = 0x4, offset = 0x4, fixed_abs, tag = 'smem constant byte address 0x4 - core index']
  #allocation1 [shape = 'u32[144,128]{1,0:T(1,128)}', space=vmem, size = 0x12000, scoped, tag = 'internal scratch']
  %s0 = inlined_call_operand.hbm [shape: f32[8,896], index: 0, kind: input, shape index: {}]
  %s1 = inlined_call_operand.hbm [shape: bf16[1280,128], index: 1, kind: input, shape index: {}]
  %s2 = inlined_call_operand.hbm [shape: bf16[640,256], index: 2, kind: input, shape index: {}]
  %s3 = inlined_call_operand.hbm [shape: bf16[1152,512], index: 3, kind: input, shape index: {}]
  %s4 = inlined_call_operand.hbm [shape: bf16[512,896], index: 4, kind: input, shape index: {}]
  %s5 = inlined_call_operand.hbm [shape: f32[48,896], index: 5, kind: input, shape index: {}]
  %s6 = inlined_call_operand.hbm [shape: f32[8,896], index: 6, kind: output, shape index: {}]
  %s7 = sld [smem:[#allocation0]]
  $region58: #{tpu_custom_call.1} parent=0
    _
  %s9 = ssub.s32 1, %s7
  %s10 = scalar_select 0, %s9, %s7
  $region1: #{tpu_custom_call.1} parent=0
    #allocation2 [shape = 'u8[28672]{0}', space=vmem, size = 0x7000, scoped, tag = 'input window, operand 0, single buffered']
    #allocation3 [shape = 's32[1]{0}', space=sflag, size = 0x4, scoped, tag = 'scoped memory for tpu_custom_call.1']
    #allocation4 [shape = 's32[1]{0}', space=sflag, size = 0x4, scoped, tag = 'scoped memory for tpu_custom_call.1']
    #allocation5 [shape = 'u8[327680]{0}', space=vmem, size = 0x50000, scoped, tag = 'input window, operand 1, single buffered']
    #allocation6 [shape = 's32[1]{0}', space=sflag, size = 0x4, scoped, tag = 'scoped memory for tpu_custom_call.1']
    #allocation7 [shape = 'u8[327680]{0}', space=vmem, size = 0x50000, scoped, tag = 'input window, operand 2, single buffered']
    #allocation8 [shape = 'u8[1179648]{0}', space=vmem, size = 0x120000, scoped, tag = 'input window, operand 3, single buffered']
    #allocation9 [shape = 's32[1]{0}', space=sflag, size = 0x4, scoped, tag = 'scoped memory for tpu_custom_call.1']
    #allocation10 [shape = 'u8[917504]{0}', space=vmem, size = 0xe0000, scoped, tag = 'input window, operand 4, single buffered']
    #allocation11 [shape = 'u8[172032]{0}', space=vmem, size = 0x2a000, scoped, tag = 'input window, operand 5, single buffered']
    #allocation12 [shape = 's32[1]{0}', space=sflag, size = 0x4, scoped, tag = 'scoped memory for tpu_custom_call.1']
    #allocation13 [shape = 'u8[28672]{0}', space=vmem, size = 0x7000, scoped, tag = 'output window, operand 0, single buffered']
    %11 = vsyncpa [#allocation3], 0
    %12 = vsyncpa [#allocation6], 0
    %13 = vsyncpa [#allocation9], 0
    %14 = vsyncpa [#allocation12], 0
    %15 = vsyncpa [#allocation4], 0
    // Predicated region
    $region2: #{tpu_custom_call.1} parent=1 // pred_check
      _
    $region3: #{tpu_custom_call.1} parent=1 // pred_check_branch
      %17 = sbr.rel (0) target = $region5
    $region4: #{tpu_custom_call.1} parent=1 // pred_region
      %s19 = ssub.s32 896, 896
      %20 = vsyncadd [#allocation3], %s19
      %s22 = sshll.u32 [#allocation2], 4
      %s23 = int_to_ptr.vmem [resolvable:$true] %s22
      %25 = dma.hbm_to_vmem [thread:$0]  %s0, 896, %s23, [#allocation3]
    $region5: #{tpu_custom_call.1} parent=1 // pred_fallthru
      _
    // Predicated region
    $region6: #{tpu_custom_call.1} parent=1 // pred_check
      _
    $region7: #{tpu_custom_call.1} parent=1 // pred_check_branch
      %27 = sbr.rel (0) target = $region9
    $region8: #{tpu_custom_call.1} parent=1 // pred_region
      %s29 = ssub.s32 10240, 10240
      %30 = vsyncadd [#allocation6], %s29
      %s31 = sshll.u32 [#allocation5], 4
      %s32 = int_to_ptr.vmem [resolvable:$true] %s31
      %37 = dma.hbm_to_vmem [thread:$0]  %s1, 10240, %s32, [#allocation6], 64, 64, 4
    $region9: #{tpu_custom_call.1} parent=1 // pred_fallthru
      _
    // Predicated region
    $region10: #{tpu_custom_call.1} parent=1 // pred_check
      _
    $region11: #{tpu_custom_call.1} parent=1 // pred_check_branch
      %39 = sbr.rel (0) target = $region13
    $region12: #{tpu_custom_call.1} parent=1 // pred_region
      %s41 = ssub.s32 10240, 10240
      %42 = vsyncadd [#allocation6], %s41
      %s43 = sshll.u32 [#allocation7], 4
      %s44 = int_to_ptr.vmem [resolvable:$true] %s43
      %49 = dma.hbm_to_vmem [thread:$0]  %s2, 10240, %s44, [#allocation6], 128, 128, 8
    $region13: #{tpu_custom_call.1} parent=1 // pred_fallthru
      _
    // Predicated region
    $region14: #{tpu_custom_call.1} parent=1 // pred_check
      _
    $region15: #{tpu_custom_call.1} parent=1 // pred_check_branch
      %51 = sbr.rel (0) target = $region17
    $region16: #{tpu_custom_call.1} parent=1 // pred_region
      %s53 = ssub.s32 36864, 36864
      %54 = vsyncadd [#allocation9], %s53
      %s55 = sshll.u32 [#allocation8], 4
      %s56 = int_to_ptr.vmem [resolvable:$true] %s55
      %61 = dma.hbm_to_vmem [thread:$0]  %s3, 36864, %s56, [#allocation9], 256, 256, 16
    $region17: #{tpu_custom_call.1} parent=1 // pred_fallthru
      _
    // Predicated region
    $region18: #{tpu_custom_call.1} parent=1 // pred_check
      _
    $region19: #{tpu_custom_call.1} parent=1 // pred_check_branch
      %63 = sbr.rel (0) target = $region21
    $region20: #{tpu_custom_call.1} parent=1 // pred_region
      %s65 = ssub.s32 28672, 28672
      %66 = vsyncadd [#allocation9], %s65
      %s67 = sshll.u32 [#allocation10], 4
      %s68 = int_to_ptr.vmem [resolvable:$true] %s67
      %73 = dma.hbm_to_vmem [thread:$0]  %s4, 28672, %s68, [#allocation9], 448, 448, 28
    $region21: #{tpu_custom_call.1} parent=1 // pred_fallthru
      _
    // Predicated region
    $region22: #{tpu_custom_call.1} parent=1 // pred_check
      _
    $region23: #{tpu_custom_call.1} parent=1 // pred_check_branch
      %75 = sbr.rel (0) target = $region25
    $region24: #{tpu_custom_call.1} parent=1 // pred_region
      %s77 = ssub.s32 5376, 5376
      %78 = vsyncadd [#allocation12], %s77
      %s79 = sshll.u32 [#allocation11], 4
      %s80 = int_to_ptr.vmem [resolvable:$true] %s79
      %85 = dma.hbm_to_vmem [thread:$0]  %s5, 5376, %s80, [#allocation12], 896, 896, 56
    $region25: #{tpu_custom_call.1} parent=1 // pred_fallthru
      _
    // Predicated region
    $region26: #{tpu_custom_call.1} parent=1 // pred_check
      _
    $region27: #{tpu_custom_call.1} parent=1 // pred_check_branch
      %87 = sbr.rel (0) target = $region29
    $region28: #{tpu_custom_call.1} parent=1 // pred_region
      %88 = dma.done [#allocation3], 896
    $region29: #{tpu_custom_call.1} parent=1 // pred_fallthru
      _
    // Predicated region
    $region30: #{tpu_custom_call.1} parent=1 // pred_check
      _
    $region31: #{tpu_custom_call.1} parent=1 // pred_check_branch
      %90 = sbr.rel (0) target = $region33
    $region32: #{tpu_custom_call.1} parent=1 // pred_region
      %91 = dma.done [#allocation6], 10240
    $region33: #{tpu_custom_call.1} parent=1 // pred_fallthru
      _
    // Predicated region
    $region34: #{tpu_custom_call.1} parent=1 // pred_check
      _
    $region35: #{tpu_custom_call.1} parent=1 // pred_check_branch
      %93 = sbr.rel (0) target = $region37
    $region36: #{tpu_custom_call.1} parent=1 // pred_region
      %94 = dma.done [#allocation6], 10240
    $region37: #{tpu_custom_call.1} parent=1 // pred_fallthru
      _
    // Predicated region
    $region38: #{tpu_custom_call.1} parent=1 // pred_check
      _
    $region39: #{tpu_custom_call.1} parent=1 // pred_check_branch
      %96 = sbr.rel (0) target = $region41
    $region40: #{tpu_custom_call.1} parent=1 // pred_region
      %97 = dma.done [#allocation9], 36864
    $region41: #{tpu_custom_call.1} parent=1 // pred_fallthru
      _
    // Predicated region
    $region42: #{tpu_custom_call.1} parent=1 // pred_check
      _
    $region43: #{tpu_custom_call.1} parent=1 // pred_check_branch
      %99 = sbr.rel (0) target = $region45
    $region44: #{tpu_custom_call.1} parent=1 // pred_region
      %100 = dma.done [#allocation9], 28672
    $region45: #{tpu_custom_call.1} parent=1 // pred_fallthru
      _
    // Predicated region
    $region46: #{tpu_custom_call.1} parent=1 // pred_check
      _
    $region47: #{tpu_custom_call.1} parent=1 // pred_check_branch
      %102 = sbr.rel (0) target = $region49
    $region48: #{tpu_custom_call.1} parent=1 // pred_region
      %103 = dma.done [#allocation12], 5376
    $region49: #{tpu_custom_call.1} parent=1 // pred_fallthru
      _
    %v105 = vld [vmem:[#allocation2] sm:$0xff]
    %v106 = vld [vmem:[#allocation2 + $0x8] sm:$0xff]
    %v107 = vld [vmem:[#allocation2 + $0x10] sm:$0xff]
    %v108 = vld [vmem:[#allocation2 + $0x18] sm:$0xff]
    %v109 = vld [vmem:[#allocation2 + $0x20] sm:$0xff]
    %v110 = vld [vmem:[#allocation2 + $0x28] sm:$0xff]
    %v111 = vld [vmem:[#allocation2 + $0x30] sm:$0xff]
    %v112 = vld [vmem:[#allocation8] sm:$0xff]
    %v113 = vld [vmem:[#allocation8 + $0x8] sm:$0xff]
    %v114 = vld [vmem:[#allocation8 + $0x10] sm:$0xff]
    %v115 = vld [vmem:[#allocation8 + $0x18] sm:$0xff]
    %v116 = vld [vmem:[#allocation8 + $0x20] sm:$0xff]
    %v117 = vld [vmem:[#allocation8 + $0x28] sm:$0xff]
    %v118 = vld [vmem:[#allocation8 + $0x30] sm:$0xff]
    %v119 = vld [vmem:[#allocation8 + $0x38] sm:$0xff]
    %v120 = vld [vmem:[#allocation8 + $0x40] sm:$0xff]
    %v121 = vld [vmem:[#allocation8 + $0x48] sm:$0xff]
    %v122 = vld [vmem:[#allocation8 + $0x50] sm:$0xff]
    %v123 = vld [vmem:[#allocation8 + $0x58] sm:$0xff]
    %v124 = vld [vmem:[#allocation8 + $0x60] sm:$0xff]
    %v125 = vld [vmem:[#allocation8 + $0x68] sm:$0xff]
    %v126 = vld [vmem:[#allocation8 + $0x70] sm:$0xff]
    %v127 = vld [vmem:[#allocation8 + $0x78] sm:$0xff]
    %v128 = vld [vmem:[#allocation8 + $0x80] sm:$0xff]
    %v129 = vld [vmem:[#allocation8 + $0x88] sm:$0xff]
    %v130 = vld [vmem:[#allocation8 + $0x90] sm:$0xff]
    %v131 = vld [vmem:[#allocation8 + $0x98] sm:$0xff]
    %v132 = vld [vmem:[#allocation8 + $0xa0] sm:$0xff]
    %v133 = vld [vmem:[#allocation8 + $0xa8] sm:$0xff]
    %v134 = vld [vmem:[#allocation8 + $0xb0] sm:$0xff]
    %v135 = vld [vmem:[#allocation8 + $0xb8] sm:$0xff]
    %v136 = vld [vmem:[#allocation8 + $0xc0] sm:$0xff]
    %v137 = vld [vmem:[#allocation8 + $0xc8] sm:$0xff]
    %v138 = vld [vmem:[#allocation8 + $0xd0] sm:$0xff]
    %v139 = vld [vmem:[#allocation8 + $0xd8] sm:$0xff]
    %v140 = vld [vmem:[#allocation8 + $0xe0] sm:$0xff]
    %v141 = vld [vmem:[#allocation8 + $0xe8] sm:$0xff]
    %v142 = vld [vmem:[#allocation8 + $0xf0] sm:$0xff]
    %v143 = vld [vmem:[#allocation8 + $0xf8] sm:$0xff]
    %v144 = vld [vmem:[#allocation8 + $0x100] sm:$0xff]
    %v145 = vld [vmem:[#allocation8 + $0x108] sm:$0xff]
    %v146 = vld [vmem:[#allocation8 + $0x110] sm:$0xff]
    %v147 = vld [vmem:[#allocation8 + $0x118] sm:$0xff]
    %v148 = vld [vmem:[#allocation8 + $0x120] sm:$0xff]
    %v149 = vld [vmem:[#allocation8 + $0x128] sm:$0xff]
    %v150 = vld [vmem:[#allocation8 + $0x130] sm:$0xff]
    %v151 = vld [vmem:[#allocation8 + $0x138] sm:$0xff]
    %v152 = vld [vmem:[#allocation8 + $0x140] sm:$0xff]
    %v153 = vld [vmem:[#allocation8 + $0x148] sm:$0xff]
    %v154 = vld [vmem:[#allocation8 + $0x150] sm:$0xff]
    %v155 = vld [vmem:[#allocation8 + $0x158] sm:$0xff]
    %v156 = vld [vmem:[#allocation8 + $0x160] sm:$0xff]
    %v157 = vld [vmem:[#allocation8 + $0x168] sm:$0xff]
    %v158 = vld [vmem:[#allocation8 + $0x170] sm:$0xff]
    %v159 = vld [vmem:[#allocation8 + $0x178] sm:$0xff]
    %v160 = vld [vmem:[#allocation8 + $0x180] sm:$0xff]
    %v161 = vld [vmem:[#allocation8 + $0x188] sm:$0xff]
    %v162 = vld [vmem:[#allocation8 + $0x190] sm:$0xff]
    %v163 = vld [vmem:[#allocation8 + $0x198] sm:$0xff]
    %v164 = vld [vmem:[#allocation8 + $0x1a0] sm:$0xff]
    %v165 = vld [vmem:[#allocation8 + $0x1a8] sm:$0xff]
    %v166 = vld [vmem:[#allocation8 + $0x1b0] sm:$0xff]
    %v167 = vld [vmem:[#allocation8 + $0x1b8] sm:$0xff]
    %v168 = vld [vmem:[#allocation8 + $0x1c0] sm:$0xff]
    %v169 = vld [vmem:[#allocation8 + $0x1c8] sm:$0xff]
    %v170 = vld [vmem:[#allocation8 + $0x1d0] sm:$0xff]
    %v171 = vld [vmem:[#allocation8 + $0x1d8] sm:$0xff]
    %v172 = vld [vmem:[#allocation8 + $0x1e0] sm:$0xff]
    %v173 = vld [vmem:[#allocation8 + $0x1e8] sm:$0xff]
    %v174 = vld [vmem:[#allocation8 + $0x1f0] sm:$0xff]
    %v175 = vld [vmem:[#allocation8 + $0x1f8] sm:$0xff]
    %v176 = vld [vmem:[#allocation8 + $0x200] sm:$0xff]
    %v177 = vld [vmem:[#allocation8 + $0x208] sm:$0xff]
    %v178 = vld [vmem:[#allocation8 + $0x210] sm:$0xff]
    %v179 = vld [vmem:[#allocation8 + $0x218] sm:$0xff]
    %v180 = vld [vmem:[#allocation8 + $0x220] sm:$0xff]
    %v181 = vld [vmem:[#allocation8 + $0x228] sm:$0xff]
    %v182 = vld [vmem:[#allocation8 + $0x230] sm:$0xff]
    %v183 = vld [vmem:[#allocation8 + $0x238] sm:$0xff]
    %v184 = vld [vmem:[#allocation8 + $0x240] sm:$0xff]
    %v185 = vld [vmem:[#allocation8 + $0x248] sm:$0xff]
    %v186 = vld [vmem:[#allocation8 + $0x250] sm:$0xff]
    %v187 = vld [vmem:[#allocation8 + $0x258] sm:$0xff]
    %v188 = vld [vmem:[#allocation8 + $0x260] sm:$0xff]
    %v189 = vld [vmem:[#allocation8 + $0x268] sm:$0xff]
    %v190 = vld [vmem:[#allocation8 + $0x270] sm:$0xff]
    %v191 = vld [vmem:[#allocation8 + $0x278] sm:$0xff]
    %v192 = vld [vmem:[#allocation8 + $0x280] sm:$0xff]
    %v193 = vld [vmem:[#allocation8 + $0x288] sm:$0xff]
    %v194 = vld [vmem:[#allocation8 + $0x290] sm:$0xff]
    %v195 = vld [vmem:[#allocation8 + $0x298] sm:$0xff]
    %v196 = vld [vmem:[#allocation8 + $0x2a0] sm:$0xff]
    %v197 = vld [vmem:[#allocation8 + $0x2a8] sm:$0xff]
    %v198 = vld [vmem:[#allocation8 + $0x2b0] sm:$0xff]
    %v199 = vld [vmem:[#allocation8 + $0x2b8] sm:$0xff]
    %v200 = vld [vmem:[#allocation8 + $0x2c0] sm:$0xff]
    %v201 = vld [vmem:[#allocation8 + $0x2c8] sm:$0xff]
    %v202 = vld [vmem:[#allocation8 + $0x2d0] sm:$0xff]
    %v203 = vld [vmem:[#allocation8 + $0x2d8] sm:$0xff]
    %v204 = vld [vmem:[#allocation8 + $0x2e0] sm:$0xff]
    %v205 = vld [vmem:[#allocation8 + $0x2e8] sm:$0xff]
    %v206 = vld [vmem:[#allocation8 + $0x2f0] sm:$0xff]
    %v207 = vld [vmem:[#allocation8 + $0x2f8] sm:$0xff]
    %v208 = vld [vmem:[#allocation8 + $0x300] sm:$0xff]
    %v209 = vld [vmem:[#allocation8 + $0x308] sm:$0xff]
    %v210 = vld [vmem:[#allocation8 + $0x310] sm:$0xff]
    %v211 = vld [vmem:[#allocation8 + $0x318] sm:$0xff]
    %v212 = vld [vmem:[#allocation8 + $0x320] sm:$0xff]
    %v213 = vld [vmem:[#allocation8 + $0x328] sm:$0xff]
    %v214 = vld [vmem:[#allocation8 + $0x330] sm:$0xff]
    %v215 = vld [vmem:[#allocation8 + $0x338] sm:$0xff]
    %v216 = vld [vmem:[#allocation8 + $0x340] sm:$0xff]
    %v217 = vld [vmem:[#allocation8 + $0x348] sm:$0xff]
    %v218 = vld [vmem:[#allocation8 + $0x350] sm:$0xff]
    %v219 = vld [vmem:[#allocation8 + $0x358] sm:$0xff]
    %v220 = vld [vmem:[#allocation8 + $0x360] sm:$0xff]
    %v221 = vld [vmem:[#allocation8 + $0x368] sm:$0xff]
    %v222 = vld [vmem:[#allocation8 + $0x370] sm:$0xff]
    %v223 = vld [vmem:[#allocation8 + $0x378] sm:$0xff]
    %v224 = vld [vmem:[#allocation8 + $0x380] sm:$0xff]
    %v225 = vld [vmem:[#allocation8 + $0x388] sm:$0xff]
    %v226 = vld [vmem:[#allocation8 + $0x390] sm:$0xff]
    %v227 = vld [vmem:[#allocation8 + $0x398] sm:$0xff]
    %v228 = vld [vmem:[#allocation8 + $0x3a0] sm:$0xff]
    %v229 = vld [vmem:[#allocation8 + $0x3a8] sm:$0xff]
    %v230 = vld [vmem:[#allocation8 + $0x3b0] sm:$0xff]
    %v231 = vld [vmem:[#allocation8 + $0x3b8] sm:$0xff]
    %v232 = vld [vmem:[#allocation8 + $0x3c0] sm:$0xff]
    %v233 = vld [vmem:[#allocation8 + $0x3c8] sm:$0xff]
    %v234 = vld [vmem:[#allocation8 + $0x3d0] sm:$0xff]
    %v235 = vld [vmem:[#allocation8 + $0x3d8] sm:$0xff]
    %v236 = vld [vmem:[#allocation8 + $0x3e0] sm:$0xff]
    %v237 = vld [vmem:[#allocation8 + $0x3e8] sm:$0xff]
    %v238 = vld [vmem:[#allocation8 + $0x3f0] sm:$0xff]
    %v239 = vld [vmem:[#allocation8 + $0x3f8] sm:$0xff]
    %v240 = vld [vmem:[#allocation8 + $0x400] sm:$0xff]
    %v241 = vld [vmem:[#allocation8 + $0x408] sm:$0xff]
    %v242 = vld [vmem:[#allocation8 + $0x410] sm:$0xff]
    %v243 = vld [vmem:[#allocation8 + $0x418] sm:$0xff]
    %v244 = vld [vmem:[#allocation8 + $0x420] sm:$0xff]
    %v245 = vld [vmem:[#allocation8 + $0x428] sm:$0xff]
    %v246 = vld [vmem:[#allocation8 + $0x430] sm:$0xff]
    %v247 = vld [vmem:[#allocation8 + $0x438] sm:$0xff]
    %v248 = vld [vmem:[#allocation8 + $0x440] sm:$0xff]
    %v249 = vld [vmem:[#allocation8 + $0x448] sm:$0xff]
    %v250 = vld [vmem:[#allocation8 + $0x450] sm:$0xff]
    %v251 = vld [vmem:[#allocation8 + $0x458] sm:$0xff]
    %v252 = vld [vmem:[#allocation8 + $0x460] sm:$0xff]
    %v253 = vld [vmem:[#allocation8 + $0x468] sm:$0xff]
    %v254 = vld [vmem:[#allocation8 + $0x470] sm:$0xff]
    %v255 = vld [vmem:[#allocation8 + $0x478] sm:$0xff]
    %v256 = vld [vmem:[#allocation8 + $0x480] sm:$0xff]
    %v257 = vld [vmem:[#allocation8 + $0x488] sm:$0xff]
    %v258 = vld [vmem:[#allocation8 + $0x490] sm:$0xff]
    %v259 = vld [vmem:[#allocation8 + $0x498] sm:$0xff]
    %v260 = vld [vmem:[#allocation8 + $0x4a0] sm:$0xff]
    %v261 = vld [vmem:[#allocation8 + $0x4a8] sm:$0xff]
    %v262 = vld [vmem:[#allocation8 + $0x4b0] sm:$0xff]
    %v263 = vld [vmem:[#allocation8 + $0x4b8] sm:$0xff]
    %v264 = vld [vmem:[#allocation8 + $0x4c0] sm:$0xff]
    %v265 = vld [vmem:[#allocation8 + $0x4c8] sm:$0xff]
    %v266 = vld [vmem:[#allocation8 + $0x4d0] sm:$0xff]
    %v267 = vld [vmem:[#allocation8 + $0x4d8] sm:$0xff]
    %v268 = vld [vmem:[#allocation8 + $0x4e0] sm:$0xff]
    %v269 = vld [vmem:[#allocation8 + $0x4e8] sm:$0xff]
    %v270 = vld [vmem:[#allocation8 + $0x4f0] sm:$0xff]
    %v271 = vld [vmem:[#allocation8 + $0x4f8] sm:$0xff]
    %v272 = vld [vmem:[#allocation8 + $0x500] sm:$0xff]
    %v273 = vld [vmem:[#allocation8 + $0x508] sm:$0xff]
    %v274 = vld [vmem:[#allocation8 + $0x510] sm:$0xff]
    %v275 = vld [vmem:[#allocation8 + $0x518] sm:$0xff]
    %v276 = vld [vmem:[#allocation8 + $0x520] sm:$0xff]
    %v277 = vld [vmem:[#allocation8 + $0x528] sm:$0xff]
    %v278 = vld [vmem:[#allocation8 + $0x530] sm:$0xff]
    %v279 = vld [vmem:[#allocation8 + $0x538] sm:$0xff]
    %v280 = vld [vmem:[#allocation8 + $0x540] sm:$0xff]
    %v281 = vld [vmem:[#allocation8 + $0x548] sm:$0xff]
    %v282 = vld [vmem:[#allocation8 + $0x550] sm:$0xff]
    %v283 = vld [vmem:[#allocation8 + $0x558] sm:$0xff]
    %v284 = vld [vmem:[#allocation8 + $0x560] sm:$0xff]
    %v285 = vld [vmem:[#allocation8 + $0x568] sm:$0xff]
    %v286 = vld [vmem:[#allocation8 + $0x570] sm:$0xff]
    %v287 = vld [vmem:[#allocation8 + $0x578] sm:$0xff]
    %v288 = vld [vmem:[#allocation8 + $0x580] sm:$0xff]
    %v289 = vld [vmem:[#allocation8 + $0x588] sm:$0xff]
    %v290 = vld [vmem:[#allocation8 + $0x590] sm:$0xff]
    %v291 = vld [vmem:[#allocation8 + $0x598] sm:$0xff]
    %v292 = vld [vmem:[#allocation8 + $0x5a0] sm:$0xff]
    %v293 = vld [vmem:[#allocation8 + $0x5a8] sm:$0xff]
    %v294 = vld [vmem:[#allocation8 + $0x5b0] sm:$0xff]
    %v295 = vld [vmem:[#allocation8 + $0x5b8] sm:$0xff]
    %v296 = vld [vmem:[#allocation8 + $0x5c0] sm:$0xff]
    %v297 = vld [vmem:[#allocation8 + $0x5c8] sm:$0xff]
    %v298 = vld [vmem:[#allocation8 + $0x5d0] sm:$0xff]
    %v299 = vld [vmem:[#allocation8 + $0x5d8] sm:$0xff]
    %v300 = vld [vmem:[#allocation8 + $0x5e0] sm:$0xff]
    %v301 = vld [vmem:[#allocation8 + $0x5e8] sm:$0xff]
    %v302 = vld [vmem:[#allocation8 + $0x5f0] sm:$0xff]
    %v303 = vld [vmem:[#allocation8 + $0x5f8] sm:$0xff]
    %v304 = vld [vmem:[#allocation8 + $0x600] sm:$0xff]
    %v305 = vld [vmem:[#allocation8 + $0x608] sm:$0xff]
    %v306 = vld [vmem:[#allocation8 + $0x610] sm:$0xff]
    %v307 = vld [vmem:[#allocation8 + $0x618] sm:$0xff]
    %v308 = vld [vmem:[#allocation8 + $0x620] sm:$0xff]
    %v309 = vld [vmem:[#allocation8 + $0x628] sm:$0xff]
    %v310 = vld [vmem:[#allocation8 + $0x630] sm:$0xff]
    %v311 = vld [vmem:[#allocation8 + $0x638] sm:$0xff]
    %v312 = vld [vmem:[#allocation8 + $0x640] sm:$0xff]
    %v313 = vld [vmem:[#allocation8 + $0x648] sm:$0xff]
    %v314 = vld [vmem:[#allocation8 + $0x650] sm:$0xff]
    %v315 = vld [vmem:[#allocation8 + $0x658] sm:$0xff]
    %v316 = vld [vmem:[#allocation8 + $0x660] sm:$0xff]
    %v317 = vld [vmem:[#allocation8 + $0x668] sm:$0xff]
    %v318 = vld [vmem:[#allocation8 + $0x670] sm:$0xff]
    %v319 = vld [vmem:[#allocation8 + $0x678] sm:$0xff]
    %v320 = vld [vmem:[#allocation8 + $0x680] sm:$0xff]
    %v321 = vld [vmem:[#allocation8 + $0x688] sm:$0xff]
    %v322 = vld [vmem:[#allocation8 + $0x690] sm:$0xff]
    %v323 = vld [vmem:[#allocation8 + $0x698] sm:$0xff]
    %v324 = vld [vmem:[#allocation8 + $0x6a0] sm:$0xff]
    %v325 = vld [vmem:[#allocation8 + $0x6a8] sm:$0xff]
    %v326 = vld [vmem:[#allocation8 + $0x6b0] sm:$0xff]
    %v327 = vld [vmem:[#allocation8 + $0x6b8] sm:$0xff]
    %v328 = vld [vmem:[#allocation8 + $0x6c0] sm:$0xff]
    %v329 = vld [vmem:[#allocation8 + $0x6c8] sm:$0xff]
    %v330 = vld [vmem:[#allocation8 + $0x6d0] sm:$0xff]
    %v331 = vld [vmem:[#allocation8 + $0x6d8] sm:$0xff]
    %v332 = vld [vmem:[#allocation8 + $0x6e0] sm:$0xff]
    %v333 = vld [vmem:[#allocation8 + $0x6e8] sm:$0xff]
    %v334 = vld [vmem:[#allocation8 + $0x6f0] sm:$0xff]
    %v335 = vld [vmem:[#allocation8 + $0x6f8] sm:$0xff]
    %v336 = vld [vmem:[#allocation11] ss:$8 sm:$0xf]
    %v337 = vpack.c.bf16 %v105, %v105
    %v338 = vpack.c.bf16 %v106, %v106
    %v339 = vpack.c.bf16 %v107, %v107
    %v340 = vpack.c.bf16 %v108, %v108
    %v341 = vpack.c.bf16 %v109, %v109
    %v342 = vpack.c.bf16 %v110, %v110
    %v343 = vpack.c.bf16 %v111, %v111
    %v345 = vlaneseq
    %v346 = vshrl.u32 %v345, 7
    %v347 = vsub.s32 0, %v346
    %v348 = vrot.slane %v336, %v347
    %v349 = vlaneseq
    %v350 = vshrl.u32 %v349, 7
    %v351 = vsub.s32 1, %v350
    %v352 = vrot.slane %v336, %v351
    %v353 = vlaneseq
    %v354 = vshrl.u32 %v353, 7
    %v355 = vsub.s32 2, %v354
    %v356 = vrot.slane %v336, %v355
    %v357 = vlaneseq
    %v358 = vshrl.u32 %v357, 7
    %v359 = vsub.s32 3, %v358
    %v360 = vrot.slane %v336, %v359
    %v589 = vunpack.c.l.b16 %v112
    %v590 = vunpack.c.h.b16 %v112
    %v591 = vunpack.c.l.b16 %v113
    %v592 = vunpack.c.h.b16 %v113
    %v593 = vunpack.c.l.b16 %v114
    %v594 = vunpack.c.h.b16 %v114
    %v595 = vunpack.c.l.b16 %v115
    %v596 = vunpack.c.h.b16 %v115
    %v597 = vunpack.c.l.b16 %v116
    %v598 = vunpack.c.h.b16 %v116
    %v599 = vunpack.c.l.b16 %v117
    %v600 = vunpack.c.h.b16 %v117
    %v601 = vunpack.c.l.b16 %v118
    %v602 = vunpack.c.h.b16 %v118
    %v603 = vunpack.c.l.b16 %v119
    %v604 = vunpack.c.h.b16 %v119
    %v605 = vunpack.c.l.b16 %v120
    %v606 = vunpack.c.h.b16 %v120
    %v607 = vunpack.c.l.b16 %v121
    %v608 = vunpack.c.h.b16 %v121
    %v609 = vunpack.c.l.b16 %v122
    %v610 = vunpack.c.h.b16 %v122
    %v611 = vunpack.c.l.b16 %v123
    %v612 = vunpack.c.h.b16 %v123
    %v613 = vunpack.c.l.b16 %v124
    %v614 = vunpack.c.h.b16 %v124
    %v615 = vunpack.c.l.b16 %v125
    %v616 = vunpack.c.h.b16 %v125
    %v617 = vunpack.c.l.b16 %v126
    %v618 = vunpack.c.h.b16 %v126
    %v619 = vunpack.c.l.b16 %v127
    %v620 = vunpack.c.h.b16 %v127
    %v621 = vunpack.c.l.b16 %v128
    %v622 = vunpack.c.h.b16 %v128
    %v623 = vunpack.c.l.b16 %v129
    %v624 = vunpack.c.h.b16 %v129
    %v625 = vunpack.c.l.b16 %v130
    %v626 = vunpack.c.h.b16 %v130
    %v627 = vunpack.c.l.b16 %v131
    %v628 = vunpack.c.h.b16 %v131
    %v629 = vunpack.c.l.b16 %v132
    %v630 = vunpack.c.h.b16 %v132
    %v631 = vunpack.c.l.b16 %v133
    %v632 = vunpack.c.h.b16 %v133
    %v633 = vunpack.c.l.b16 %v134
    %v634 = vunpack.c.h.b16 %v134
    %v635 = vunpack.c.l.b16 %v135
    %v636 = vunpack.c.h.b16 %v135
    %v637 = vunpack.c.l.b16 %v136
    %v638 = vunpack.c.h.b16 %v136
    %v639 = vunpack.c.l.b16 %v137
    %v640 = vunpack.c.h.b16 %v137
    %v641 = vunpack.c.l.b16 %v138
    %v642 = vunpack.c.h.b16 %v138
    %v643 = vunpack.c.l.b16 %v139
    %v644 = vunpack.c.h.b16 %v139
    %v645 = vunpack.c.l.b16 %v140
    %v646 = vunpack.c.h.b16 %v140
    %v647 = vunpack.c.l.b16 %v141
    %v648 = vunpack.c.h.b16 %v141
    %v649 = vunpack.c.l.b16 %v142
    %v650 = vunpack.c.h.b16 %v142
    %v651 = vunpack.c.l.b16 %v143
    %v652 = vunpack.c.h.b16 %v143
    %v653 = vunpack.c.l.b16 %v144
    %v654 = vunpack.c.h.b16 %v144
    %v655 = vunpack.c.l.b16 %v145
    %v656 = vunpack.c.h.b16 %v145
    %v657 = vunpack.c.l.b16 %v146
    %v658 = vunpack.c.h.b16 %v146
    %v659 = vunpack.c.l.b16 %v147
    %v660 = vunpack.c.h.b16 %v147
    %v661 = vunpack.c.l.b16 %v148
    %v662 = vunpack.c.h.b16 %v148
    %v663 = vunpack.c.l.b16 %v149
    %v664 = vunpack.c.h.b16 %v149
    %v665 = vunpack.c.l.b16 %v150
    %v666 = vunpack.c.h.b16 %v150
    %v667 = vunpack.c.l.b16 %v151
    %v668 = vunpack.c.h.b16 %v151
    %v669 = vunpack.c.l.b16 %v152
    %v670 = vunpack.c.h.b16 %v152
    %v671 = vunpack.c.l.b16 %v153
    %v672 = vunpack.c.h.b16 %v153
    %v673 = vunpack.c.l.b16 %v154
    %v674 = vunpack.c.h.b16 %v154
    %v675 = vunpack.c.l.b16 %v155
    %v676 = vunpack.c.h.b16 %v155
    %v677 = vunpack.c.l.b16 %v156
    %v678 = vunpack.c.h.b16 %v156
    %v679 = vunpack.c.l.b16 %v157
    %v680 = vunpack.c.h.b16 %v157
    %v681 = vunpack.c.l.b16 %v158
    %v682 = vunpack.c.h.b16 %v158
    %v683 = vunpack.c.l.b16 %v159
    %v684 = vunpack.c.h.b16 %v159
    %v685 = vunpack.c.l.b16 %v160
    %v686 = vunpack.c.h.b16 %v160
    %v687 = vunpack.c.l.b16 %v161
    %v688 = vunpack.c.h.b16 %v161
    %v689 = vunpack.c.l.b16 %v162
    %v690 = vunpack.c.h.b16 %v162
    %v691 = vunpack.c.l.b16 %v163
    %v692 = vunpack.c.h.b16 %v163
    %v693 = vunpack.c.l.b16 %v164
    %v694 = vunpack.c.h.b16 %v164
    %v695 = vunpack.c.l.b16 %v165
    %v696 = vunpack.c.h.b16 %v165
    %v697 = vunpack.c.l.b16 %v166
    %v698 = vunpack.c.h.b16 %v166
    %v699 = vunpack.c.l.b16 %v167
    %v700 = vunpack.c.h.b16 %v167
    %v701 = vunpack.c.l.b16 %v168
    %v702 = vunpack.c.h.b16 %v168
    %v703 = vunpack.c.l.b16 %v169
    %v704 = vunpack.c.h.b16 %v169
    %v705 = vunpack.c.l.b16 %v170
    %v706 = vunpack.c.h.b16 %v170
    %v707 = vunpack.c.l.b16 %v171
    %v708 = vunpack.c.h.b16 %v171
    %v709 = vunpack.c.l.b16 %v172
    %v710 = vunpack.c.h.b16 %v172
    %v711 = vunpack.c.l.b16 %v173
    %v712 = vunpack.c.h.b16 %v173
    %v713 = vunpack.c.l.b16 %v174
    %v714 = vunpack.c.h.b16 %v174
    %v715 = vunpack.c.l.b16 %v175
    %v716 = vunpack.c.h.b16 %v175
    %v717 = vunpack.c.l.b16 %v176
    %v718 = vunpack.c.h.b16 %v176
    %v719 = vunpack.c.l.b16 %v177
    %v720 = vunpack.c.h.b16 %v177
    %v721 = vunpack.c.l.b16 %v178
    %v722 = vunpack.c.h.b16 %v178
    %v723 = vunpack.c.l.b16 %v179
    %v724 = vunpack.c.h.b16 %v179
    %v725 = vunpack.c.l.b16 %v180
    %v726 = vunpack.c.h.b16 %v180
    %v727 = vunpack.c.l.b16 %v181
    %v728 = vunpack.c.h.b16 %v181
    %v729 = vunpack.c.l.b16 %v182
    %v730 = vunpack.c.h.b16 %v182
    %v731 = vunpack.c.l.b16 %v183
    %v732 = vunpack.c.h.b16 %v183
    %v733 = vunpack.c.l.b16 %v184
    %v734 = vunpack.c.h.b16 %v184
    %v735 = vunpack.c.l.b16 %v185
    %v736 = vunpack.c.h.b16 %v185
    %v737 = vunpack.c.l.b16 %v186
    %v738 = vunpack.c.h.b16 %v186
    %v739 = vunpack.c.l.b16 %v187
    %v740 = vunpack.c.h.b16 %v187
    %v741 = vunpack.c.l.b16 %v188
    %v742 = vunpack.c.h.b16 %v188
    %v743 = vunpack.c.l.b16 %v189
    %v744 = vunpack.c.h.b16 %v189
    %v745 = vunpack.c.l.b16 %v190
    %v746 = vunpack.c.h.b16 %v190
    %v747 = vunpack.c.l.b16 %v191
    %v748 = vunpack.c.h.b16 %v191
    %v749 = vunpack.c.l.b16 %v192
    %v750 = vunpack.c.h.b16 %v192
    %v751 = vunpack.c.l.b16 %v193
    %v752 = vunpack.c.h.b16 %v193
    %v753 = vunpack.c.l.b16 %v194
    %v754 = vunpack.c.h.b16 %v194
    %v755 = vunpack.c.l.b16 %v195
    %v756 = vunpack.c.h.b16 %v195
    %v757 = vunpack.c.l.b16 %v196
    %v758 = vunpack.c.h.b16 %v196
    %v759 = vunpack.c.l.b16 %v197
    %v760 = vunpack.c.h.b16 %v197
    %v761 = vunpack.c.l.b16 %v198
    %v762 = vunpack.c.h.b16 %v198
    %v763 = vunpack.c.l.b16 %v199
    %v764 = vunpack.c.h.b16 %v199
    %v765 = vunpack.c.l.b16 %v200
    %v766 = vunpack.c.h.b16 %v200
    %v767 = vunpack.c.l.b16 %v201
    %v768 = vunpack.c.h.b16 %v201
    %v769 = vunpack.c.l.b16 %v202
    %v770 = vunpack.c.h.b16 %v202
    %v771 = vunpack.c.l.b16 %v203
    %v772 = vunpack.c.h.b16 %v203
    %v773 = vunpack.c.l.b16 %v204
    %v774 = vunpack.c.h.b16 %v204
    %v775 = vunpack.c.l.b16 %v205
    %v776 = vunpack.c.h.b16 %v205
    %v777 = vunpack.c.l.b16 %v206
    %v778 = vunpack.c.h.b16 %v206
    %v779 = vunpack.c.l.b16 %v207
    %v780 = vunpack.c.h.b16 %v207
    %v781 = vunpack.c.l.b16 %v208
    %v782 = vunpack.c.h.b16 %v208
    %v783 = vunpack.c.l.b16 %v209
    %v784 = vunpack.c.h.b16 %v209
    %v785 = vunpack.c.l.b16 %v210
    %v786 = vunpack.c.h.b16 %v210
    %v787 = vunpack.c.l.b16 %v211
    %v788 = vunpack.c.h.b16 %v211
    %v789 = vunpack.c.l.b16 %v212
    %v790 = vunpack.c.h.b16 %v212
    %v791 = vunpack.c.l.b16 %v213
    %v792 = vunpack.c.h.b16 %v213
    %v793 = vunpack.c.l.b16 %v214
    %v794 = vunpack.c.h.b16 %v214
    %v795 = vunpack.c.l.b16 %v215
    %v796 = vunpack.c.h.b16 %v215
    %v797 = vunpack.c.l.b16 %v216
    %v798 = vunpack.c.h.b16 %v216
    %v799 = vunpack.c.l.b16 %v217
    %v800 = vunpack.c.h.b16 %v217
    %v801 = vunpack.c.l.b16 %v218
    %v802 = vunpack.c.h.b16 %v218
    %v803 = vunpack.c.l.b16 %v219
    %v804 = vunpack.c.h.b16 %v219
    %v805 = vunpack.c.l.b16 %v220
    %v806 = vunpack.c.h.b16 %v220
    %v807 = vunpack.c.l.b16 %v221
    %v808 = vunpack.c.h.b16 %v221
    %v809 = vunpack.c.l.b16 %v222
    %v810 = vunpack.c.h.b16 %v222
    %v811 = vunpack.c.l.b16 %v223
    %v812 = vunpack.c.h.b16 %v223
    %v813 = vunpack.c.l.b16 %v224
    %v814 = vunpack.c.h.b16 %v224
    %v815 = vunpack.c.l.b16 %v225
    %v816 = vunpack.c.h.b16 %v225
    %v817 = vunpack.c.l.b16 %v226
    %v818 = vunpack.c.h.b16 %v226
    %v819 = vunpack.c.l.b16 %v227
    %v820 = vunpack.c.h.b16 %v227
    %v821 = vunpack.c.l.b16 %v228
    %v822 = vunpack.c.h.b16 %v228
    %v823 = vunpack.c.l.b16 %v229
    %v824 = vunpack.c.h.b16 %v229
    %v825 = vunpack.c.l.b16 %v230
    %v826 = vunpack.c.h.b16 %v230
    %v827 = vunpack.c.l.b16 %v231
    %v828 = vunpack.c.h.b16 %v231
    %v829 = vunpack.c.l.b16 %v232
    %v830 = vunpack.c.h.b16 %v232
    %v831 = vunpack.c.l.b16 %v233
    %v832 = vunpack.c.h.b16 %v233
    %v833 = vunpack.c.l.b16 %v234
    %v834 = vunpack.c.h.b16 %v234
    %v835 = vunpack.c.l.b16 %v235
    %v836 = vunpack.c.h.b16 %v235
    %v837 = vunpack.c.l.b16 %v236
    %v838 = vunpack.c.h.b16 %v236
    %v839 = vunpack.c.l.b16 %v237
    %v840 = vunpack.c.h.b16 %v237
    %v841 = vunpack.c.l.b16 %v238
    %v842 = vunpack.c.h.b16 %v238
    %v843 = vunpack.c.l.b16 %v239
    %v844 = vunpack.c.h.b16 %v239
    %v845 = vunpack.c.l.b16 %v240
    %v846 = vunpack.c.h.b16 %v240
    %v847 = vunpack.c.l.b16 %v241
    %v848 = vunpack.c.h.b16 %v241
    %v849 = vunpack.c.l.b16 %v242
    %v850 = vunpack.c.h.b16 %v242
    %v851 = vunpack.c.l.b16 %v243
    %v852 = vunpack.c.h.b16 %v243
    %v853 = vunpack.c.l.b16 %v244
    %v854 = vunpack.c.h.b16 %v244
    %v855 = vunpack.c.l.b16 %v245
    %v856 = vunpack.c.h.b16 %v245
    %v857 = vunpack.c.l.b16 %v246
    %v858 = vunpack.c.h.b16 %v246
    %v859 = vunpack.c.l.b16 %v247
    %v860 = vunpack.c.h.b16 %v247
    %v861 = vunpack.c.l.b16 %v248
    %v862 = vunpack.c.h.b16 %v248
    %v863 = vunpack.c.l.b16 %v249
    %v864 = vunpack.c.h.b16 %v249
    %v865 = vunpack.c.l.b16 %v250
    %v866 = vunpack.c.h.b16 %v250
    %v867 = vunpack.c.l.b16 %v251
    %v868 = vunpack.c.h.b16 %v251
    %v869 = vunpack.c.l.b16 %v252
    %v870 = vunpack.c.h.b16 %v252
    %v871 = vunpack.c.l.b16 %v253
    %v872 = vunpack.c.h.b16 %v253
    %v873 = vunpack.c.l.b16 %v254
    %v874 = vunpack.c.h.b16 %v254
    %v875 = vunpack.c.l.b16 %v255
    %v876 = vunpack.c.h.b16 %v255
    %v877 = vunpack.c.l.b16 %v256
    %v878 = vunpack.c.h.b16 %v256
    %v879 = vunpack.c.l.b16 %v257
    %v880 = vunpack.c.h.b16 %v257
    %v881 = vunpack.c.l.b16 %v258
    %v882 = vunpack.c.h.b16 %v258
    %v883 = vunpack.c.l.b16 %v259
    %v884 = vunpack.c.h.b16 %v259
    %v885 = vunpack.c.l.b16 %v260
    %v886 = vunpack.c.h.b16 %v260
    %v887 = vunpack.c.l.b16 %v261
    %v888 = vunpack.c.h.b16 %v261
    %v889 = vunpack.c.l.b16 %v262
    %v890 = vunpack.c.h.b16 %v262
    %v891 = vunpack.c.l.b16 %v263
    %v892 = vunpack.c.h.b16 %v263
    %v893 = vunpack.c.l.b16 %v264
    %v894 = vunpack.c.h.b16 %v264
    %v895 = vunpack.c.l.b16 %v265
    %v896 = vunpack.c.h.b16 %v265
    %v897 = vunpack.c.l.b16 %v266
    %v898 = vunpack.c.h.b16 %v266
    %v899 = vunpack.c.l.b16 %v267
    %v900 = vunpack.c.h.b16 %v267
    %v901 = vunpack.c.l.b16 %v268
    %v902 = vunpack.c.h.b16 %v268
    %v903 = vunpack.c.l.b16 %v269
    %v904 = vunpack.c.h.b16 %v269
    %v905 = vunpack.c.l.b16 %v270
    %v906 = vunpack.c.h.b16 %v270
    %v907 = vunpack.c.l.b16 %v271
    %v908 = vunpack.c.h.b16 %v271
    %v909 = vunpack.c.l.b16 %v272
    %v910 = vunpack.c.h.b16 %v272
    %v911 = vunpack.c.l.b16 %v273
    %v912 = vunpack.c.h.b16 %v273
    %v913 = vunpack.c.l.b16 %v274
    %v914 = vunpack.c.h.b16 %v274
    %v915 = vunpack.c.l.b16 %v275
    %v916 = vunpack.c.h.b16 %v275
    %v917 = vunpack.c.l.b16 %v276
    %v918 = vunpack.c.h.b16 %v276
    %v919 = vunpack.c.l.b16 %v277
    %v920 = vunpack.c.h.b16 %v277
    %v921 = vunpack.c.l.b16 %v278
    %v922 = vunpack.c.h.b16 %v278
    %v923 = vunpack.c.l.b16 %v279
    %v924 = vunpack.c.h.b16 %v279
    %v925 = vunpack.c.l.b16 %v280
    %v926 = vunpack.c.h.b16 %v280
    %v927 = vunpack.c.l.b16 %v281
    %v928 = vunpack.c.h.b16 %v281
    %v929 = vunpack.c.l.b16 %v282
    %v930 = vunpack.c.h.b16 %v282
    %v931 = vunpack.c.l.b16 %v283
    %v932 = vunpack.c.h.b16 %v283
    %v933 = vunpack.c.l.b16 %v284
    %v934 = vunpack.c.h.b16 %v284
    %v935 = vunpack.c.l.b16 %v285
    %v936 = vunpack.c.h.b16 %v285
    %v937 = vunpack.c.l.b16 %v286
    %v938 = vunpack.c.h.b16 %v286
    %v939 = vunpack.c.l.b16 %v287
    %v940 = vunpack.c.h.b16 %v287
    %v941 = vunpack.c.l.b16 %v288
    %v942 = vunpack.c.h.b16 %v288
    %v943 = vunpack.c.l.b16 %v289
    %v944 = vunpack.c.h.b16 %v289
    %v945 = vunpack.c.l.b16 %v290
    %v946 = vunpack.c.h.b16 %v290
    %v947 = vunpack.c.l.b16 %v291
    %v948 = vunpack.c.h.b16 %v291
    %v949 = vunpack.c.l.b16 %v292
    %v950 = vunpack.c.h.b16 %v292
    %v951 = vunpack.c.l.b16 %v293
    %v952 = vunpack.c.h.b16 %v293
    %v953 = vunpack.c.l.b16 %v294
    %v954 = vunpack.c.h.b16 %v294
    %v955 = vunpack.c.l.b16 %v295
    %v956 = vunpack.c.h.b16 %v295
    %v957 = vunpack.c.l.b16 %v296
    %v958 = vunpack.c.h.b16 %v296
    %v959 = vunpack.c.l.b16 %v297
    %v960 = vunpack.c.h.b16 %v297
    %v961 = vunpack.c.l.b16 %v298
    %v962 = vunpack.c.h.b16 %v298
    %v963 = vunpack.c.l.b16 %v299
    %v964 = vunpack.c.h.b16 %v299
    %v965 = vunpack.c.l.b16 %v300
    %v966 = vunpack.c.h.b16 %v300
    %v967 = vunpack.c.l.b16 %v301
    %v968 = vunpack.c.h.b16 %v301
    %v969 = vunpack.c.l.b16 %v302
    %v970 = vunpack.c.h.b16 %v302
    %v971 = vunpack.c.l.b16 %v303
    %v972 = vunpack.c.h.b16 %v303
    %v973 = vunpack.c.l.b16 %v304
    %v974 = vunpack.c.h.b16 %v304
    %v975 = vunpack.c.l.b16 %v305
    %v976 = vunpack.c.h.b16 %v305
    %v977 = vunpack.c.l.b16 %v306
    %v978 = vunpack.c.h.b16 %v306
    %v979 = vunpack.c.l.b16 %v307
    %v980 = vunpack.c.h.b16 %v307
    %v981 = vunpack.c.l.b16 %v308
    %v982 = vunpack.c.h.b16 %v308
    %v983 = vunpack.c.l.b16 %v309
    %v984 = vunpack.c.h.b16 %v309
    %v985 = vunpack.c.l.b16 %v310
    %v986 = vunpack.c.h.b16 %v310
    %v987 = vunpack.c.l.b16 %v311
    %v988 = vunpack.c.h.b16 %v311
    %v989 = vunpack.c.l.b16 %v312
    %v990 = vunpack.c.h.b16 %v312
    %v991 = vunpack.c.l.b16 %v313
    %v992 = vunpack.c.h.b16 %v313
    %v993 = vunpack.c.l.b16 %v314
    %v994 = vunpack.c.h.b16 %v314
    %v995 = vunpack.c.l.b16 %v315
    %v996 = vunpack.c.h.b16 %v315
    %v997 = vunpack.c.l.b16 %v316
    %v998 = vunpack.c.h.b16 %v316
    %v999 = vunpack.c.l.b16 %v317
    %v1000 = vunpack.c.h.b16 %v317
    %v1001 = vunpack.c.l.b16 %v318
    %v1002 = vunpack.c.h.b16 %v318
    %v1003 = vunpack.c.l.b16 %v319
    %v1004 = vunpack.c.h.b16 %v319
    %v1005 = vunpack.c.l.b16 %v320
    %v1006 = vunpack.c.h.b16 %v320
    %v1007 = vunpack.c.l.b16 %v321
    %v1008 = vunpack.c.h.b16 %v321
    %v1009 = vunpack.c.l.b16 %v322
    %v1010 = vunpack.c.h.b16 %v322
    %v1011 = vunpack.c.l.b16 %v323
    %v1012 = vunpack.c.h.b16 %v323
    %v1013 = vunpack.c.l.b16 %v324
    %v1014 = vunpack.c.h.b16 %v324
    %v1015 = vunpack.c.l.b16 %v325
    %v1016 = vunpack.c.h.b16 %v325
    %v1017 = vunpack.c.l.b16 %v326
    %v1018 = vunpack.c.h.b16 %v326
    %v1019 = vunpack.c.l.b16 %v327
    %v1020 = vunpack.c.h.b16 %v327
    %v1021 = vunpack.c.l.b16 %v328
    %v1022 = vunpack.c.h.b16 %v328
    %v1023 = vunpack.c.l.b16 %v329
    %v1024 = vunpack.c.h.b16 %v329
    %v1025 = vunpack.c.l.b16 %v330
    %v1026 = vunpack.c.h.b16 %v330
    %v1027 = vunpack.c.l.b16 %v331
    %v1028 = vunpack.c.h.b16 %v331
    %v1029 = vunpack.c.l.b16 %v332
    %v1030 = vunpack.c.h.b16 %v332
    %v1031 = vunpack.c.l.b16 %v333
    %v1032 = vunpack.c.h.b16 %v333
    %v1033 = vunpack.c.l.b16 %v334
    %v1034 = vunpack.c.h.b16 %v334
    %v1035 = vunpack.c.l.b16 %v335
    %v1036 = vunpack.c.h.b16 %v335
    %v1037 = vpack.c.b16 %v593, %v589
    %v1038 = vpack.c.b16 %v594, %v590
    %v1039 = vpack.c.b16 %v595, %v591
    %v1040 = vpack.c.b16 %v596, %v592
    %v1041 = vpack.c.b16 %v601, %v597
    %v1042 = vpack.c.b16 %v602, %v598
    %v1043 = vpack.c.b16 %v603, %v599
    %v1044 = vpack.c.b16 %v604, %v600
    %v1045 = vpack.c.b16 %v609, %v605
    %v1046 = vpack.c.b16 %v610, %v606
    %v1047 = vpack.c.b16 %v611, %v607
    %v1048 = vpack.c.b16 %v612, %v608
    %v1049 = vpack.c.b16 %v617, %v613
    %v1050 = vpack.c.b16 %v618, %v614
    %v1051 = vpack.c.b16 %v619, %v615
    %v1052 = vpack.c.b16 %v620, %v616
    %v1053 = vpack.c.b16 %v625, %v621
    %v1054 = vpack.c.b16 %v626, %v622
    %v1055 = vpack.c.b16 %v627, %v623
    %v1056 = vpack.c.b16 %v628, %v624
    %v1057 = vpack.c.b16 %v633, %v629
    %v1058 = vpack.c.b16 %v634, %v630
    %v1059 = vpack.c.b16 %v635, %v631
    %v1060 = vpack.c.b16 %v636, %v632
    %v1061 = vpack.c.b16 %v641, %v637
    %v1062 = vpack.c.b16 %v642, %v638
    %v1063 = vpack.c.b16 %v643, %v639
    %v1064 = vpack.c.b16 %v644, %v640
    %v1065 = vpack.c.b16 %v649, %v645
    %v1066 = vpack.c.b16 %v650, %v646
    %v1067 = vpack.c.b16 %v651, %v647
    %v1068 = vpack.c.b16 %v652, %v648
    %v1069 = vpack.c.b16 %v657, %v653
    %v1070 = vpack.c.b16 %v658, %v654
    %v1071 = vpack.c.b16 %v659, %v655
    %v1072 = vpack.c.b16 %v660, %v656
    %v1073 = vpack.c.b16 %v665, %v661
    %v1074 = vpack.c.b16 %v666, %v662
    %v1075 = vpack.c.b16 %v667, %v663
    %v1076 = vpack.c.b16 %v668, %v664
    %v1077 = vpack.c.b16 %v673, %v669
    %v1078 = vpack.c.b16 %v674, %v670
    %v1079 = vpack.c.b16 %v675, %v671
    %v1080 = vpack.c.b16 %v676, %v672
    %v1081 = vpack.c.b16 %v681, %v677
    %v1082 = vpack.c.b16 %v682, %v678
    %v1083 = vpack.c.b16 %v683, %v679
    %v1084 = vpack.c.b16 %v684, %v680
    %v1085 = vpack.c.b16 %v689, %v685
    %v1086 = vpack.c.b16 %v690, %v686
    %v1087 = vpack.c.b16 %v691, %v687
    %v1088 = vpack.c.b16 %v692, %v688
    %v1089 = vpack.c.b16 %v697, %v693
    %v1090 = vpack.c.b16 %v698, %v694
    %v1091 = vpack.c.b16 %v699, %v695
    %v1092 = vpack.c.b16 %v700, %v696
    %v1093 = vpack.c.b16 %v705, %v701
    %v1094 = vpack.c.b16 %v706, %v702
    %v1095 = vpack.c.b16 %v707, %v703
    %v1096 = vpack.c.b16 %v708, %v704
    %v1097 = vpack.c.b16 %v713, %v709
    %v1098 = vpack.c.b16 %v714, %v710
    %v1099 = vpack.c.b16 %v715, %v711
    %v1100 = vpack.c.b16 %v716, %v712
    %v1101 = vpack.c.b16 %v721, %v717
    %v1102 = vpack.c.b16 %v722, %v718
    %v1103 = vpack.c.b16 %v723, %v719
    %v1104 = vpack.c.b16 %v724, %v720
    %v1105 = vpack.c.b16 %v729, %v725
    %v1106 = vpack.c.b16 %v730, %v726
    %v1107 = vpack.c.b16 %v731, %v727
    %v1108 = vpack.c.b16 %v732, %v728
    %v1109 = vpack.c.b16 %v737, %v733
    %v1110 = vpack.c.b16 %v738, %v734
    %v1111 = vpack.c.b16 %v739, %v735
    %v1112 = vpack.c.b16 %v740, %v736
    %v1113 = vpack.c.b16 %v745, %v741
    %v1114 = vpack.c.b16 %v746, %v742
    %v1115 = vpack.c.b16 %v747, %v743
    %v1116 = vpack.c.b16 %v748, %v744
    %v1117 = vpack.c.b16 %v753, %v749
    %v1118 = vpack.c.b16 %v754, %v750
    %v1119 = vpack.c.b16 %v755, %v751
    %v1120 = vpack.c.b16 %v756, %v752
    %v1121 = vpack.c.b16 %v761, %v757
    %v1122 = vpack.c.b16 %v762, %v758
    %v1123 = vpack.c.b16 %v763, %v759
    %v1124 = vpack.c.b16 %v764, %v760
    %v1125 = vpack.c.b16 %v769, %v765
    %v1126 = vpack.c.b16 %v770, %v766
    %v1127 = vpack.c.b16 %v771, %v767
    %v1128 = vpack.c.b16 %v772, %v768
    %v1129 = vpack.c.b16 %v777, %v773
    %v1130 = vpack.c.b16 %v778, %v774
    %v1131 = vpack.c.b16 %v779, %v775
    %v1132 = vpack.c.b16 %v780, %v776
    %v1133 = vpack.c.b16 %v785, %v781
    %v1134 = vpack.c.b16 %v786, %v782
    %v1135 = vpack.c.b16 %v787, %v783
    %v1136 = vpack.c.b16 %v788, %v784
    %v1137 = vpack.c.b16 %v793, %v789
    %v1138 = vpack.c.b16 %v794, %v790
    %v1139 = vpack.c.b16 %v795, %v791
    %v1140 = vpack.c.b16 %v796, %v792
    %v1141 = vpack.c.b16 %v801, %v797
    %v1142 = vpack.c.b16 %v802, %v798
    %v1143 = vpack.c.b16 %v803, %v799
    %v1144 = vpack.c.b16 %v804, %v800
    %v1145 = vpack.c.b16 %v809, %v805
    %v1146 = vpack.c.b16 %v810, %v806
    %v1147 = vpack.c.b16 %v811, %v807
    %v1148 = vpack.c.b16 %v812, %v808
    %v1149 = vpack.c.b16 %v817, %v813
    %v1150 = vpack.c.b16 %v818, %v814
    %v1151 = vpack.c.b16 %v819, %v815
    %v1152 = vpack.c.b16 %v820, %v816
    %v1153 = vpack.c.b16 %v825, %v821
    %v1154 = vpack.c.b16 %v826, %v822
    %v1155 = vpack.c.b16 %v827, %v823
    %v1156 = vpack.c.b16 %v828, %v824
    %v1157 = vpack.c.b16 %v833, %v829
    %v1158 = vpack.c.b16 %v834, %v830
    %v1159 = vpack.c.b16 %v835, %v831
    %v1160 = vpack.c.b16 %v836, %v832
    %v1161 = vpack.c.b16 %v841, %v837
    %v1162 = vpack.c.b16 %v842, %v838
    %v1163 = vpack.c.b16 %v843, %v839
    %v1164 = vpack.c.b16 %v844, %v840
    %v1165 = vpack.c.b16 %v849, %v845
    %v1166 = vpack.c.b16 %v850, %v846
    %v1167 = vpack.c.b16 %v851, %v847
    %v1168 = vpack.c.b16 %v852, %v848
    %v1169 = vpack.c.b16 %v857, %v853
    %v1170 = vpack.c.b16 %v858, %v854
    %v1171 = vpack.c.b16 %v859, %v855
    %v1172 = vpack.c.b16 %v860, %v856
    %v1173 = vpack.c.b16 %v865, %v861
    %v1174 = vpack.c.b16 %v866, %v862
    %v1175 = vpack.c.b16 %v867, %v863
    %v1176 = vpack.c.b16 %v868, %v864
    %v1177 = vpack.c.b16 %v873, %v869
    %v1178 = vpack.c.b16 %v874, %v870
    %v1179 = vpack.c.b16 %v875, %v871
    %v1180 = vpack.c.b16 %v876, %v872
    %v1181 = vpack.c.b16 %v881, %v877
    %v1182 = vpack.c.b16 %v882, %v878
    %v1183 = vpack.c.b16 %v883, %v879
    %v1184 = vpack.c.b16 %v884, %v880
    %v1185 = vpack.c.b16 %v889, %v885
    %v1186 = vpack.c.b16 %v890, %v886
    %v1187 = vpack.c.b16 %v891, %v887
    %v1188 = vpack.c.b16 %v892, %v888
    %v1189 = vpack.c.b16 %v897, %v893
    %v1190 = vpack.c.b16 %v898, %v894
    %v1191 = vpack.c.b16 %v899, %v895
    %v1192 = vpack.c.b16 %v900, %v896
    %v1193 = vpack.c.b16 %v905, %v901
    %v1194 = vpack.c.b16 %v906, %v902
    %v1195 = vpack.c.b16 %v907, %v903
    %v1196 = vpack.c.b16 %v908, %v904
    %v1197 = vpack.c.b16 %v913, %v909
    %v1198 = vpack.c.b16 %v914, %v910
    %v1199 = vpack.c.b16 %v915, %v911
    %v1200 = vpack.c.b16 %v916, %v912
    %v1201 = vpack.c.b16 %v921, %v917
    %v1202 = vpack.c.b16 %v922, %v918
    %v1203 = vpack.c.b16 %v923, %v919
    %v1204 = vpack.c.b16 %v924, %v920
    %v1205 = vpack.c.b16 %v929, %v925
    %v1206 = vpack.c.b16 %v930, %v926
    %v1207 = vpack.c.b16 %v931, %v927
    %v1208 = vpack.c.b16 %v932, %v928
    %v1209 = vpack.c.b16 %v937, %v933
    %v1210 = vpack.c.b16 %v938, %v934
    %v1211 = vpack.c.b16 %v939, %v935
    %v1212 = vpack.c.b16 %v940, %v936
    %v1213 = vpack.c.b16 %v945, %v941
    %v1214 = vpack.c.b16 %v946, %v942
    %v1215 = vpack.c.b16 %v947, %v943
    %v1216 = vpack.c.b16 %v948, %v944
    %v1217 = vpack.c.b16 %v953, %v949
    %v1218 = vpack.c.b16 %v954, %v950
    %v1219 = vpack.c.b16 %v955, %v951
    %v1220 = vpack.c.b16 %v956, %v952
    %v1221 = vpack.c.b16 %v961, %v957
    %v1222 = vpack.c.b16 %v962, %v958
    %v1223 = vpack.c.b16 %v963, %v959
    %v1224 = vpack.c.b16 %v964, %v960
    %v1225 = vpack.c.b16 %v969, %v965
    %v1226 = vpack.c.b16 %v970, %v966
    %v1227 = vpack.c.b16 %v971, %v967
    %v1228 = vpack.c.b16 %v972, %v968
    %v1229 = vpack.c.b16 %v977, %v973
    %v1230 = vpack.c.b16 %v978, %v974
    %v1231 = vpack.c.b16 %v979, %v975
    %v1232 = vpack.c.b16 %v980, %v976
    %v1233 = vpack.c.b16 %v985, %v981
    %v1234 = vpack.c.b16 %v986, %v982
    %v1235 = vpack.c.b16 %v987, %v983
    %v1236 = vpack.c.b16 %v988, %v984
    %v1237 = vpack.c.b16 %v993, %v989
    %v1238 = vpack.c.b16 %v994, %v990
    %v1239 = vpack.c.b16 %v995, %v991
    %v1240 = vpack.c.b16 %v996, %v992
    %v1241 = vpack.c.b16 %v1001, %v997
    %v1242 = vpack.c.b16 %v1002, %v998
    %v1243 = vpack.c.b16 %v1003, %v999
    %v1244 = vpack.c.b16 %v1004, %v1000
    %v1245 = vpack.c.b16 %v1009, %v1005
    %v1246 = vpack.c.b16 %v1010, %v1006
    %v1247 = vpack.c.b16 %v1011, %v1007
    %v1248 = vpack.c.b16 %v1012, %v1008
    %v1249 = vpack.c.b16 %v1017, %v1013
    %v1250 = vpack.c.b16 %v1018, %v1014
    %v1251 = vpack.c.b16 %v1019, %v1015
    %v1252 = vpack.c.b16 %v1020, %v1016
    %v1253 = vpack.c.b16 %v1025, %v1021
    %v1254 = vpack.c.b16 %v1026, %v1022
    %v1255 = vpack.c.b16 %v1027, %v1023
    %v1256 = vpack.c.b16 %v1028, %v1024
    %v1257 = vpack.c.b16 %v1033, %v1029
    %v1258 = vpack.c.b16 %v1034, %v1030
    %v1259 = vpack.c.b16 %v1035, %v1031
    %v1260 = vpack.c.b16 %v1036, %v1032
    %1485 = vmatprep.subr.bf16.mxu0 %v1038
    %1486 = vmatpush1.bf16.msra.mxu0 %v1037
    %1487 = vmatprep.subr.bf16.mxu0 %v1042
    %1488 = vmatpush1.bf16.msra.mxu0 %v1041
    %1489 = vmatprep.subr.bf16.mxu0 %v1046
    %1490 = vmatpush1.bf16.msra.mxu0 %v1045
    %1491 = vmatprep.subr.bf16.mxu0 %v1050
    %1492 = vmatpush1.bf16.msra.mxu0 %v1049
    %1493 = vmatprep.subr.bf16.mxu0 %v1054
    %1494 = vmatpush1.bf16.msra.mxu0 %v1053
    %1495 = vmatprep.subr.bf16.mxu0 %v1058
    %1496 = vmatpush1.bf16.msra.mxu0 %v1057
    %1497 = vmatprep.subr.bf16.mxu0 %v1062
    %1498 = vmatpush1.bf16.msra.mxu0 %v1061
    %1499 = vmatprep.subr.bf16.mxu0 %v1066
    %1500 = vmatpush1.bf16.msra.mxu0 %v1065
    %1501 = vmatprep.subr.bf16.mxu0 %v1070
    %1502 = vmatpush1.bf16.msra.mxu0 %v1069
    %1503 = vmatprep.subr.bf16.mxu0 %v1074
    %1504 = vmatpush1.bf16.msra.mxu0 %v1073
    %1505 = vmatprep.subr.bf16.mxu0 %v1078
    %1506 = vmatpush1.bf16.msra.mxu0 %v1077
    %1507 = vmatprep.subr.bf16.mxu0 %v1082
    %1508 = vmatpush1.bf16.msra.mxu0 %v1081
    %1509 = vmatprep.subr.bf16.mxu0 %v1086
    %1510 = vmatpush1.bf16.msra.mxu0 %v1085
    %1511 = vmatprep.subr.bf16.mxu0 %v1090
    %1512 = vmatpush1.bf16.msra.mxu0 %v1089
    %1513 = vmatprep.subr.bf16.mxu0 %v1094
    %1514 = vmatpush1.bf16.msra.mxu0 %v1093
    %1515 = vmatprep.subr.bf16.mxu0 %v1098
    %1516 = vmatpush1.bf16.msra.mxu0 %v1097
    %1517 = vmatprep.mubr.bf16.mxu0 %v338
    %1518 = vmatmul.mubr.bf16.gmra.mrb[0].mxu0 %v337
    %v1519 = vpop.f32.mrb[0].mxu0
    %v1520 = vadd.f32 %v348, %v1519
    %v1521 = vpop.f32.mrb[0].mxu0
    %v1522 = vadd.f32 %v352, %v1521
    %v1523 = vpop.f32.mrb[0].mxu0
    %v1524 = vpop.f32.mrb[0].mxu0
    %1525 = vdwg.mxu0
    %1526 = vmatprep.subr.bf16.mxu0 %v1102
    %1527 = vmatpush1.bf16.msra.mxu0 %v1101
    %1528 = vmatprep.subr.bf16.mxu0 %v1106
    %1529 = vmatpush1.bf16.msra.mxu0 %v1105
    %1530 = vmatprep.subr.bf16.mxu0 %v1110
    %1531 = vmatpush1.bf16.msra.mxu0 %v1109
    %1532 = vmatprep.subr.bf16.mxu0 %v1114
    %1533 = vmatpush1.bf16.msra.mxu0 %v1113
    %1534 = vmatprep.subr.bf16.mxu0 %v1118
    %1535 = vmatpush1.bf16.msra.mxu0 %v1117
    %1536 = vmatprep.subr.bf16.mxu0 %v1122
    %1537 = vmatpush1.bf16.msra.mxu0 %v1121
    %1538 = vmatprep.subr.bf16.mxu0 %v1126
    %1539 = vmatpush1.bf16.msra.mxu0 %v1125
    %1540 = vmatprep.subr.bf16.mxu0 %v1130
    %1541 = vmatpush1.bf16.msra.mxu0 %v1129
    %1542 = vmatprep.subr.bf16.mxu0 %v1134
    %1543 = vmatpush1.bf16.msra.mxu0 %v1133
    %1544 = vmatprep.subr.bf16.mxu0 %v1138
    %1545 = vmatpush1.bf16.msra.mxu0 %v1137
    %1546 = vmatprep.subr.bf16.mxu0 %v1142
    %1547 = vmatpush1.bf16.msra.mxu0 %v1141
    %1548 = vmatprep.subr.bf16.mxu0 %v1146
    %1549 = vmatpush1.bf16.msra.mxu0 %v1145
    %1550 = vmatprep.subr.bf16.mxu0 %v1150
    %1551 = vmatpush1.bf16.msra.mxu0 %v1149
    %1552 = vmatprep.subr.bf16.mxu0 %v1154
    %1553 = vmatpush1.bf16.msra.mxu0 %v1153
    %1554 = vmatprep.subr.bf16.mxu0 %v1158
    %1555 = vmatpush1.bf16.msra.mxu0 %v1157
    %1556 = vmatprep.subr.bf16.mxu0 %v1162
    %1557 = vmatpush1.bf16.msra.mxu0 %v1161
    %1558 = vmatprep.mubr.bf16.mxu0 %v340
    %1559 = vmatmul.mubr.bf16.gmra.mrb[0].mxu0 %v339
    %v1560 = vpop.f32.mrb[0].mxu0
    %v1561 = vadd.f32 %v1520, %v1560
    %v1562 = vpop.f32.mrb[0].mxu0
    %v1563 = vadd.f32 %v1522, %v1562
    %v1564 = vpop.f32.mrb[0].mxu0
    %v1565 = vpop.f32.mrb[0].mxu0
    %1566 = vdwg.mxu0
    %1567 = vmatprep.subr.bf16.mxu0 %v1166
    %1568 = vmatpush1.bf16.msra.mxu0 %v1165
    %1569 = vmatprep.subr.bf16.mxu0 %v1170
    %1570 = vmatpush1.bf16.msra.mxu0 %v1169
    %1571 = vmatprep.subr.bf16.mxu0 %v1174
    %1572 = vmatpush1.bf16.msra.mxu0 %v1173
    %1573 = vmatprep.subr.bf16.mxu0 %v1178
    %1574 = vmatpush1.bf16.msra.mxu0 %v1177
    %1575 = vmatprep.subr.bf16.mxu0 %v1182
    %1576 = vmatpush1.bf16.msra.mxu0 %v1181
    %1577 = vmatprep.subr.bf16.mxu0 %v1186
    %1578 = vmatpush1.bf16.msra.mxu0 %v1185
    %1579 = vmatprep.subr.bf16.mxu0 %v1190
    %1580 = vmatpush1.bf16.msra.mxu0 %v1189
    %1581 = vmatprep.subr.bf16.mxu0 %v1194
    %1582 = vmatpush1.bf16.msra.mxu0 %v1193
    %1583 = vmatprep.subr.bf16.mxu0 %v1198
    %1584 = vmatpush1.bf16.msra.mxu0 %v1197
    %1585 = vmatprep.subr.bf16.mxu0 %v1202
    %1586 = vmatpush1.bf16.msra.mxu0 %v1201
    %1587 = vmatprep.subr.bf16.mxu0 %v1206
    %1588 = vmatpush1.bf16.msra.mxu0 %v1205
    %1589 = vmatprep.subr.bf16.mxu0 %v1210
    %1590 = vmatpush1.bf16.msra.mxu0 %v1209
    %1591 = vmatprep.subr.bf16.mxu0 %v1214
    %1592 = vmatpush1.bf16.msra.mxu0 %v1213
    %1593 = vmatprep.subr.bf16.mxu0 %v1218
    %1594 = vmatpush1.bf16.msra.mxu0 %v1217
    %1595 = vmatprep.subr.bf16.mxu0 %v1222
    %1596 = vmatpush1.bf16.msra.mxu0 %v1221
    %1597 = vmatprep.subr.bf16.mxu0 %v1226
    %1598 = vmatpush1.bf16.msra.mxu0 %v1225
    %1599 = vmatprep.mubr.bf16.mxu0 %v342
    %1600 = vmatmul.mubr.bf16.gmra.mrb[0].mxu0 %v341
    %v1601 = vpop.f32.mrb[0].mxu0
    %v1602 = vadd.f32 %v1561, %v1601
    %v1603 = vpop.f32.mrb[0].mxu0
    %v1604 = vadd.f32 %v1563, %v1603
    %v1605 = vpop.f32.mrb[0].mxu0
    %v1606 = vpop.f32.mrb[0].mxu0
    %1607 = vdwg.mxu0
    %1608 = vmatprep.subr.bf16.mxu0 %v1230
    %1609 = vmatpush1.bf16.msra.mxu0 %v1229
    %1610 = vmatprep.subr.bf16.mxu0 %v1234
    %1611 = vmatpush1.bf16.msra.mxu0 %v1233
    %1612 = vmatprep.subr.bf16.mxu0 %v1238
    %1613 = vmatpush1.bf16.msra.mxu0 %v1237
    %1614 = vmatprep.subr.bf16.mxu0 %v1242
    %1615 = vmatpush1.bf16.msra.mxu0 %v1241
    %1616 = vmatprep.subr.bf16.mxu0 %v1246
    %1617 = vmatpush1.bf16.msra.mxu0 %v1245
    %1618 = vmatprep.subr.bf16.mxu0 %v1250
    %1619 = vmatpush1.bf16.msra.mxu0 %v1249
    %1620 = vmatprep.subr.bf16.mxu0 %v1254
    %1621 = vmatpush1.bf16.msra.mxu0 %v1253
    %1622 = vmatprep.subr.bf16.mxu0 %v1258
    %1623 = vmatpush1.bf16.msra.mxu0 %v1257
    %1624 = vmatprep.subr.bf16.mxu0 0
    %1625 = vmatpush1.bf16.msra.mxu0 0
    %1626 = vmatprep.subr.bf16.mxu0 0
    %1627 = vmatpush1.bf16.msra.mxu0 0
    %1628 = vmatprep.subr.bf16.mxu0 0
    %1629 = vmatpush1.bf16.msra.mxu0 0
    %1630 = vmatprep.subr.bf16.mxu0 0
    %1631 = vmatpush1.bf16.msra.mxu0 0
    %1632 = vmatprep.subr.bf16.mxu0 0
    %1633 = vmatpush1.bf16.msra.mxu0 0
    %1634 = vmatprep.subr.bf16.mxu0 0
    %1635 = vmatpush1.bf16.msra.mxu0 0
    %1636 = vmatprep.subr.bf16.mxu0 0
    %1637 = vmatpush1.bf16.msra.mxu0 0
    %1638 = vmatprep.subr.bf16.mxu0 0
    %1639 = vmatpush1.bf16.msra.mxu0 0
    %1640 = vmatprep.mubr.bf16.mxu0 0
    %1641 = vmatmul.mubr.bf16.gmra.mrb[0].mxu0 %v343
    %v1642 = vpop.f32.mrb[0].mxu0
    %v1643 = vadd.f32 %v1602, %v1642
    %v1644 = vpop.f32.mrb[0].mxu0
    %v1645 = vadd.f32 %v1604, %v1644
    %v1646 = vpop.f32.mrb[0].mxu0
    %v1647 = vpop.f32.mrb[0].mxu0
    %1648 = vdwg.mxu0
    %1649 = vmatprep.subr.bf16.mxu0 %v1040
    %1650 = vmatpush1.bf16.msra.mxu0 %v1039
    %1651 = vmatprep.subr.bf16.mxu0 %v1044
    %1652 = vmatpush1.bf16.msra.mxu0 %v1043
    %1653 = vmatprep.subr.bf16.mxu0 %v1048
    %1654 = vmatpush1.bf16.msra.mxu0 %v1047
    %1655 = vmatprep.subr.bf16.mxu0 %v1052
    %1656 = vmatpush1.bf16.msra.mxu0 %v1051
    %1657 = vmatprep.subr.bf16.mxu0 %v1056
    %1658 = vmatpush1.bf16.msra.mxu0 %v1055
    %1659 = vmatprep.subr.bf16.mxu0 %v1060
    %1660 = vmatpush1.bf16.msra.mxu0 %v1059
    %1661 = vmatprep.subr.bf16.mxu0 %v1064
    %1662 = vmatpush1.bf16.msra.mxu0 %v1063
    %1663 = vmatprep.subr.bf16.mxu0 %v1068
    %1664 = vmatpush1.bf16.msra.mxu0 %v1067
    %1665 = vmatprep.subr.bf16.mxu0 %v1072
    %1666 = vmatpush1.bf16.msra.mxu0 %v1071
    %1667 = vmatprep.subr.bf16.mxu0 %v1076
    %1668 = vmatpush1.bf16.msra.mxu0 %v1075
    %1669 = vmatprep.subr.bf16.mxu0 %v1080
    %1670 = vmatpush1.bf16.msra.mxu0 %v1079
    %1671 = vmatprep.subr.bf16.mxu0 %v1084
    %1672 = vmatpush1.bf16.msra.mxu0 %v1083
    %1673 = vmatprep.subr.bf16.mxu0 %v1088
    %1674 = vmatpush1.bf16.msra.mxu0 %v1087
    %1675 = vmatprep.subr.bf16.mxu0 %v1092
    %1676 = vmatpush1.bf16.msra.mxu0 %v1091
    %1677 = vmatprep.subr.bf16.mxu0 %v1096
    %1678 = vmatpush1.bf16.msra.mxu0 %v1095
    %1679 = vmatprep.subr.bf16.mxu0 %v1100
    %1680 = vmatpush1.bf16.msra.mxu0 %v1099
    %1681 = vmatprep.mubr.bf16.mxu0 %v338
    %1682 = vmatmul.mubr.bf16.gmra.mrb[0].mxu0 %v337
    %v1683 = vpop.f32.mrb[0].mxu0
    %v1684 = vadd.f32 %v356, %v1683
    %v1685 = vpop.f32.mrb[0].mxu0
    %v1686 = vadd.f32 %v360, %v1685
    %v1687 = vpop.f32.mrb[0].mxu0
    %v1688 = vpop.f32.mrb[0].mxu0
    %1689 = vdwg.mxu0
    %1690 = vmatprep.subr.bf16.mxu0 %v1104
    %1691 = vmatpush1.bf16.msra.mxu0 %v1103
    %1692 = vmatprep.subr.bf16.mxu0 %v1108
    %1693 = vmatpush1.bf16.msra.mxu0 %v1107
    %1694 = vmatprep.subr.bf16.mxu0 %v1112
    %1695 = vmatpush1.bf16.msra.mxu0 %v1111
    %1696 = vmatprep.subr.bf16.mxu0 %v1116
    %1697 = vmatpush1.bf16.msra.mxu0 %v1115
    %1698 = vmatprep.subr.bf16.mxu0 %v1120
    %1699 = vmatpush1.bf16.msra.mxu0 %v1119
    %1700 = vmatprep.subr.bf16.mxu0 %v1124
    %1701 = vmatpush1.bf16.msra.mxu0 %v1123
    %1702 = vmatprep.subr.bf16.mxu0 %v1128
    %1703 = vmatpush1.bf16.msra.mxu0 %v1127
    %1704 = vmatprep.subr.bf16.mxu0 %v1132
    %1705 = vmatpush1.bf16.msra.mxu0 %v1131
    %1706 = vmatprep.subr.bf16.mxu0 %v1136
    %1707 = vmatpush1.bf16.msra.mxu0 %v1135
    %1708 = vmatprep.subr.bf16.mxu0 %v1140
    %1709 = vmatpush1.bf16.msra.mxu0 %v1139
    %1710 = vmatprep.subr.bf16.mxu0 %v1144
    %1711 = vmatpush1.bf16.msra.mxu0 %v1143
    %1712 = vmatprep.subr.bf16.mxu0 %v1148
    %1713 = vmatpush1.bf16.msra.mxu0 %v1147
    %1714 = vmatprep.subr.bf16.mxu0 %v1152
    %1715 = vmatpush1.bf16.msra.mxu0 %v1151
    %1716 = vmatprep.subr.bf16.mxu0 %v1156
    %1717 = vmatpush1.bf16.msra.mxu0 %v1155
    %1718 = vmatprep.subr.bf16.mxu0 %v1160
    %1719 = vmatpush1.bf16.msra.mxu0 %v1159
    %1720 = vmatprep.subr.bf16.mxu0 %v1164
    %1721 = vmatpush1.bf16.msra.mxu0 %v1163
    %1722 = vmatprep.mubr.bf16.mxu0 %v340
    %1723 = vmatmul.mubr.bf16.gmra.mrb[0].mxu0 %v339
    %v1724 = vpop.f32.mrb[0].mxu0
    %v1725 = vadd.f32 %v1684, %v1724
    %v1726 = vpop.f32.mrb[0].mxu0
    %v1727 = vadd.f32 %v1686, %v1726
    %v1728 = vpop.f32.mrb[0].mxu0
    %v1729 = vpop.f32.mrb[0].mxu0
    %1730 = vdwg.mxu0
    %1731 = vmatprep.subr.bf16.mxu0 %v1168
    %1732 = vmatpush1.bf16.msra.mxu0 %v1167
    %1733 = vmatprep.subr.bf16.mxu0 %v1172
    %1734 = vmatpush1.bf16.msra.mxu0 %v1171
    %1735 = vmatprep.subr.bf16.mxu0 %v1176
    %1736 = vmatpush1.bf16.msra.mxu0 %v1175
    %1737 = vmatprep.subr.bf16.mxu0 %v1180
    %1738 = vmatpush1.bf16.msra.mxu0 %v1179
    %1739 = vmatprep.subr.bf16.mxu0 %v1184
    %1740 = vmatpush1.bf16.msra.mxu0 %v1183
    %1741 = vmatprep.subr.bf16.mxu0 %v1188
    %1742 = vmatpush1.bf16.msra.mxu0 %v1187
    %1743 = vmatprep.subr.bf16.mxu0 %v1192
    %1744 = vmatpush1.bf16.msra.mxu0 %v1191
    %1745 = vmatprep.subr.bf16.mxu0 %v1196
    %1746 = vmatpush1.bf16.msra.mxu0 %v1195
    %1747 = vmatprep.subr.bf16.mxu0 %v1200
    %1748 = vmatpush1.bf16.msra.mxu0 %v1199
    %1749 = vmatprep.subr.bf16.mxu0 %v1204
    %1750 = vmatpush1.bf16.msra.mxu0 %v1203
    %1751 = vmatprep.subr.bf16.mxu0 %v1208
    %1752 = vmatpush1.bf16.msra.mxu0 %v1207
    %1753 = vmatprep.subr.bf16.mxu0 %v1212
    %1754 = vmatpush1.bf16.msra.mxu0 %v1211
    %1755 = vmatprep.subr.bf16.mxu0 %v1216
    %1756 = vmatpush1.bf16.msra.mxu0 %v1215
    %1757 = vmatprep.subr.bf16.mxu0 %v1220
    %1758 = vmatpush1.bf16.msra.mxu0 %v1219
    %1759 = vmatprep.subr.bf16.mxu0 %v1224
    %1760 = vmatpush1.bf16.msra.mxu0 %v1223
    %1761 = vmatprep.subr.bf16.mxu0 %v1228
    %1762 = vmatpush1.bf16.msra.mxu0 %v1227
    %1763 = vmatprep.mubr.bf16.mxu0 %v342
    %1764 = vmatmul.mubr.bf16.gmra.mrb[0].mxu0 %v341
    %v1765 = vpop.f32.mrb[0].mxu0
    %v1766 = vadd.f32 %v1725, %v1765
    %v1767 = vpop.f32.mrb[0].mxu0
    %v1768 = vadd.f32 %v1727, %v1767
    %v1769 = vpop.f32.mrb[0].mxu0
    %v1770 = vpop.f32.mrb[0].mxu0
    %1771 = vdwg.mxu0
    %1772 = vmatprep.subr.bf16.mxu0 %v1232
    %1773 = vmatpush1.bf16.msra.mxu0 %v1231
    %1774 = vmatprep.subr.bf16.mxu0 %v1236
    %1775 = vmatpush1.bf16.msra.mxu0 %v1235
    %1776 = vmatprep.subr.bf16.mxu0 %v1240
    %1777 = vmatpush1.bf16.msra.mxu0 %v1239
    %1778 = vmatprep.subr.bf16.mxu0 %v1244
    %1779 = vmatpush1.bf16.msra.mxu0 %v1243
    %1780 = vmatprep.subr.bf16.mxu0 %v1248
    %1781 = vmatpush1.bf16.msra.mxu0 %v1247
    %1782 = vmatprep.subr.bf16.mxu0 %v1252
    %1783 = vmatpush1.bf16.msra.mxu0 %v1251
    %1784 = vmatprep.subr.bf16.mxu0 %v1256
    %1785 = vmatpush1.bf16.msra.mxu0 %v1255
    %1786 = vmatprep.subr.bf16.mxu0 %v1260
    %1787 = vmatpush1.bf16.msra.mxu0 %v1259
    %1788 = vmatprep.subr.bf16.mxu0 0
    %1789 = vmatpush1.bf16.msra.mxu0 0
    %1790 = vmatprep.subr.bf16.mxu0 0
    %1791 = vmatpush1.bf16.msra.mxu0 0
    %1792 = vmatprep.subr.bf16.mxu0 0
    %1793 = vmatpush1.bf16.msra.mxu0 0
    %1794 = vmatprep.subr.bf16.mxu0 0
    %1795 = vmatpush1.bf16.msra.mxu0 0
    %1796 = vmatprep.subr.bf16.mxu0 0
    %1797 = vmatpush1.bf16.msra.mxu0 0
    %1798 = vmatprep.subr.bf16.mxu0 0
    %1799 = vmatpush1.bf16.msra.mxu0 0
    %1800 = vmatprep.subr.bf16.mxu0 0
    %1801 = vmatpush1.bf16.msra.mxu0 0
    %1802 = vmatprep.subr.bf16.mxu0 0
    %1803 = vmatpush1.bf16.msra.mxu0 0
    %1804 = vmatprep.mubr.bf16.mxu0 0
    %1805 = vmatmul.mubr.bf16.gmra.mrb[0].mxu0 %v343
    %v1806 = vpop.f32.mrb[0].mxu0
    %v1807 = vadd.f32 %v1766, %v1806
    %v1808 = vpop.f32.mrb[0].mxu0
    %v1809 = vadd.f32 %v1768, %v1808
    %v1810 = vpop.f32.mrb[0].mxu0
    %v1811 = vpop.f32.mrb[0].mxu0
    %1812 = vdwg.mxu0
    %v1813 = vmax.f32 %v1643, 0.0
    %v1814 = vmax.f32 %v1645, 0.0
    %v1815 = vmax.f32 %v1807, 0.0
    %v1816 = vmax.f32 %v1809, 0.0
    %s1817 = scalar_lea.vmem [#allocation11], 1
    %v1818 = vld [vmem:[%s1817] ss:$8 sm:$0xf]
    %s1819 = scalar_lea.vmem [#allocation11], 2
    %v1820 = vld [vmem:[%s1819] ss:$8 sm:$0xf]
    %v1821 = vrot.slane %v1813, 4
    %v1822 = vadd.f32 %v1813, %v1821
    %v1823 = vrot.slane %v1822, 2
    %v1824 = vadd.f32 %v1822, %v1823
    %v1825 = vrot.slane %v1824, 1
    %v1826 = vadd.f32 %v1824, %v1825
    %v1827 = vrot.slane %v1814, 4
    %v1828 = vadd.f32 %v1814, %v1827
    %v1829 = vrot.slane %v1828, 2
    %v1830 = vadd.f32 %v1828, %v1829
    %v1831 = vrot.slane %v1830, 1
    %v1832 = vadd.f32 %v1830, %v1831
    %v1833 = vrot.slane %v1815, 4
    %v1834 = vadd.f32 %v1815, %v1833
    %v1835 = vrot.slane %v1834, 2
    %v1836 = vadd.f32 %v1834, %v1835
    %v1837 = vrot.slane %v1836, 1
    %v1838 = vadd.f32 %v1836, %v1837
    %v1839 = vrot.slane %v1816, 4
    %v1840 = vadd.f32 %v1816, %v1839
    %v1841 = vrot.slane %v1840, 2
    %v1842 = vadd.f32 %v1840, %v1841
    %v1843 = vrot.slane %v1842, 1
    %v1844 = vadd.f32 %v1842, %v1843
    %v1845 = vrcp.pop 8.0
    %v1846 = vmul.f32 %v1826, %v1845
    %v1847 = vmul.f32 %v1832, %v1845
    %v1848 = vmul.f32 %v1838, %v1845
    %v1849 = vmul.f32 %v1844, %v1845
    %v1850 = vmul.f32 %v1813, %v1813
    %v1851 = vmul.f32 %v1814, %v1814
    %v1852 = vmul.f32 %v1815, %v1815
    %v1853 = vmul.f32 %v1816, %v1816
    %v1854 = vrot.slane %v1850, 4
    %v1855 = vadd.f32 %v1850, %v1854
    %v1856 = vrot.slane %v1855, 2
    %v1857 = vadd.f32 %v1855, %v1856
    %v1858 = vrot.slane %v1857, 1
    %v1859 = vadd.f32 %v1857, %v1858
    %v1860 = vrot.slane %v1851, 4
    %v1861 = vadd.f32 %v1851, %v1860
    %v1862 = vrot.slane %v1861, 2
    %v1863 = vadd.f32 %v1861, %v1862
    %v1864 = vrot.slane %v1863, 1
    %v1865 = vadd.f32 %v1863, %v1864
    %v1866 = vrot.slane %v1852, 4
    %v1867 = vadd.f32 %v1852, %v1866
    %v1868 = vrot.slane %v1867, 2
    %v1869 = vadd.f32 %v1867, %v1868
    %v1870 = vrot.slane %v1869, 1
    %v1871 = vadd.f32 %v1869, %v1870
    %v1872 = vrot.slane %v1853, 4
    %v1873 = vadd.f32 %v1853, %v1872
    %v1874 = vrot.slane %v1873, 2
    %v1875 = vadd.f32 %v1873, %v1874
    %v1876 = vrot.slane %v1875, 1
    %v1877 = vadd.f32 %v1875, %v1876
    %v1878 = vmul.f32 %v1859, %v1845
    %v1879 = vmul.f32 %v1865, %v1845
    %v1880 = vmul.f32 %v1871, %v1845
    %v1881 = vmul.f32 %v1877, %v1845
    %v1882 = vmul.f32 %v1846, %v1846
    %v1883 = vmul.f32 %v1847, %v1847
    %v1884 = vmul.f32 %v1848, %v1848
    %v1885 = vmul.f32 %v1849, %v1849
    %v1886 = vsub.f32 %v1878, %v1882
    %v1887 = vsub.f32 %v1879, %v1883
    %v1888 = vsub.f32 %v1880, %v1884
    %v1889 = vsub.f32 %v1881, %v1885
    %v1890 = vmax.f32 %v1886, 0.0
    %v1891 = vmax.f32 %v1887, 0.0
    %v1892 = vmax.f32 %v1888, 0.0
    %v1893 = vmax.f32 %v1889, 0.0
    %v1894 = vadd.f32 %v1890, 1e-05
    %v1895 = vadd.f32 %v1891, 1e-05
    %v1896 = vadd.f32 %v1892, 1e-05
    %v1897 = vadd.f32 %v1893, 1e-05
    %v1898 = vrsqrt.pop %v1894
    %v1899 = vrsqrt.pop %v1895
    %v1900 = vrsqrt.pop %v1896
    %v1901 = vrsqrt.pop %v1897
    %v1906 = vcombine.low %v1898, %v1899
    %v1907 = vcombine.low %v1900, %v1901
    %v1909 = vunpack.c.l.s4 1966171168
    %v1910 = vunpack.c.0.s8 %v1909
    %v1911 = vlaneseq
    %v1912 = vshrl.u32 %v1911, 7
    %v1913 = vsub.s32 %v1910, %v1912
    %v1914 = vrot.slane %v1906, %v1913
    %v1916 = vunpack.c.l.s4 1966171168
    %v1917 = vunpack.c.0.s8 %v1916
    %v1918 = vlaneseq
    %v1919 = vshrl.u32 %v1918, 7
    %v1920 = vsub.s32 %v1917, %v1919
    %v1921 = vrot.slane %v1907, %v1920
    %v1922 = vcombine.low %v1914, %v1921
    %v1924 = vunpack.c.l.s4 1966171168
    %v1925 = vunpack.c.0.s8 %v1924
    %v1926 = vlaneseq
    %v1927 = vshrl.u32 %v1926, 7
    %v1928 = vsub.s32 %v1925, %v1927
    %v1929 = vrot.slane %v1922, %v1928
    %v1931 = vmul.f32 %v1818, %v1929
    %v1933 = vlaneseq
    %v1934 = vshrl.u32 %v1933, 7
    %v1935 = vsub.s32 0, %v1934
    %v1936 = vrot.slane %v1931, %v1935
    %v1937 = vlaneseq
    %v1938 = vshrl.u32 %v1937, 7
    %v1939 = vsub.s32 1, %v1938
    %v1940 = vrot.slane %v1931, %v1939
    %v1941 = vlaneseq
    %v1942 = vshrl.u32 %v1941, 7
    %v1943 = vsub.s32 2, %v1942
    %v1944 = vrot.slane %v1931, %v1943
    %v1945 = vlaneseq
    %v1946 = vshrl.u32 %v1945, 7
    %v1947 = vsub.s32 3, %v1946
    %v1948 = vrot.slane %v1931, %v1947
    %v1953 = vmul.f32 %v1846, %v1936
    %v1954 = vmul.f32 %v1847, %v1940
    %v1955 = vmul.f32 %v1848, %v1944
    %v1956 = vmul.f32 %v1849, %v1948
    %v1961 = vcombine.low %v1953, %v1954
    %v1962 = vcombine.low %v1955, %v1956
    %v1964 = vunpack.c.l.s4 1966171168
    %v1965 = vunpack.c.0.s8 %v1964
    %v1966 = vlaneseq
    %v1967 = vshrl.u32 %v1966, 7
    %v1968 = vsub.s32 %v1965, %v1967
    %v1969 = vrot.slane %v1961, %v1968
    %v1971 = vunpack.c.l.s4 1966171168
    %v1972 = vunpack.c.0.s8 %v1971
    %v1973 = vlaneseq
    %v1974 = vshrl.u32 %v1973, 7
    %v1975 = vsub.s32 %v1972, %v1974
    %v1976 = vrot.slane %v1962, %v1975
    %v1977 = vcombine.low %v1969, %v1976
    %v1979 = vunpack.c.l.s4 1966171168
    %v1980 = vunpack.c.0.s8 %v1979
    %v1981 = vlaneseq
    %v1982 = vshrl.u32 %v1981, 7
    %v1983 = vsub.s32 %v1980, %v1982
    %v1984 = vrot.slane %v1977, %v1983
    %v1986 = vsub.f32 %v1820, %v1984
    %v1987 = vmul.f32 %v1813, %v1936
    %v1988 = vmul.f32 %v1814, %v1940
    %v1989 = vmul.f32 %v1815, %v1944
    %v1990 = vmul.f32 %v1816, %v1948
    %v1992 = vlaneseq
    %v1993 = vshrl.u32 %v1992, 7
    %v1994 = vsub.s32 0, %v1993
    %v1995 = vrot.slane %v1986, %v1994
    %v1996 = vlaneseq
    %v1997 = vshrl.u32 %v1996, 7
    %v1998 = vsub.s32 1, %v1997
    %v1999 = vrot.slane %v1986, %v1998
    %v2000 = vlaneseq
    %v2001 = vshrl.u32 %v2000, 7
    %v2002 = vsub.s32 2, %v2001
    %v2003 = vrot.slane %v1986, %v2002
    %v2004 = vlaneseq
    %v2005 = vshrl.u32 %v2004, 7
    %v2006 = vsub.s32 3, %v2005
    %v2007 = vrot.slane %v1986, %v2006
    %v2012 = vadd.f32 %v1987, %v1995
    %v2013 = vadd.f32 %v1988, %v1999
    %v2014 = vadd.f32 %v1989, %v2003
    %v2015 = vadd.f32 %v1990, %v2007
    %v2016 = vld [vmem:[#allocation7] sm:$0xff]
    %v2017 = vld [vmem:[#allocation7 + $0x8] sm:$0xff]
    %v2018 = vld [vmem:[#allocation7 + $0x10] sm:$0xff]
    %v2019 = vld [vmem:[#allocation7 + $0x18] sm:$0xff]
    %v2020 = vld [vmem:[#allocation7 + $0x20] sm:$0xff]
    %v2021 = vld [vmem:[#allocation7 + $0x28] sm:$0xff]
    %v2022 = vld [vmem:[#allocation7 + $0x30] sm:$0xff]
    %v2023 = vld [vmem:[#allocation7 + $0x38] sm:$0xff]
    %v2024 = vld [vmem:[#allocation7 + $0x40] sm:$0xff]
    %v2025 = vld [vmem:[#allocation7 + $0x48] sm:$0xff]
    %v2026 = vld [vmem:[#allocation7 + $0x50] sm:$0xff]
    %v2027 = vld [vmem:[#allocation7 + $0x58] sm:$0xff]
    %v2028 = vld [vmem:[#allocation7 + $0x60] sm:$0xff]
    %v2029 = vld [vmem:[#allocation7 + $0x68] sm:$0xff]
    %v2030 = vld [vmem:[#allocation7 + $0x70] sm:$0xff]
    %v2031 = vld [vmem:[#allocation7 + $0x78] sm:$0xff]
    %v2032 = vld [vmem:[#allocation7 + $0x80] sm:$0xff]
    %v2033 = vld [vmem:[#allocation7 + $0x88] sm:$0xff]
    %v2034 = vld [vmem:[#allocation7 + $0x90] sm:$0xff]
    %v2035 = vld [vmem:[#allocation7 + $0x98] sm:$0xff]
    %v2036 = vld [vmem:[#allocation7 + $0xa0] sm:$0xff]
    %v2037 = vld [vmem:[#allocation7 + $0xa8] sm:$0xff]
    %v2038 = vld [vmem:[#allocation7 + $0xb0] sm:$0xff]
    %v2039 = vld [vmem:[#allocation7 + $0xb8] sm:$0xff]
    %v2040 = vld [vmem:[#allocation7 + $0xc0] sm:$0xff]
    %v2041 = vld [vmem:[#allocation7 + $0xc8] sm:$0xff]
    %v2042 = vld [vmem:[#allocation7 + $0xd0] sm:$0xff]
    %v2043 = vld [vmem:[#allocation7 + $0xd8] sm:$0xff]
    %v2044 = vld [vmem:[#allocation7 + $0xe0] sm:$0xff]
    %v2045 = vld [vmem:[#allocation7 + $0xe8] sm:$0xff]
    %v2046 = vld [vmem:[#allocation7 + $0xf0] sm:$0xff]
    %v2047 = vld [vmem:[#allocation7 + $0xf8] sm:$0xff]
    %v2048 = vld [vmem:[#allocation7 + $0x100] sm:$0xff]
    %v2049 = vld [vmem:[#allocation7 + $0x108] sm:$0xff]
    %v2050 = vld [vmem:[#allocation7 + $0x110] sm:$0xff]
    %v2051 = vld [vmem:[#allocation7 + $0x118] sm:$0xff]
    %v2052 = vld [vmem:[#allocation7 + $0x120] sm:$0xff]
    %v2053 = vld [vmem:[#allocation7 + $0x128] sm:$0xff]
    %v2054 = vld [vmem:[#allocation7 + $0x130] sm:$0xff]
    %v2055 = vld [vmem:[#allocation7 + $0x138] sm:$0xff]
    %v2056 = vld [vmem:[#allocation7 + $0x140] sm:$0xff]
    %v2057 = vld [vmem:[#allocation7 + $0x148] sm:$0xff]
    %v2058 = vld [vmem:[#allocation7 + $0x150] sm:$0xff]
    %v2059 = vld [vmem:[#allocation7 + $0x158] sm:$0xff]
    %v2060 = vld [vmem:[#allocation7 + $0x160] sm:$0xff]
    %v2061 = vld [vmem:[#allocation7 + $0x168] sm:$0xff]
    %v2062 = vld [vmem:[#allocation7 + $0x170] sm:$0xff]
    %v2063 = vld [vmem:[#allocation7 + $0x178] sm:$0xff]
    %v2064 = vld [vmem:[#allocation7 + $0x180] sm:$0xff]
    %v2065 = vld [vmem:[#allocation7 + $0x188] sm:$0xff]
    %v2066 = vld [vmem:[#allocation7 + $0x190] sm:$0xff]
    %v2067 = vld [vmem:[#allocation7 + $0x198] sm:$0xff]
    %v2068 = vld [vmem:[#allocation7 + $0x1a0] sm:$0xff]
    %v2069 = vld [vmem:[#allocation7 + $0x1a8] sm:$0xff]
    %v2070 = vld [vmem:[#allocation7 + $0x1b0] sm:$0xff]
    %v2071 = vld [vmem:[#allocation7 + $0x1b8] sm:$0xff]
    %v2072 = vld [vmem:[#allocation7 + $0x1c0] sm:$0xff]
    %v2073 = vld [vmem:[#allocation7 + $0x1c8] sm:$0xff]
    %v2074 = vld [vmem:[#allocation7 + $0x1d0] sm:$0xff]
    %v2075 = vld [vmem:[#allocation7 + $0x1d8] sm:$0xff]
    %v2076 = vld [vmem:[#allocation7 + $0x1e0] sm:$0xff]
    %v2077 = vld [vmem:[#allocation7 + $0x1e8] sm:$0xff]
    %v2078 = vld [vmem:[#allocation7 + $0x1f0] sm:$0xff]
    %v2079 = vld [vmem:[#allocation7 + $0x1f8] sm:$0xff]
    %s2080 = scalar_lea.vmem [#allocation11], 3
    %v2081 = vld [vmem:[%s2080] ss:$8 sm:$0x3]
    %v2082 = vpack.c.bf16 %v2012, %v2012
    %v2083 = vpack.c.bf16 %v2013, %v2013
    %v2084 = vpack.c.bf16 %v2014, %v2014
    %v2085 = vpack.c.bf16 %v2015, %v2015
    %v2087 = vlaneseq
    %v2088 = vshrl.u32 %v2087, 7
    %v2089 = vsub.s32 0, %v2088
    %v2090 = vrot.slane %v2081, %v2089
    %v2091 = vlaneseq
    %v2092 = vshrl.u32 %v2091, 7
    %v2093 = vsub.s32 1, %v2092
    %v2094 = vrot.slane %v2081, %v2093
    %v2161 = vunpack.c.l.b16 %v2016
    %v2162 = vunpack.c.h.b16 %v2016
    %v2163 = vunpack.c.l.b16 %v2017
    %v2164 = vunpack.c.h.b16 %v2017
    %v2165 = vunpack.c.l.b16 %v2018
    %v2166 = vunpack.c.h.b16 %v2018
    %v2167 = vunpack.c.l.b16 %v2019
    %v2168 = vunpack.c.h.b16 %v2019
    %v2169 = vunpack.c.l.b16 %v2020
    %v2170 = vunpack.c.h.b16 %v2020
    %v2171 = vunpack.c.l.b16 %v2021
    %v2172 = vunpack.c.h.b16 %v2021
    %v2173 = vunpack.c.l.b16 %v2022
    %v2174 = vunpack.c.h.b16 %v2022
    %v2175 = vunpack.c.l.b16 %v2023
    %v2176 = vunpack.c.h.b16 %v2023
    %v2177 = vunpack.c.l.b16 %v2024
    %v2178 = vunpack.c.h.b16 %v2024
    %v2179 = vunpack.c.l.b16 %v2025
    %v2180 = vunpack.c.h.b16 %v2025
    %v2181 = vunpack.c.l.b16 %v2026
    %v2182 = vunpack.c.h.b16 %v2026
    %v2183 = vunpack.c.l.b16 %v2027
    %v2184 = vunpack.c.h.b16 %v2027
    %v2185 = vunpack.c.l.b16 %v2028
    %v2186 = vunpack.c.h.b16 %v2028
    %v2187 = vunpack.c.l.b16 %v2029
    %v2188 = vunpack.c.h.b16 %v2029
    %v2189 = vunpack.c.l.b16 %v2030
    %v2190 = vunpack.c.h.b16 %v2030
    %v2191 = vunpack.c.l.b16 %v2031
    %v2192 = vunpack.c.h.b16 %v2031
    %v2193 = vunpack.c.l.b16 %v2032
    %v2194 = vunpack.c.h.b16 %v2032
    %v2195 = vunpack.c.l.b16 %v2033
    %v2196 = vunpack.c.h.b16 %v2033
    %v2197 = vunpack.c.l.b16 %v2034
    %v2198 = vunpack.c.h.b16 %v2034
    %v2199 = vunpack.c.l.b16 %v2035
    %v2200 = vunpack.c.h.b16 %v2035
    %v2201 = vunpack.c.l.b16 %v2036
    %v2202 = vunpack.c.h.b16 %v2036
    %v2203 = vunpack.c.l.b16 %v2037
    %v2204 = vunpack.c.h.b16 %v2037
    %v2205 = vunpack.c.l.b16 %v2038
    %v2206 = vunpack.c.h.b16 %v2038
    %v2207 = vunpack.c.l.b16 %v2039
    %v2208 = vunpack.c.h.b16 %v2039
    %v2209 = vunpack.c.l.b16 %v2040
    %v2210 = vunpack.c.h.b16 %v2040
    %v2211 = vunpack.c.l.b16 %v2041
    %v2212 = vunpack.c.h.b16 %v2041
    %v2213 = vunpack.c.l.b16 %v2042
    %v2214 = vunpack.c.h.b16 %v2042
    %v2215 = vunpack.c.l.b16 %v2043
    %v2216 = vunpack.c.h.b16 %v2043
    %v2217 = vunpack.c.l.b16 %v2044
    %v2218 = vunpack.c.h.b16 %v2044
    %v2219 = vunpack.c.l.b16 %v2045
    %v2220 = vunpack.c.h.b16 %v2045
    %v2221 = vunpack.c.l.b16 %v2046
    %v2222 = vunpack.c.h.b16 %v2046
    %v2223 = vunpack.c.l.b16 %v2047
    %v2224 = vunpack.c.h.b16 %v2047
    %v2225 = vunpack.c.l.b16 %v2048
    %v2226 = vunpack.c.h.b16 %v2048
    %v2227 = vunpack.c.l.b16 %v2049
    %v2228 = vunpack.c.h.b16 %v2049
    %v2229 = vunpack.c.l.b16 %v2050
    %v2230 = vunpack.c.h.b16 %v2050
    %v2231 = vunpack.c.l.b16 %v2051
    %v2232 = vunpack.c.h.b16 %v2051
    %v2233 = vunpack.c.l.b16 %v2052
    %v2234 = vunpack.c.h.b16 %v2052
    %v2235 = vunpack.c.l.b16 %v2053
    %v2236 = vunpack.c.h.b16 %v2053
    %v2237 = vunpack.c.l.b16 %v2054
    %v2238 = vunpack.c.h.b16 %v2054
    %v2239 = vunpack.c.l.b16 %v2055
    %v2240 = vunpack.c.h.b16 %v2055
    %v2241 = vunpack.c.l.b16 %v2056
    %v2242 = vunpack.c.h.b16 %v2056
    %v2243 = vunpack.c.l.b16 %v2057
    %v2244 = vunpack.c.h.b16 %v2057
    %v2245 = vunpack.c.l.b16 %v2058
    %v2246 = vunpack.c.h.b16 %v2058
    %v2247 = vunpack.c.l.b16 %v2059
    %v2248 = vunpack.c.h.b16 %v2059
    %v2249 = vunpack.c.l.b16 %v2060
    %v2250 = vunpack.c.h.b16 %v2060
    %v2251 = vunpack.c.l.b16 %v2061
    %v2252 = vunpack.c.h.b16 %v2061
    %v2253 = vunpack.c.l.b16 %v2062
    %v2254 = vunpack.c.h.b16 %v2062
    %v2255 = vunpack.c.l.b16 %v2063
    %v2256 = vunpack.c.h.b16 %v2063
    %v2257 = vunpack.c.l.b16 %v2064
    %v2258 = vunpack.c.h.b16 %v2064
    %v2259 = vunpack.c.l.b16 %v2065
    %v2260 = vunpack.c.h.b16 %v2065
    %v2261 = vunpack.c.l.b16 %v2066
    %v2262 = vunpack.c.h.b16 %v2066
    %v2263 = vunpack.c.l.b16 %v2067
    %v2264 = vunpack.c.h.b16 %v2067
    %v2265 = vunpack.c.l.b16 %v2068
    %v2266 = vunpack.c.h.b16 %v2068
    %v2267 = vunpack.c.l.b16 %v2069
    %v2268 = vunpack.c.h.b16 %v2069
    %v2269 = vunpack.c.l.b16 %v2070
    %v2270 = vunpack.c.h.b16 %v2070
    %v2271 = vunpack.c.l.b16 %v2071
    %v2272 = vunpack.c.h.b16 %v2071
    %v2273 = vunpack.c.l.b16 %v2072
    %v2274 = vunpack.c.h.b16 %v2072
    %v2275 = vunpack.c.l.b16 %v2073
    %v2276 = vunpack.c.h.b16 %v2073
    %v2277 = vunpack.c.l.b16 %v2074
    %v2278 = vunpack.c.h.b16 %v2074
    %v2279 = vunpack.c.l.b16 %v2075
    %v2280 = vunpack.c.h.b16 %v2075
    %v2281 = vunpack.c.l.b16 %v2076
    %v2282 = vunpack.c.h.b16 %v2076
    %v2283 = vunpack.c.l.b16 %v2077
    %v2284 = vunpack.c.h.b16 %v2077
    %v2285 = vunpack.c.l.b16 %v2078
    %v2286 = vunpack.c.h.b16 %v2078
    %v2287 = vunpack.c.l.b16 %v2079
    %v2288 = vunpack.c.h.b16 %v2079
    %v2289 = vpack.c.b16 %v2163, %v2161
    %v2290 = vpack.c.b16 %v2164, %v2162
    %v2291 = vpack.c.b16 %v2167, %v2165
    %v2292 = vpack.c.b16 %v2168, %v2166
    %v2293 = vpack.c.b16 %v2171, %v2169
    %v2294 = vpack.c.b16 %v2172, %v2170
    %v2295 = vpack.c.b16 %v2175, %v2173
    %v2296 = vpack.c.b16 %v2176, %v2174
    %v2297 = vpack.c.b16 %v2179, %v2177
    %v2298 = vpack.c.b16 %v2180, %v2178
    %v2299 = vpack.c.b16 %v2183, %v2181
    %v2300 = vpack.c.b16 %v2184, %v2182
    %v2301 = vpack.c.b16 %v2187, %v2185
    %v2302 = vpack.c.b16 %v2188, %v2186
    %v2303 = vpack.c.b16 %v2191, %v2189
    %v2304 = vpack.c.b16 %v2192, %v2190
    %v2305 = vpack.c.b16 %v2195, %v2193
    %v2306 = vpack.c.b16 %v2196, %v2194
    %v2307 = vpack.c.b16 %v2199, %v2197
    %v2308 = vpack.c.b16 %v2200, %v2198
    %v2309 = vpack.c.b16 %v2203, %v2201
    %v2310 = vpack.c.b16 %v2204, %v2202
    %v2311 = vpack.c.b16 %v2207, %v2205
    %v2312 = vpack.c.b16 %v2208, %v2206
    %v2313 = vpack.c.b16 %v2211, %v2209
    %v2314 = vpack.c.b16 %v2212, %v2210
    %v2315 = vpack.c.b16 %v2215, %v2213
    %v2316 = vpack.c.b16 %v2216, %v2214
    %v2317 = vpack.c.b16 %v2219, %v2217
    %v2318 = vpack.c.b16 %v2220, %v2218
    %v2319 = vpack.c.b16 %v2223, %v2221
    %v2320 = vpack.c.b16 %v2224, %v2222
    %v2321 = vpack.c.b16 %v2227, %v2225
    %v2322 = vpack.c.b16 %v2228, %v2226
    %v2323 = vpack.c.b16 %v2231, %v2229
    %v2324 = vpack.c.b16 %v2232, %v2230
    %v2325 = vpack.c.b16 %v2235, %v2233
    %v2326 = vpack.c.b16 %v2236, %v2234
    %v2327 = vpack.c.b16 %v2239, %v2237
    %v2328 = vpack.c.b16 %v2240, %v2238
    %v2329 = vpack.c.b16 %v2243, %v2241
    %v2330 = vpack.c.b16 %v2244, %v2242
    %v2331 = vpack.c.b16 %v2247, %v2245
    %v2332 = vpack.c.b16 %v2248, %v2246
    %v2333 = vpack.c.b16 %v2251, %v2249
    %v2334 = vpack.c.b16 %v2252, %v2250
    %v2335 = vpack.c.b16 %v2255, %v2253
    %v2336 = vpack.c.b16 %v2256, %v2254
    %v2337 = vpack.c.b16 %v2259, %v2257
    %v2338 = vpack.c.b16 %v2260, %v2258
    %v2339 = vpack.c.b16 %v2263, %v2261
    %v2340 = vpack.c.b16 %v2264, %v2262
    %v2341 = vpack.c.b16 %v2267, %v2265
    %v2342 = vpack.c.b16 %v2268, %v2266
    %v2343 = vpack.c.b16 %v2271, %v2269
    %v2344 = vpack.c.b16 %v2272, %v2270
    %v2345 = vpack.c.b16 %v2275, %v2273
    %v2346 = vpack.c.b16 %v2276, %v2274
    %v2347 = vpack.c.b16 %v2279, %v2277
    %v2348 = vpack.c.b16 %v2280, %v2278
    %v2349 = vpack.c.b16 %v2283, %v2281
    %v2350 = vpack.c.b16 %v2284, %v2282
    %v2351 = vpack.c.b16 %v2287, %v2285
    %v2352 = vpack.c.b16 %v2288, %v2286
    %2417 = vmatprep.subr.bf16.mxu0 %v2290
    %2418 = vmatpush1.bf16.msra.mxu0 %v2289
    %2419 = vmatprep.subr.bf16.mxu0 %v2292
    %2420 = vmatpush1.bf16.msra.mxu0 %v2291
    %2421 = vmatprep.subr.bf16.mxu0 %v2294
    %2422 = vmatpush1.bf16.msra.mxu0 %v2293
    %2423 = vmatprep.subr.bf16.mxu0 %v2296
    %2424 = vmatpush1.bf16.msra.mxu0 %v2295
    %2425 = vmatprep.subr.bf16.mxu0 %v2298
    %2426 = vmatpush1.bf16.msra.mxu0 %v2297
    %2427 = vmatprep.subr.bf16.mxu0 %v2300
    %2428 = vmatpush1.bf16.msra.mxu0 %v2299
    %2429 = vmatprep.subr.bf16.mxu0 %v2302
    %2430 = vmatpush1.bf16.msra.mxu0 %v2301
    %2431 = vmatprep.subr.bf16.mxu0 %v2304
    %2432 = vmatpush1.bf16.msra.mxu0 %v2303
    %2433 = vmatprep.subr.bf16.mxu0 %v2306
    %2434 = vmatpush1.bf16.msra.mxu0 %v2305
    %2435 = vmatprep.subr.bf16.mxu0 %v2308
    %2436 = vmatpush1.bf16.msra.mxu0 %v2307
    %2437 = vmatprep.subr.bf16.mxu0 %v2310
    %2438 = vmatpush1.bf16.msra.mxu0 %v2309
    %2439 = vmatprep.subr.bf16.mxu0 %v2312
    %2440 = vmatpush1.bf16.msra.mxu0 %v2311
    %2441 = vmatprep.subr.bf16.mxu0 %v2314
    %2442 = vmatpush1.bf16.msra.mxu0 %v2313
    %2443 = vmatprep.subr.bf16.mxu0 %v2316
    %2444 = vmatpush1.bf16.msra.mxu0 %v2315
    %2445 = vmatprep.subr.bf16.mxu0 %v2318
    %2446 = vmatpush1.bf16.msra.mxu0 %v2317
    %2447 = vmatprep.subr.bf16.mxu0 %v2320
    %2448 = vmatpush1.bf16.msra.mxu0 %v2319
    %2449 = vmatprep.mubr.bf16.mxu0 %v2083
    %2450 = vmatmul.mubr.bf16.gmra.mrb[0].mxu0 %v2082
    %v2451 = vpop.f32.mrb[0].mxu0
    %v2452 = vadd.f32 %v2090, %v2451
    %v2453 = vpop.f32.mrb[0].mxu0
    %v2454 = vadd.f32 %v2094, %v2453
    %v2455 = vpop.f32.mrb[0].mxu0
    %v2456 = vpop.f32.mrb[0].mxu0
    %2457 = vdwg.mxu0
    %2458 = vmatprep.subr.bf16.mxu0 %v2322
    %2459 = vmatpush1.bf16.msra.mxu0 %v2321
    %2460 = vmatprep.subr.bf16.mxu0 %v2324
    %2461 = vmatpush1.bf16.msra.mxu0 %v2323
    %2462 = vmatprep.subr.bf16.mxu0 %v2326
    %2463 = vmatpush1.bf16.msra.mxu0 %v2325
    %2464 = vmatprep.subr.bf16.mxu0 %v2328
    %2465 = vmatpush1.bf16.msra.mxu0 %v2327
    %2466 = vmatprep.subr.bf16.mxu0 %v2330
    %2467 = vmatpush1.bf16.msra.mxu0 %v2329
    %2468 = vmatprep.subr.bf16.mxu0 %v2332
    %2469 = vmatpush1.bf16.msra.mxu0 %v2331
    %2470 = vmatprep.subr.bf16.mxu0 %v2334
    %2471 = vmatpush1.bf16.msra.mxu0 %v2333
    %2472 = vmatprep.subr.bf16.mxu0 %v2336
    %2473 = vmatpush1.bf16.msra.mxu0 %v2335
    %2474 = vmatprep.subr.bf16.mxu0 %v2338
    %2475 = vmatpush1.bf16.msra.mxu0 %v2337
    %2476 = vmatprep.subr.bf16.mxu0 %v2340
    %2477 = vmatpush1.bf16.msra.mxu0 %v2339
    %2478 = vmatprep.subr.bf16.mxu0 %v2342
    %2479 = vmatpush1.bf16.msra.mxu0 %v2341
    %2480 = vmatprep.subr.bf16.mxu0 %v2344
    %2481 = vmatpush1.bf16.msra.mxu0 %v2343
    %2482 = vmatprep.subr.bf16.mxu0 %v2346
    %2483 = vmatpush1.bf16.msra.mxu0 %v2345
    %2484 = vmatprep.subr.bf16.mxu0 %v2348
    %2485 = vmatpush1.bf16.msra.mxu0 %v2347
    %2486 = vmatprep.subr.bf16.mxu0 %v2350
    %2487 = vmatpush1.bf16.msra.mxu0 %v2349
    %2488 = vmatprep.subr.bf16.mxu0 %v2352
    %2489 = vmatpush1.bf16.msra.mxu0 %v2351
    %2490 = vmatprep.mubr.bf16.mxu0 %v2085
    %2491 = vmatmul.mubr.bf16.gmra.mrb[0].mxu0 %v2084
    %v2492 = vpop.f32.mrb[0].mxu0
    %v2493 = vadd.f32 %v2452, %v2492
    %v2494 = vpop.f32.mrb[0].mxu0
    %v2495 = vadd.f32 %v2454, %v2494
    %v2496 = vpop.f32.mrb[0].mxu0
    %v2497 = vpop.f32.mrb[0].mxu0
    %2498 = vdwg.mxu0
    %v2499 = vmax.f32 %v2493, 0.0
    %v2500 = vmax.f32 %v2495, 0.0
    %s2501 = scalar_lea.vmem [#allocation11], 4
    %v2502 = vld [vmem:[%s2501] ss:$8 sm:$0x3]
    %s2503 = scalar_lea.vmem [#allocation11], 5
    %v2504 = vld [vmem:[%s2503] ss:$8 sm:$0x3]
    %v2505 = vrot.slane %v2499, 4
    %v2506 = vadd.f32 %v2499, %v2505
    %v2507 = vrot.slane %v2506, 2
    %v2508 = vadd.f32 %v2506, %v2507
    %v2509 = vrot.slane %v2508, 1
    %v2510 = vadd.f32 %v2508, %v2509
    %v2511 = vrot.slane %v2500, 4
    %v2512 = vadd.f32 %v2500, %v2511
    %v2513 = vrot.slane %v2512, 2
    %v2514 = vadd.f32 %v2512, %v2513
    %v2515 = vrot.slane %v2514, 1
    %v2516 = vadd.f32 %v2514, %v2515
    %v2517 = vmul.f32 %v2510, %v1845
    %v2518 = vmul.f32 %v2516, %v1845
    %v2519 = vmul.f32 %v2499, %v2499
    %v2520 = vmul.f32 %v2500, %v2500
    %v2521 = vrot.slane %v2519, 4
    %v2522 = vadd.f32 %v2519, %v2521
    %v2523 = vrot.slane %v2522, 2
    %v2524 = vadd.f32 %v2522, %v2523
    %v2525 = vrot.slane %v2524, 1
    %v2526 = vadd.f32 %v2524, %v2525
    %v2527 = vrot.slane %v2520, 4
    %v2528 = vadd.f32 %v2520, %v2527
    %v2529 = vrot.slane %v2528, 2
    %v2530 = vadd.f32 %v2528, %v2529
    %v2531 = vrot.slane %v2530, 1
    %v2532 = vadd.f32 %v2530, %v2531
    %v2533 = vmul.f32 %v2526, %v1845
    %v2534 = vmul.f32 %v2532, %v1845
    %v2535 = vmul.f32 %v2517, %v2517
    %v2536 = vmul.f32 %v2518, %v2518
    %v2537 = vsub.f32 %v2533, %v2535
    %v2538 = vsub.f32 %v2534, %v2536
    %v2539 = vmax.f32 %v2537, 0.0
    %v2540 = vmax.f32 %v2538, 0.0
    %v2541 = vadd.f32 %v2539, 1e-05
    %v2542 = vadd.f32 %v2540, 1e-05
    %v2543 = vrsqrt.pop %v2541
    %v2544 = vrsqrt.pop %v2542
    %v2547 = vcombine.low %v2543, %v2544
    %v2549 = vunpack.c.l.s4 1966171168
    %v2550 = vunpack.c.0.s8 %v2549
    %v2551 = vlaneseq
    %v2552 = vshrl.u32 %v2551, 7
    %v2553 = vsub.s32 %v2550, %v2552
    %v2554 = vrot.slane %v2547, %v2553
    %v2556 = vunpack.c.l.s4 1966171168
    %v2557 = vunpack.c.0.s8 %v2556
    %v2558 = vlaneseq
    %v2559 = vshrl.u32 %v2558, 7
    %v2560 = vsub.s32 %v2557, %v2559
    %v2561 = vrot.slane %v2554, %v2560
    %v2563 = vmul.f32 %v2502, %v2561
    %v2565 = vlaneseq
    %v2566 = vshrl.u32 %v2565, 7
    %v2567 = vsub.s32 0, %v2566
    %v2568 = vrot.slane %v2563, %v2567
    %v2569 = vlaneseq
    %v2570 = vshrl.u32 %v2569, 7
    %v2571 = vsub.s32 1, %v2570
    %v2572 = vrot.slane %v2563, %v2571
    %v2575 = vmul.f32 %v2517, %v2568
    %v2576 = vmul.f32 %v2518, %v2572
    %v2579 = vcombine.low %v2575, %v2576
    %v2581 = vunpack.c.l.s4 1966171168
    %v2582 = vunpack.c.0.s8 %v2581
    %v2583 = vlaneseq
    %v2584 = vshrl.u32 %v2583, 7
    %v2585 = vsub.s32 %v2582, %v2584
    %v2586 = vrot.slane %v2579, %v2585
    %v2588 = vunpack.c.l.s4 1966171168
    %v2589 = vunpack.c.0.s8 %v2588
    %v2590 = vlaneseq
    %v2591 = vshrl.u32 %v2590, 7
    %v2592 = vsub.s32 %v2589, %v2591
    %v2593 = vrot.slane %v2586, %v2592
    %v2595 = vsub.f32 %v2504, %v2593
    %v2596 = vmul.f32 %v2499, %v2568
    %v2597 = vmul.f32 %v2500, %v2572
    %v2599 = vlaneseq
    %v2600 = vshrl.u32 %v2599, 7
    %v2601 = vsub.s32 0, %v2600
    %v2602 = vrot.slane %v2595, %v2601
    %v2603 = vlaneseq
    %v2604 = vshrl.u32 %v2603, 7
    %v2605 = vsub.s32 1, %v2604
    %v2606 = vrot.slane %v2595, %v2605
    %v2609 = vadd.f32 %v2596, %v2602
    %v2610 = vadd.f32 %v2597, %v2606
    %v2611 = vld [vmem:[#allocation5] sm:$0xf]
    %v2612 = vld [vmem:[#allocation5 + $0x4] sm:$0xf]
    %v2613 = vld [vmem:[#allocation5 + $0x8] sm:$0xf]
    %v2614 = vld [vmem:[#allocation5 + $0xc] sm:$0xf]
    %v2615 = vld [vmem:[#allocation5 + $0x10] sm:$0xf]
    %v2616 = vld [vmem:[#allocation5 + $0x14] sm:$0xf]
    %v2617 = vld [vmem:[#allocation5 + $0x18] sm:$0xf]
    %v2618 = vld [vmem:[#allocation5 + $0x1c] sm:$0xf]
    %v2619 = vld [vmem:[#allocation5 + $0x20] sm:$0xf]
    %v2620 = vld [vmem:[#allocation5 + $0x24] sm:$0xf]
    %v2621 = vld [vmem:[#allocation5 + $0x28] sm:$0xf]
    %v2622 = vld [vmem:[#allocation5 + $0x2c] sm:$0xf]
    %v2623 = vld [vmem:[#allocation5 + $0x30] sm:$0xf]
    %v2624 = vld [vmem:[#allocation5 + $0x34] sm:$0xf]
    %v2625 = vld [vmem:[#allocation5 + $0x38] sm:$0xf]
    %v2626 = vld [vmem:[#allocation5 + $0x3c] sm:$0xf]
    %v2627 = vld [vmem:[#allocation5 + $0x40] sm:$0xf]
    %v2628 = vld [vmem:[#allocation5 + $0x44] sm:$0xf]
    %v2629 = vld [vmem:[#allocation5 + $0x48] sm:$0xf]
    %v2630 = vld [vmem:[#allocation5 + $0x4c] sm:$0xf]
    %v2631 = vld [vmem:[#allocation5 + $0x50] sm:$0xf]
    %v2632 = vld [vmem:[#allocation5 + $0x54] sm:$0xf]
    %v2633 = vld [vmem:[#allocation5 + $0x58] sm:$0xf]
    %v2634 = vld [vmem:[#allocation5 + $0x5c] sm:$0xf]
    %v2635 = vld [vmem:[#allocation5 + $0x60] sm:$0xf]
    %v2636 = vld [vmem:[#allocation5 + $0x64] sm:$0xf]
    %v2637 = vld [vmem:[#allocation5 + $0x68] sm:$0xf]
    %v2638 = vld [vmem:[#allocation5 + $0x6c] sm:$0xf]
    %v2639 = vld [vmem:[#allocation5 + $0x70] sm:$0xf]
    %v2640 = vld [vmem:[#allocation5 + $0x74] sm:$0xf]
    %v2641 = vld [vmem:[#allocation5 + $0x78] sm:$0xf]
    %v2642 = vld [vmem:[#allocation5 + $0x7c] sm:$0xf]
    %v2643 = vld [vmem:[#allocation11 + $0x6] ss:$0 sm:$0xff]
    %v2644 = vpack.c.bf16 %v2609, %v2609
    %v2645 = vpack.c.bf16 %v2610, %v2610
    %v2678 = vunpack.c.l.b16 %v2611
    %v2679 = vunpack.c.l.b16 %v2612
    %v2680 = vunpack.c.l.b16 %v2613
    %v2681 = vunpack.c.l.b16 %v2614
    %v2682 = vunpack.c.l.b16 %v2615
    %v2683 = vunpack.c.l.b16 %v2616
    %v2684 = vunpack.c.l.b16 %v2617
    %v2685 = vunpack.c.l.b16 %v2618
    %v2686 = vunpack.c.l.b16 %v2619
    %v2687 = vunpack.c.l.b16 %v2620
    %v2688 = vunpack.c.l.b16 %v2621
    %v2689 = vunpack.c.l.b16 %v2622
    %v2690 = vunpack.c.l.b16 %v2623
    %v2691 = vunpack.c.l.b16 %v2624
    %v2692 = vunpack.c.l.b16 %v2625
    %v2693 = vunpack.c.l.b16 %v2626
    %v2694 = vunpack.c.l.b16 %v2627
    %v2695 = vunpack.c.l.b16 %v2628
    %v2696 = vunpack.c.l.b16 %v2629
    %v2697 = vunpack.c.l.b16 %v2630
    %v2698 = vunpack.c.l.b16 %v2631
    %v2699 = vunpack.c.l.b16 %v2632
    %v2700 = vunpack.c.l.b16 %v2633
    %v2701 = vunpack.c.l.b16 %v2634
    %v2702 = vunpack.c.l.b16 %v2635
    %v2703 = vunpack.c.l.b16 %v2636
    %v2704 = vunpack.c.l.b16 %v2637
    %v2705 = vunpack.c.l.b16 %v2638
    %v2706 = vunpack.c.l.b16 %v2639
    %v2707 = vunpack.c.l.b16 %v2640
    %v2708 = vunpack.c.l.b16 %v2641
    %v2709 = vunpack.c.l.b16 %v2642
    %v2710 = vpack.c.b16 %v2679, %v2678
    %v2711 = vpack.c.b16 %v2681, %v2680
    %v2712 = vpack.c.b16 %v2683, %v2682
    %v2713 = vpack.c.b16 %v2685, %v2684
    %v2714 = vpack.c.b16 %v2687, %v2686
    %v2715 = vpack.c.b16 %v2689, %v2688
    %v2716 = vpack.c.b16 %v2691, %v2690
    %v2717 = vpack.c.b16 %v2693, %v2692
    %v2718 = vpack.c.b16 %v2695, %v2694
    %v2719 = vpack.c.b16 %v2697, %v2696
    %v2720 = vpack.c.b16 %v2699, %v2698
    %v2721 = vpack.c.b16 %v2701, %v2700
    %v2722 = vpack.c.b16 %v2703, %v2702
    %v2723 = vpack.c.b16 %v2705, %v2704
    %v2724 = vpack.c.b16 %v2707, %v2706
    %v2725 = vpack.c.b16 %v2709, %v2708
    %2742 = vmatprep.subr.bf16.mxu0 0
    %2743 = vmatpush1.bf16.msra.mxu0 %v2710
    %2744 = vmatprep.subr.bf16.mxu0 0
    %2745 = vmatpush1.bf16.msra.mxu0 %v2711
    %2746 = vmatprep.subr.bf16.mxu0 0
    %2747 = vmatpush1.bf16.msra.mxu0 %v2712
    %2748 = vmatprep.subr.bf16.mxu0 0
    %2749 = vmatpush1.bf16.msra.mxu0 %v2713
    %2750 = vmatprep.subr.bf16.mxu0 0
    %2751 = vmatpush1.bf16.msra.mxu0 %v2714
    %2752 = vmatprep.subr.bf16.mxu0 0
    %2753 = vmatpush1.bf16.msra.mxu0 %v2715
    %2754 = vmatprep.subr.bf16.mxu0 0
    %2755 = vmatpush1.bf16.msra.mxu0 %v2716
    %2756 = vmatprep.subr.bf16.mxu0 0
    %2757 = vmatpush1.bf16.msra.mxu0 %v2717
    %2758 = vmatprep.subr.bf16.mxu0 0
    %2759 = vmatpush1.bf16.msra.mxu0 %v2718
    %2760 = vmatprep.subr.bf16.mxu0 0
    %2761 = vmatpush1.bf16.msra.mxu0 %v2719
    %2762 = vmatprep.subr.bf16.mxu0 0
    %2763 = vmatpush1.bf16.msra.mxu0 %v2720
    %2764 = vmatprep.subr.bf16.mxu0 0
    %2765 = vmatpush1.bf16.msra.mxu0 %v2721
    %2766 = vmatprep.subr.bf16.mxu0 0
    %2767 = vmatpush1.bf16.msra.mxu0 %v2722
    %2768 = vmatprep.subr.bf16.mxu0 0
    %2769 = vmatpush1.bf16.msra.mxu0 %v2723
    %2770 = vmatprep.subr.bf16.mxu0 0
    %2771 = vmatpush1.bf16.msra.mxu0 %v2724
    %2772 = vmatprep.subr.bf16.mxu0 0
    %2773 = vmatpush1.bf16.msra.mxu0 %v2725
    %2774 = vmatprep.mubr.bf16.mxu0 %v2645
    %2775 = vmatmul.mubr.bf16.gmra.mrb[0].mxu0 %v2644
    %v2776 = vpop.f32.mrb[0].mxu0
    %v2777 = vadd.f32 %v2643, %v2776
    %v2778 = vpop.f32.mrb[0].mxu0
    %v2779 = vpop.f32.mrb[0].mxu0
    %v2780 = vpop.f32.mrb[0].mxu0
    %2781 = vdwg.mxu0
    %v2782 = vmax.f32 %v2777, 0.0
    %v2783 = vld [vmem:[#allocation11 + $0x7] ss:$0 sm:$0xff]
    %v2784 = vld [vmem:[#allocation11 + $0x38] ss:$0 sm:$0xff]
    %v2785 = vrot.slane %v2782, 4
    %v2786 = vadd.f32 %v2782, %v2785
    %v2787 = vrot.slane %v2786, 2
    %v2788 = vadd.f32 %v2786, %v2787
    %v2789 = vrot.slane %v2788, 1
    %v2790 = vadd.f32 %v2788, %v2789
    %v2791 = vmul.f32 %v2790, %v1845
    %v2792 = vmul.f32 %v2782, %v2782
    %v2793 = vrot.slane %v2792, 4
    %v2794 = vadd.f32 %v2792, %v2793
    %v2795 = vrot.slane %v2794, 2
    %v2796 = vadd.f32 %v2794, %v2795
    %v2797 = vrot.slane %v2796, 1
    %v2798 = vadd.f32 %v2796, %v2797
    %v2799 = vmul.f32 %v2798, %v1845
    %v2800 = vmul.f32 %v2791, %v2791
    %v2801 = vsub.f32 %v2799, %v2800
    %v2802 = vmax.f32 %v2801, 0.0
    %v2803 = vadd.f32 %v2802, 1e-05
    %v2804 = vrsqrt.pop %v2803
    %v2805 = vmul.f32 %v2783, %v2804
    %v2806 = vmul.f32 %v2791, %v2805
    %v2807 = vsub.f32 %v2784, %v2806
    %v2808 = vmul.f32 %v2782, %v2805
    %v2809 = vadd.f32 %v2808, %v2807
    %v2810 = vld [vmem:[#allocation5 + $0x80] sm:$0xf]
    %v2811 = vld [vmem:[#allocation5 + $0x84] sm:$0xf]
    %v2812 = vld [vmem:[#allocation5 + $0x88] sm:$0xf]
    %v2813 = vld [vmem:[#allocation5 + $0x8c] sm:$0xf]
    %v2814 = vld [vmem:[#allocation5 + $0x90] sm:$0xf]
    %v2815 = vld [vmem:[#allocation5 + $0x94] sm:$0xf]
    %v2816 = vld [vmem:[#allocation5 + $0x98] sm:$0xf]
    %v2817 = vld [vmem:[#allocation5 + $0x9c] sm:$0xf]
    %v2818 = vld [vmem:[#allocation5 + $0xa0] sm:$0xf]
    %v2819 = vld [vmem:[#allocation5 + $0xa4] sm:$0xf]
    %v2820 = vld [vmem:[#allocation5 + $0xa8] sm:$0xf]
    %v2821 = vld [vmem:[#allocation5 + $0xac] sm:$0xf]
    %v2822 = vld [vmem:[#allocation5 + $0xb0] sm:$0xf]
    %v2823 = vld [vmem:[#allocation5 + $0xb4] sm:$0xf]
    %v2824 = vld [vmem:[#allocation5 + $0xb8] sm:$0xf]
    %v2825 = vld [vmem:[#allocation5 + $0xbc] sm:$0xf]
    %v2826 = vld [vmem:[#allocation11 + $0x39] ss:$0 sm:$0xff]
    %v2827 = vpack.c.bf16 %v2809, %v2809
    %v2844 = vunpack.c.l.b16 %v2810
    %v2845 = vunpack.c.l.b16 %v2811
    %v2846 = vunpack.c.l.b16 %v2812
    %v2847 = vunpack.c.l.b16 %v2813
    %v2848 = vunpack.c.l.b16 %v2814
    %v2849 = vunpack.c.l.b16 %v2815
    %v2850 = vunpack.c.l.b16 %v2816
    %v2851 = vunpack.c.l.b16 %v2817
    %v2852 = vunpack.c.l.b16 %v2818
    %v2853 = vunpack.c.l.b16 %v2819
    %v2854 = vunpack.c.l.b16 %v2820
    %v2855 = vunpack.c.l.b16 %v2821
    %v2856 = vunpack.c.l.b16 %v2822
    %v2857 = vunpack.c.l.b16 %v2823
    %v2858 = vunpack.c.l.b16 %v2824
    %v2859 = vunpack.c.l.b16 %v2825
    %v2860 = vpack.c.b16 %v2845, %v2844
    %v2861 = vpack.c.b16 %v2847, %v2846
    %v2862 = vpack.c.b16 %v2849, %v2848
    %v2863 = vpack.c.b16 %v2851, %v2850
    %v2864 = vpack.c.b16 %v2853, %v2852
    %v2865 = vpack.c.b16 %v2855, %v2854
    %v2866 = vpack.c.b16 %v2857, %v2856
    %v2867 = vpack.c.b16 %v2859, %v2858
    %2876 = vmatprep.subr.bf16.mxu0 0
    %2877 = vmatpush1.bf16.msra.mxu0 %v2860
    %2878 = vmatprep.subr.bf16.mxu0 0
    %2879 = vmatpush1.bf16.msra.mxu0 %v2861
    %2880 = vmatprep.subr.bf16.mxu0 0
    %2881 = vmatpush1.bf16.msra.mxu0 %v2862
    %2882 = vmatprep.subr.bf16.mxu0 0
    %2883 = vmatpush1.bf16.msra.mxu0 %v2863
    %2884 = vmatprep.subr.bf16.mxu0 0
    %2885 = vmatpush1.bf16.msra.mxu0 %v2864
    %2886 = vmatprep.subr.bf16.mxu0 0
    %2887 = vmatpush1.bf16.msra.mxu0 %v2865
    %2888 = vmatprep.subr.bf16.mxu0 0
    %2889 = vmatpush1.bf16.msra.mxu0 %v2866
    %2890 = vmatprep.subr.bf16.mxu0 0
    %2891 = vmatpush1.bf16.msra.mxu0 %v2867
    %2892 = vmatprep.subr.bf16.mxu0 0
    %2893 = vmatpush1.bf16.msra.mxu0 0
    %2894 = vmatprep.subr.bf16.mxu0 0
    %2895 = vmatpush1.bf16.msra.mxu0 0
    %2896 = vmatprep.subr.bf16.mxu0 0
    %2897 = vmatpush1.bf16.msra.mxu0 0
    %2898 = vmatprep.subr.bf16.mxu0 0
    %2899 = vmatpush1.bf16.msra.mxu0 0
    %2900 = vmatprep.subr.bf16.mxu0 0
    %2901 = vmatpush1.bf16.msra.mxu0 0
    %2902 = vmatprep.subr.bf16.mxu0 0
    %2903 = vmatpush1.bf16.msra.mxu0 0
    %2904 = vmatprep.subr.bf16.mxu0 0
    %2905 = vmatpush1.bf16.msra.mxu0 0
    %2906 = vmatprep.subr.bf16.mxu0 0
    %2907 = vmatpush1.bf16.msra.mxu0 0
    %2908 = vmatprep.mubr.bf16.mxu0 0
    %2909 = vmatmul.mubr.bf16.gmra.mrb[0].mxu0 %v2827
    %v2910 = vpop.f32.mrb[0].mxu0
    %v2911 = vadd.f32 %v2826, %v2910
    %v2912 = vpop.f32.mrb[0].mxu0
    %v2913 = vpop.f32.mrb[0].mxu0
    %v2914 = vpop.f32.mrb[0].mxu0
    %2915 = vdwg.mxu0
    %v2916 = vmax.f32 %v2911, 0.0
    %v2917 = vld [vmem:[#allocation11 + $0x3a] ss:$0 sm:$0xff]
    %v2918 = vld [vmem:[#allocation11 + $0x3b] ss:$0 sm:$0xff]
    %v2919 = vrot.slane %v2916, 4
    %v2920 = vadd.f32 %v2916, %v2919
    %v2921 = vrot.slane %v2920, 2
    %v2922 = vadd.f32 %v2920, %v2921
    %v2923 = vrot.slane %v2922, 1
    %v2924 = vadd.f32 %v2922, %v2923
    %v2925 = vmul.f32 %v2924, %v1845
    %v2926 = vmul.f32 %v2916, %v2916
    %v2927 = vrot.slane %v2926, 4
    %v2928 = vadd.f32 %v2926, %v2927
    %v2929 = vrot.slane %v2928, 2
    %v2930 = vadd.f32 %v2928, %v2929
    %v2931 = vrot.slane %v2930, 1
    %v2932 = vadd.f32 %v2930, %v2931
    %v2933 = vmul.f32 %v2932, %v1845
    %v2934 = vmul.f32 %v2925, %v2925
    %v2935 = vsub.f32 %v2933, %v2934
    %v2936 = vmax.f32 %v2935, 0.0
    %v2937 = vadd.f32 %v2936, 1e-05
    %v2938 = vrsqrt.pop %v2937
    %v2939 = vmul.f32 %v2917, %v2938
    %v2940 = vmul.f32 %v2925, %v2939
    %v2941 = vsub.f32 %v2918, %v2940
    %v2942 = vmul.f32 %v2916, %v2939
    %v2943 = vadd.f32 %v2942, %v2941
    %v2944 = vld [vmem:[#allocation5 + $0xc0] sm:$0xf]
    %v2945 = vld [vmem:[#allocation5 + $0xc4] sm:$0xf]
    %v2946 = vld [vmem:[#allocation5 + $0xc8] sm:$0xf]
    %v2947 = vld [vmem:[#allocation5 + $0xcc] sm:$0xf]
    %v2948 = vld [vmem:[#allocation5 + $0xd0] sm:$0xf]
    %v2949 = vld [vmem:[#allocation5 + $0xd4] sm:$0xf]
    %v2950 = vld [vmem:[#allocation5 + $0xd8] sm:$0xf]
    %v2951 = vld [vmem:[#allocation5 + $0xdc] sm:$0xf]
    %v2952 = vld [vmem:[#allocation5 + $0xe0] sm:$0xf]
    %v2953 = vld [vmem:[#allocation5 + $0xe4] sm:$0xf]
    %v2954 = vld [vmem:[#allocation5 + $0xe8] sm:$0xf]
    %v2955 = vld [vmem:[#allocation5 + $0xec] sm:$0xf]
    %v2956 = vld [vmem:[#allocation5 + $0xf0] sm:$0xf]
    %v2957 = vld [vmem:[#allocation5 + $0xf4] sm:$0xf]
    %v2958 = vld [vmem:[#allocation5 + $0xf8] sm:$0xf]
    %v2959 = vld [vmem:[#allocation5 + $0xfc] sm:$0xf]
    %v2960 = vld [vmem:[#allocation11 + $0x3c] ss:$0 sm:$0xff]
    %v2961 = vpack.c.bf16 %v2943, %v2943
    %v2978 = vunpack.c.l.b16 %v2944
    %v2979 = vunpack.c.l.b16 %v2945
    %v2980 = vunpack.c.l.b16 %v2946
    %v2981 = vunpack.c.l.b16 %v2947
    %v2982 = vunpack.c.l.b16 %v2948
    %v2983 = vunpack.c.l.b16 %v2949
    %v2984 = vunpack.c.l.b16 %v2950
    %v2985 = vunpack.c.l.b16 %v2951
    %v2986 = vunpack.c.l.b16 %v2952
    %v2987 = vunpack.c.l.b16 %v2953
    %v2988 = vunpack.c.l.b16 %v2954
    %v2989 = vunpack.c.l.b16 %v2955
    %v2990 = vunpack.c.l.b16 %v2956
    %v2991 = vunpack.c.l.b16 %v2957
    %v2992 = vunpack.c.l.b16 %v2958
    %v2993 = vunpack.c.l.b16 %v2959
    %v2994 = vpack.c.b16 %v2979, %v2978
    %v2995 = vpack.c.b16 %v2981, %v2980
    %v2996 = vpack.c.b16 %v2983, %v2982
    %v2997 = vpack.c.b16 %v2985, %v2984
    %v2998 = vpack.c.b16 %v2987, %v2986
    %v2999 = vpack.c.b16 %v2989, %v2988
    %v3000 = vpack.c.b16 %v2991, %v2990
    %v3001 = vpack.c.b16 %v2993, %v2992
    %3010 = vmatprep.subr.bf16.mxu0 0
    %3011 = vmatpush1.bf16.msra.mxu0 %v2994
    %3012 = vmatprep.subr.bf16.mxu0 0
    %3013 = vmatpush1.bf16.msra.mxu0 %v2995
    %3014 = vmatprep.subr.bf16.mxu0 0
    %3015 = vmatpush1.bf16.msra.mxu0 %v2996
    %3016 = vmatprep.subr.bf16.mxu0 0
    %3017 = vmatpush1.bf16.msra.mxu0 %v2997
    %3018 = vmatprep.subr.bf16.mxu0 0
    %3019 = vmatpush1.bf16.msra.mxu0 %v2998
    %3020 = vmatprep.subr.bf16.mxu0 0
    %3021 = vmatpush1.bf16.msra.mxu0 %v2999
    %3022 = vmatprep.subr.bf16.mxu0 0
    %3023 = vmatpush1.bf16.msra.mxu0 %v3000
    %3024 = vmatprep.subr.bf16.mxu0 0
    %3025 = vmatpush1.bf16.msra.mxu0 %v3001
    %3026 = vmatprep.subr.bf16.mxu0 0
    %3027 = vmatpush1.bf16.msra.mxu0 0
    %3028 = vmatprep.subr.bf16.mxu0 0
    %3029 = vmatpush1.bf16.msra.mxu0 0
    %3030 = vmatprep.subr.bf16.mxu0 0
    %3031 = vmatpush1.bf16.msra.mxu0 0
    %3032 = vmatprep.subr.bf16.mxu0 0
    %3033 = vmatpush1.bf16.msra.mxu0 0
    %3034 = vmatprep.subr.bf16.mxu0 0
    %3035 = vmatpush1.bf16.msra.mxu0 0
    %3036 = vmatprep.subr.bf16.mxu0 0
    %3037 = vmatpush1.bf16.msra.mxu0 0
    %3038 = vmatprep.subr.bf16.mxu0 0
    %3039 = vmatpush1.bf16.msra.mxu0 0
    %3040 = vmatprep.subr.bf16.mxu0 0
    %3041 = vmatpush1.bf16.msra.mxu0 0
    %3042 = vmatprep.mubr.bf16.mxu0 0
    %3043 = vmatmul.mubr.bf16.gmra.mrb[0].mxu0 %v2961
    %v3044 = vpop.f32.mrb[0].mxu0
    %v3045 = vadd.f32 %v2960, %v3044
    %v3046 = vpop.f32.mrb[0].mxu0
    %v3047 = vpop.f32.mrb[0].mxu0
    %v3048 = vpop.f32.mrb[0].mxu0
    %3049 = vdwg.mxu0
    %v3050 = vmax.f32 %v3045, 0.0
    %v3051 = vld [vmem:[#allocation11 + $0x3d] ss:$0 sm:$0xff]
    %v3052 = vld [vmem:[#allocation11 + $0x3e] ss:$0 sm:$0xff]
    %v3053 = vrot.slane %v3050, 4
    %v3054 = vadd.f32 %v3050, %v3053
    %v3055 = vrot.slane %v3054, 2
    %v3056 = vadd.f32 %v3054, %v3055
    %v3057 = vrot.slane %v3056, 1
    %v3058 = vadd.f32 %v3056, %v3057
    %v3059 = vmul.f32 %v3058, %v1845
    %v3060 = vmul.f32 %v3050, %v3050
    %v3061 = vrot.slane %v3060, 4
    %v3062 = vadd.f32 %v3060, %v3061
    %v3063 = vrot.slane %v3062, 2
    %v3064 = vadd.f32 %v3062, %v3063
    %v3065 = vrot.slane %v3064, 1
    %v3066 = vadd.f32 %v3064, %v3065
    %v3067 = vmul.f32 %v3066, %v1845
    %v3068 = vmul.f32 %v3059, %v3059
    %v3069 = vsub.f32 %v3067, %v3068
    %v3070 = vmax.f32 %v3069, 0.0
    %v3071 = vadd.f32 %v3070, 1e-05
    %v3072 = vrsqrt.pop %v3071
    %v3073 = vmul.f32 %v3051, %v3072
    %v3074 = vmul.f32 %v3059, %v3073
    %v3075 = vsub.f32 %v3052, %v3074
    %v3076 = vmul.f32 %v3050, %v3073
    %v3077 = vadd.f32 %v3076, %v3075
    %v3078 = vld [vmem:[#allocation5 + $0x100] sm:$0xf]
    %v3079 = vld [vmem:[#allocation5 + $0x104] sm:$0xf]
    %v3080 = vld [vmem:[#allocation5 + $0x108] sm:$0xf]
    %v3081 = vld [vmem:[#allocation5 + $0x10c] sm:$0xf]
    %v3082 = vld [vmem:[#allocation5 + $0x110] sm:$0xf]
    %v3083 = vld [vmem:[#allocation5 + $0x114] sm:$0xf]
    %v3084 = vld [vmem:[#allocation5 + $0x118] sm:$0xf]
    %v3085 = vld [vmem:[#allocation5 + $0x11c] sm:$0xf]
    %v3086 = vld [vmem:[#allocation5 + $0x120] sm:$0xf]
    %v3087 = vld [vmem:[#allocation5 + $0x124] sm:$0xf]
    %v3088 = vld [vmem:[#allocation5 + $0x128] sm:$0xf]
    %v3089 = vld [vmem:[#allocation5 + $0x12c] sm:$0xf]
    %v3090 = vld [vmem:[#allocation5 + $0x130] sm:$0xf]
    %v3091 = vld [vmem:[#allocation5 + $0x134] sm:$0xf]
    %v3092 = vld [vmem:[#allocation5 + $0x138] sm:$0xf]
    %v3093 = vld [vmem:[#allocation5 + $0x13c] sm:$0xf]
    %v3094 = vld [vmem:[#allocation11 + $0x3f] ss:$0 sm:$0xff]
    %v3095 = vpack.c.bf16 %v3077, %v3077
    %v3112 = vunpack.c.l.b16 %v3078
    %v3113 = vunpack.c.l.b16 %v3079
    %v3114 = vunpack.c.l.b16 %v3080
    %v3115 = vunpack.c.l.b16 %v3081
    %v3116 = vunpack.c.l.b16 %v3082
    %v3117 = vunpack.c.l.b16 %v3083
    %v3118 = vunpack.c.l.b16 %v3084
    %v3119 = vunpack.c.l.b16 %v3085
    %v3120 = vunpack.c.l.b16 %v3086
    %v3121 = vunpack.c.l.b16 %v3087
    %v3122 = vunpack.c.l.b16 %v3088
    %v3123 = vunpack.c.l.b16 %v3089
    %v3124 = vunpack.c.l.b16 %v3090
    %v3125 = vunpack.c.l.b16 %v3091
    %v3126 = vunpack.c.l.b16 %v3092
    %v3127 = vunpack.c.l.b16 %v3093
    %v3128 = vpack.c.b16 %v3113, %v3112
    %v3129 = vpack.c.b16 %v3115, %v3114
    %v3130 = vpack.c.b16 %v3117, %v3116
    %v3131 = vpack.c.b16 %v3119, %v3118
    %v3132 = vpack.c.b16 %v3121, %v3120
    %v3133 = vpack.c.b16 %v3123, %v3122
    %v3134 = vpack.c.b16 %v3125, %v3124
    %v3135 = vpack.c.b16 %v3127, %v3126
    %3144 = vmatprep.subr.bf16.mxu0 0
    %3145 = vmatpush1.bf16.msra.mxu0 %v3128
    %3146 = vmatprep.subr.bf16.mxu0 0
    %3147 = vmatpush1.bf16.msra.mxu0 %v3129
    %3148 = vmatprep.subr.bf16.mxu0 0
    %3149 = vmatpush1.bf16.msra.mxu0 %v3130
    %3150 = vmatprep.subr.bf16.mxu0 0
    %3151 = vmatpush1.bf16.msra.mxu0 %v3131
    %3152 = vmatprep.subr.bf16.mxu0 0
    %3153 = vmatpush1.bf16.msra.mxu0 %v3132
    %3154 = vmatprep.subr.bf16.mxu0 0
    %3155 = vmatpush1.bf16.msra.mxu0 %v3133
    %3156 = vmatprep.subr.bf16.mxu0 0
    %3157 = vmatpush1.bf16.msra.mxu0 %v3134
    %3158 = vmatprep.subr.bf16.mxu0 0
    %3159 = vmatpush1.bf16.msra.mxu0 %v3135
    %3160 = vmatprep.subr.bf16.mxu0 0
    %3161 = vmatpush1.bf16.msra.mxu0 0
    %3162 = vmatprep.subr.bf16.mxu0 0
    %3163 = vmatpush1.bf16.msra.mxu0 0
    %3164 = vmatprep.subr.bf16.mxu0 0
    %3165 = vmatpush1.bf16.msra.mxu0 0
    %3166 = vmatprep.subr.bf16.mxu0 0
    %3167 = vmatpush1.bf16.msra.mxu0 0
    %3168 = vmatprep.subr.bf16.mxu0 0
    %3169 = vmatpush1.bf16.msra.mxu0 0
    %3170 = vmatprep.subr.bf16.mxu0 0
    %3171 = vmatpush1.bf16.msra.mxu0 0
    %3172 = vmatprep.subr.bf16.mxu0 0
    %3173 = vmatpush1.bf16.msra.mxu0 0
    %3174 = vmatprep.subr.bf16.mxu0 0
    %3175 = vmatpush1.bf16.msra.mxu0 0
    %3176 = vmatprep.mubr.bf16.mxu0 0
    %3177 = vmatmul.mubr.bf16.gmra.mrb[0].mxu0 %v3095
    %v3178 = vpop.f32.mrb[0].mxu0
    %v3179 = vadd.f32 %v3094, %v3178
    %v3180 = vpop.f32.mrb[0].mxu0
    %v3181 = vpop.f32.mrb[0].mxu0
    %v3182 = vpop.f32.mrb[0].mxu0
    %3183 = vdwg.mxu0
    %v3184 = vmax.f32 %v3179, 0.0
    %v3185 = vld [vmem:[#allocation11 + $0x70] ss:$0 sm:$0xff]
    %v3186 = vld [vmem:[#allocation11 + $0x71] ss:$0 sm:$0xff]
    %v3187 = vrot.slane %v3184, 4
    %v3188 = vadd.f32 %v3184, %v3187
    %v3189 = vrot.slane %v3188, 2
    %v3190 = vadd.f32 %v3188, %v3189
    %v3191 = vrot.slane %v3190, 1
    %v3192 = vadd.f32 %v3190, %v3191
    %v3193 = vmul.f32 %v3192, %v1845
    %v3194 = vmul.f32 %v3184, %v3184
    %v3195 = vrot.slane %v3194, 4
    %v3196 = vadd.f32 %v3194, %v3195
    %v3197 = vrot.slane %v3196, 2
    %v3198 = vadd.f32 %v3196, %v3197
    %v3199 = vrot.slane %v3198, 1
    %v3200 = vadd.f32 %v3198, %v3199
    %v3201 = vmul.f32 %v3200, %v1845
    %v3202 = vmul.f32 %v3193, %v3193
    %v3203 = vsub.f32 %v3201, %v3202
    %v3204 = vmax.f32 %v3203, 0.0
    %v3205 = vadd.f32 %v3204, 1e-05
    %v3206 = vrsqrt.pop %v3205
    %v3207 = vmul.f32 %v3185, %v3206
    %v3208 = vmul.f32 %v3193, %v3207
    %v3209 = vsub.f32 %v3186, %v3208
    %v3210 = vmul.f32 %v3184, %v3207
    %v3211 = vadd.f32 %v3210, %v3209
    %v3212 = vld [vmem:[#allocation5 + $0x140] sm:$0xf]
    %v3213 = vld [vmem:[#allocation5 + $0x144] sm:$0xf]
    %v3214 = vld [vmem:[#allocation5 + $0x148] sm:$0xf]
    %v3215 = vld [vmem:[#allocation5 + $0x14c] sm:$0xf]
    %v3216 = vld [vmem:[#allocation5 + $0x150] sm:$0xf]
    %v3217 = vld [vmem:[#allocation5 + $0x154] sm:$0xf]
    %v3218 = vld [vmem:[#allocation5 + $0x158] sm:$0xf]
    %v3219 = vld [vmem:[#allocation5 + $0x15c] sm:$0xf]
    %v3220 = vld [vmem:[#allocation5 + $0x160] sm:$0xf]
    %v3221 = vld [vmem:[#allocation5 + $0x164] sm:$0xf]
    %v3222 = vld [vmem:[#allocation5 + $0x168] sm:$0xf]
    %v3223 = vld [vmem:[#allocation5 + $0x16c] sm:$0xf]
    %v3224 = vld [vmem:[#allocation5 + $0x170] sm:$0xf]
    %v3225 = vld [vmem:[#allocation5 + $0x174] sm:$0xf]
    %v3226 = vld [vmem:[#allocation5 + $0x178] sm:$0xf]
    %v3227 = vld [vmem:[#allocation5 + $0x17c] sm:$0xf]
    %v3228 = vld [vmem:[#allocation11 + $0x72] ss:$0 sm:$0xff]
    %v3229 = vpack.c.bf16 %v3211, %v3211
    %v3246 = vunpack.c.l.b16 %v3212
    %v3247 = vunpack.c.l.b16 %v3213
    %v3248 = vunpack.c.l.b16 %v3214
    %v3249 = vunpack.c.l.b16 %v3215
    %v3250 = vunpack.c.l.b16 %v3216
    %v3251 = vunpack.c.l.b16 %v3217
    %v3252 = vunpack.c.l.b16 %v3218
    %v3253 = vunpack.c.l.b16 %v3219
    %v3254 = vunpack.c.l.b16 %v3220
    %v3255 = vunpack.c.l.b16 %v3221
    %v3256 = vunpack.c.l.b16 %v3222
    %v3257 = vunpack.c.l.b16 %v3223
    %v3258 = vunpack.c.l.b16 %v3224
    %v3259 = vunpack.c.l.b16 %v3225
    %v3260 = vunpack.c.l.b16 %v3226
    %v3261 = vunpack.c.l.b16 %v3227
    %v3262 = vpack.c.b16 %v3247, %v3246
    %v3263 = vpack.c.b16 %v3249, %v3248
    %v3264 = vpack.c.b16 %v3251, %v3250
    %v3265 = vpack.c.b16 %v3253, %v3252
    %v3266 = vpack.c.b16 %v3255, %v3254
    %v3267 = vpack.c.b16 %v3257, %v3256
    %v3268 = vpack.c.b16 %v3259, %v3258
    %v3269 = vpack.c.b16 %v3261, %v3260
    %3278 = vmatprep.subr.bf16.mxu0 0
    %3279 = vmatpush1.bf16.msra.mxu0 %v3262
    %3280 = vmatprep.subr.bf16.mxu0 0
    %3281 = vmatpush1.bf16.msra.mxu0 %v3263
    %3282 = vmatprep.subr.bf16.mxu0 0
    %3283 = vmatpush1.bf16.msra.mxu0 %v3264
    %3284 = vmatprep.subr.bf16.mxu0 0
    %3285 = vmatpush1.bf16.msra.mxu0 %v3265
    %3286 = vmatprep.subr.bf16.mxu0 0
    %3287 = vmatpush1.bf16.msra.mxu0 %v3266
    %3288 = vmatprep.subr.bf16.mxu0 0
    %3289 = vmatpush1.bf16.msra.mxu0 %v3267
    %3290 = vmatprep.subr.bf16.mxu0 0
    %3291 = vmatpush1.bf16.msra.mxu0 %v3268
    %3292 = vmatprep.subr.bf16.mxu0 0
    %3293 = vmatpush1.bf16.msra.mxu0 %v3269
    %3294 = vmatprep.subr.bf16.mxu0 0
    %3295 = vmatpush1.bf16.msra.mxu0 0
    %3296 = vmatprep.subr.bf16.mxu0 0
    %3297 = vmatpush1.bf16.msra.mxu0 0
    %3298 = vmatprep.subr.bf16.mxu0 0
    %3299 = vmatpush1.bf16.msra.mxu0 0
    %3300 = vmatprep.subr.bf16.mxu0 0
    %3301 = vmatpush1.bf16.msra.mxu0 0
    %3302 = vmatprep.subr.bf16.mxu0 0
    %3303 = vmatpush1.bf16.msra.mxu0 0
    %3304 = vmatprep.subr.bf16.mxu0 0
    %3305 = vmatpush1.bf16.msra.mxu0 0
    %3306 = vmatprep.subr.bf16.mxu0 0
    %3307 = vmatpush1.bf16.msra.mxu0 0
    %3308 = vmatprep.subr.bf16.mxu0 0
    %3309 = vmatpush1.bf16.msra.mxu0 0
    %3310 = vmatprep.mubr.bf16.mxu0 0
    %3311 = vmatmul.mubr.bf16.gmra.mrb[0].mxu0 %v3229
    %v3312 = vpop.f32.mrb[0].mxu0
    %v3313 = vadd.f32 %v3228, %v3312
    %v3314 = vpop.f32.mrb[0].mxu0
    %v3315 = vpop.f32.mrb[0].mxu0
    %v3316 = vpop.f32.mrb[0].mxu0
    %3317 = vdwg.mxu0
    %v3318 = vld [vmem:[#allocation5 + $0x180] sm:$0xf]
    %v3319 = vld [vmem:[#allocation5 + $0x184] sm:$0xf]
    %v3320 = vld [vmem:[#allocation5 + $0x188] sm:$0xf]
    %v3321 = vld [vmem:[#allocation5 + $0x18c] sm:$0xf]
    %v3322 = vld [vmem:[#allocation5 + $0x190] sm:$0xf]
    %v3323 = vld [vmem:[#allocation5 + $0x194] sm:$0xf]
    %v3324 = vld [vmem:[#allocation5 + $0x198] sm:$0xf]
    %v3325 = vld [vmem:[#allocation5 + $0x19c] sm:$0xf]
    %v3326 = vld [vmem:[#allocation5 + $0x1a0] sm:$0xf]
    %v3327 = vld [vmem:[#allocation5 + $0x1a4] sm:$0xf]
    %v3328 = vld [vmem:[#allocation5 + $0x1a8] sm:$0xf]
    %v3329 = vld [vmem:[#allocation5 + $0x1ac] sm:$0xf]
    %v3330 = vld [vmem:[#allocation5 + $0x1b0] sm:$0xf]
    %v3331 = vld [vmem:[#allocation5 + $0x1b4] sm:$0xf]
    %v3332 = vld [vmem:[#allocation5 + $0x1b8] sm:$0xf]
    %v3333 = vld [vmem:[#allocation5 + $0x1bc] sm:$0xf]
    %v3334 = vld [vmem:[#allocation11 + $0x75] ss:$0 sm:$0xff]
    %v3335 = vpack.c.bf16 %v3313, %v3313
    %v3352 = vunpack.c.l.b16 %v3318
    %v3353 = vunpack.c.l.b16 %v3319
    %v3354 = vunpack.c.l.b16 %v3320
    %v3355 = vunpack.c.l.b16 %v3321
    %v3356 = vunpack.c.l.b16 %v3322
    %v3357 = vunpack.c.l.b16 %v3323
    %v3358 = vunpack.c.l.b16 %v3324
    %v3359 = vunpack.c.l.b16 %v3325
    %v3360 = vunpack.c.l.b16 %v3326
    %v3361 = vunpack.c.l.b16 %v3327
    %v3362 = vunpack.c.l.b16 %v3328
    %v3363 = vunpack.c.l.b16 %v3329
    %v3364 = vunpack.c.l.b16 %v3330
    %v3365 = vunpack.c.l.b16 %v3331
    %v3366 = vunpack.c.l.b16 %v3332
    %v3367 = vunpack.c.l.b16 %v3333
    %v3368 = vpack.c.b16 %v3353, %v3352
    %v3369 = vpack.c.b16 %v3355, %v3354
    %v3370 = vpack.c.b16 %v3357, %v3356
    %v3371 = vpack.c.b16 %v3359, %v3358
    %v3372 = vpack.c.b16 %v3361, %v3360
    %v3373 = vpack.c.b16 %v3363, %v3362
    %v3374 = vpack.c.b16 %v3365, %v3364
    %v3375 = vpack.c.b16 %v3367, %v3366
    %3384 = vmatprep.subr.bf16.mxu0 0
    %3385 = vmatpush1.bf16.msra.mxu0 %v3368
    %3386 = vmatprep.subr.bf16.mxu0 0
    %3387 = vmatpush1.bf16.msra.mxu0 %v3369
    %3388 = vmatprep.subr.bf16.mxu0 0
    %3389 = vmatpush1.bf16.msra.mxu0 %v3370
    %3390 = vmatprep.subr.bf16.mxu0 0
    %3391 = vmatpush1.bf16.msra.mxu0 %v3371
    %3392 = vmatprep.subr.bf16.mxu0 0
    %3393 = vmatpush1.bf16.msra.mxu0 %v3372
    %3394 = vmatprep.subr.bf16.mxu0 0
    %3395 = vmatpush1.bf16.msra.mxu0 %v3373
    %3396 = vmatprep.subr.bf16.mxu0 0
    %3397 = vmatpush1.bf16.msra.mxu0 %v3374
    %3398 = vmatprep.subr.bf16.mxu0 0
    %3399 = vmatpush1.bf16.msra.mxu0 %v3375
    %3400 = vmatprep.subr.bf16.mxu0 0
    %3401 = vmatpush1.bf16.msra.mxu0 0
    %3402 = vmatprep.subr.bf16.mxu0 0
    %3403 = vmatpush1.bf16.msra.mxu0 0
    %3404 = vmatprep.subr.bf16.mxu0 0
    %3405 = vmatpush1.bf16.msra.mxu0 0
    %3406 = vmatprep.subr.bf16.mxu0 0
    %3407 = vmatpush1.bf16.msra.mxu0 0
    %3408 = vmatprep.subr.bf16.mxu0 0
    %3409 = vmatpush1.bf16.msra.mxu0 0
    %3410 = vmatprep.subr.bf16.mxu0 0
    %3411 = vmatpush1.bf16.msra.mxu0 0
    %3412 = vmatprep.subr.bf16.mxu0 0
    %3413 = vmatpush1.bf16.msra.mxu0 0
    %3414 = vmatprep.subr.bf16.mxu0 0
    %3415 = vmatpush1.bf16.msra.mxu0 0
    %3416 = vmatprep.mubr.bf16.mxu0 0
    %3417 = vmatmul.mubr.bf16.gmra.mrb[0].mxu0 %v3335
    %v3418 = vpop.f32.mrb[0].mxu0
    %v3419 = vadd.f32 %v3334, %v3418
    %v3420 = vpop.f32.mrb[0].mxu0
    %v3421 = vpop.f32.mrb[0].mxu0
    %v3422 = vpop.f32.mrb[0].mxu0
    %3423 = vdwg.mxu0
    %v3424 = vmax.f32 %v3419, 0.0
    %v3425 = vld [vmem:[#allocation11 + $0x76] ss:$0 sm:$0xff]
    %v3426 = vld [vmem:[#allocation11 + $0x77] ss:$0 sm:$0xff]
    %v3427 = vrot.slane %v3424, 4
    %v3428 = vadd.f32 %v3424, %v3427
    %v3429 = vrot.slane %v3428, 2
    %v3430 = vadd.f32 %v3428, %v3429
    %v3431 = vrot.slane %v3430, 1
    %v3432 = vadd.f32 %v3430, %v3431
    %v3433 = vmul.f32 %v3432, %v1845
    %v3434 = vmul.f32 %v3424, %v3424
    %v3435 = vrot.slane %v3434, 4
    %v3436 = vadd.f32 %v3434, %v3435
    %v3437 = vrot.slane %v3436, 2
    %v3438 = vadd.f32 %v3436, %v3437
    %v3439 = vrot.slane %v3438, 1
    %v3440 = vadd.f32 %v3438, %v3439
    %v3441 = vmul.f32 %v3440, %v1845
    %v3442 = vmul.f32 %v3433, %v3433
    %v3443 = vsub.f32 %v3441, %v3442
    %v3444 = vmax.f32 %v3443, 0.0
    %v3445 = vadd.f32 %v3444, 1e-05
    %v3446 = vrsqrt.pop %v3445
    %v3447 = vmul.f32 %v3425, %v3446
    %v3448 = vmul.f32 %v3433, %v3447
    %v3449 = vsub.f32 %v3426, %v3448
    %v3450 = vmul.f32 %v3424, %v3447
    %v3451 = vadd.f32 %v3450, %v3449
    %v3452 = vld [vmem:[#allocation5 + $0x1c0] sm:$0xf]
    %v3453 = vld [vmem:[#allocation5 + $0x1c4] sm:$0xf]
    %v3454 = vld [vmem:[#allocation5 + $0x1c8] sm:$0xf]
    %v3455 = vld [vmem:[#allocation5 + $0x1cc] sm:$0xf]
    %v3456 = vld [vmem:[#allocation5 + $0x1d0] sm:$0xf]
    %v3457 = vld [vmem:[#allocation5 + $0x1d4] sm:$0xf]
    %v3458 = vld [vmem:[#allocation5 + $0x1d8] sm:$0xf]
    %v3459 = vld [vmem:[#allocation5 + $0x1dc] sm:$0xf]
    %v3460 = vld [vmem:[#allocation5 + $0x1e0] sm:$0xf]
    %v3461 = vld [vmem:[#allocation5 + $0x1e4] sm:$0xf]
    %v3462 = vld [vmem:[#allocation5 + $0x1e8] sm:$0xf]
    %v3463 = vld [vmem:[#allocation5 + $0x1ec] sm:$0xf]
    %v3464 = vld [vmem:[#allocation5 + $0x1f0] sm:$0xf]
    %v3465 = vld [vmem:[#allocation5 + $0x1f4] sm:$0xf]
    %v3466 = vld [vmem:[#allocation5 + $0x1f8] sm:$0xf]
    %v3467 = vld [vmem:[#allocation5 + $0x1fc] sm:$0xf]
    %v3468 = vld [vmem:[#allocation11 + $0xa8] ss:$0 sm:$0xff]
    %v3469 = vpack.c.bf16 %v3451, %v3451
    %v3486 = vunpack.c.l.b16 %v3452
    %v3487 = vunpack.c.l.b16 %v3453
    %v3488 = vunpack.c.l.b16 %v3454
    %v3489 = vunpack.c.l.b16 %v3455
    %v3490 = vunpack.c.l.b16 %v3456
    %v3491 = vunpack.c.l.b16 %v3457
    %v3492 = vunpack.c.l.b16 %v3458
    %v3493 = vunpack.c.l.b16 %v3459
    %v3494 = vunpack.c.l.b16 %v3460
    %v3495 = vunpack.c.l.b16 %v3461
    %v3496 = vunpack.c.l.b16 %v3462
    %v3497 = vunpack.c.l.b16 %v3463
    %v3498 = vunpack.c.l.b16 %v3464
    %v3499 = vunpack.c.l.b16 %v3465
    %v3500 = vunpack.c.l.b16 %v3466
    %v3501 = vunpack.c.l.b16 %v3467
    %v3502 = vpack.c.b16 %v3487, %v3486
    %v3503 = vpack.c.b16 %v3489, %v3488
    %v3504 = vpack.c.b16 %v3491, %v3490
    %v3505 = vpack.c.b16 %v3493, %v3492
    %v3506 = vpack.c.b16 %v3495, %v3494
    %v3507 = vpack.c.b16 %v3497, %v3496
    %v3508 = vpack.c.b16 %v3499, %v3498
    %v3509 = vpack.c.b16 %v3501, %v3500
    %3518 = vmatprep.subr.bf16.mxu0 0
    %3519 = vmatpush1.bf16.msra.mxu0 %v3502
    %3520 = vmatprep.subr.bf16.mxu0 0
    %3521 = vmatpush1.bf16.msra.mxu0 %v3503
    %3522 = vmatprep.subr.bf16.mxu0 0
    %3523 = vmatpush1.bf16.msra.mxu0 %v3504
    %3524 = vmatprep.subr.bf16.mxu0 0
    %3525 = vmatpush1.bf16.msra.mxu0 %v3505
    %3526 = vmatprep.subr.bf16.mxu0 0
    %3527 = vmatpush1.bf16.msra.mxu0 %v3506
    %3528 = vmatprep.subr.bf16.mxu0 0
    %3529 = vmatpush1.bf16.msra.mxu0 %v3507
    %3530 = vmatprep.subr.bf16.mxu0 0
    %3531 = vmatpush1.bf16.msra.mxu0 %v3508
    %3532 = vmatprep.subr.bf16.mxu0 0
    %3533 = vmatpush1.bf16.msra.mxu0 %v3509
    %3534 = vmatprep.subr.bf16.mxu0 0
    %3535 = vmatpush1.bf16.msra.mxu0 0
    %3536 = vmatprep.subr.bf16.mxu0 0
    %3537 = vmatpush1.bf16.msra.mxu0 0
    %3538 = vmatprep.subr.bf16.mxu0 0
    %3539 = vmatpush1.bf16.msra.mxu0 0
    %3540 = vmatprep.subr.bf16.mxu0 0
    %3541 = vmatpush1.bf16.msra.mxu0 0
    %3542 = vmatprep.subr.bf16.mxu0 0
    %3543 = vmatpush1.bf16.msra.mxu0 0
    %3544 = vmatprep.subr.bf16.mxu0 0
    %3545 = vmatpush1.bf16.msra.mxu0 0
    %3546 = vmatprep.subr.bf16.mxu0 0
    %3547 = vmatpush1.bf16.msra.mxu0 0
    %3548 = vmatprep.subr.bf16.mxu0 0
    %3549 = vmatpush1.bf16.msra.mxu0 0
    %3550 = vmatprep.mubr.bf16.mxu0 0
    %3551 = vmatmul.mubr.bf16.gmra.mrb[0].mxu0 %v3469
    %v3552 = vpop.f32.mrb[0].mxu0
    %v3553 = vadd.f32 %v3468, %v3552
    %v3554 = vpop.f32.mrb[0].mxu0
    %v3555 = vpop.f32.mrb[0].mxu0
    %v3556 = vpop.f32.mrb[0].mxu0
    %3557 = vdwg.mxu0
    %v3558 = vmax.f32 %v3553, 0.0
    %v3559 = vld [vmem:[#allocation11 + $0xa9] ss:$0 sm:$0xff]
    %v3560 = vld [vmem:[#allocation11 + $0xaa] ss:$0 sm:$0xff]
    %v3561 = vrot.slane %v3558, 4
    %v3562 = vadd.f32 %v3558, %v3561
    %v3563 = vrot.slane %v3562, 2
    %v3564 = vadd.f32 %v3562, %v3563
    %v3565 = vrot.slane %v3564, 1
    %v3566 = vadd.f32 %v3564, %v3565
    %v3567 = vmul.f32 %v3566, %v1845
    %v3568 = vmul.f32 %v3558, %v3558
    %v3569 = vrot.slane %v3568, 4
    %v3570 = vadd.f32 %v3568, %v3569
    %v3571 = vrot.slane %v3570, 2
    %v3572 = vadd.f32 %v3570, %v3571
    %v3573 = vrot.slane %v3572, 1
    %v3574 = vadd.f32 %v3572, %v3573
    %v3575 = vmul.f32 %v3574, %v1845
    %v3576 = vmul.f32 %v3567, %v3567
    %v3577 = vsub.f32 %v3575, %v3576
    %v3578 = vmax.f32 %v3577, 0.0
    %v3579 = vadd.f32 %v3578, 1e-05
    %v3580 = vrsqrt.pop %v3579
    %v3581 = vmul.f32 %v3559, %v3580
    %v3582 = vmul.f32 %v3567, %v3581
    %v3583 = vsub.f32 %v3560, %v3582
    %v3584 = vmul.f32 %v3558, %v3581
    %v3585 = vadd.f32 %v3584, %v3583
    %v3586 = vld [vmem:[#allocation5 + $0x200] sm:$0xf]
    %v3587 = vld [vmem:[#allocation5 + $0x204] sm:$0xf]
    %v3588 = vld [vmem:[#allocation5 + $0x208] sm:$0xf]
    %v3589 = vld [vmem:[#allocation5 + $0x20c] sm:$0xf]
    %v3590 = vld [vmem:[#allocation5 + $0x210] sm:$0xf]
    %v3591 = vld [vmem:[#allocation5 + $0x214] sm:$0xf]
    %v3592 = vld [vmem:[#allocation5 + $0x218] sm:$0xf]
    %v3593 = vld [vmem:[#allocation5 + $0x21c] sm:$0xf]
    %v3594 = vld [vmem:[#allocation5 + $0x220] sm:$0xf]
    %v3595 = vld [vmem:[#allocation5 + $0x224] sm:$0xf]
    %v3596 = vld [vmem:[#allocation5 + $0x228] sm:$0xf]
    %v3597 = vld [vmem:[#allocation5 + $0x22c] sm:$0xf]
    %v3598 = vld [vmem:[#allocation5 + $0x230] sm:$0xf]
    %v3599 = vld [vmem:[#allocation5 + $0x234] sm:$0xf]
    %v3600 = vld [vmem:[#allocation5 + $0x238] sm:$0xf]
    %v3601 = vld [vmem:[#allocation5 + $0x23c] sm:$0xf]
    %v3602 = vld [vmem:[#allocation11 + $0xab] ss:$0 sm:$0xff]
    %v3603 = vpack.c.bf16 %v3585, %v3585
    %v3620 = vunpack.c.l.b16 %v3586
    %v3621 = vunpack.c.l.b16 %v3587
    %v3622 = vunpack.c.l.b16 %v3588
    %v3623 = vunpack.c.l.b16 %v3589
    %v3624 = vunpack.c.l.b16 %v3590
    %v3625 = vunpack.c.l.b16 %v3591
    %v3626 = vunpack.c.l.b16 %v3592
    %v3627 = vunpack.c.l.b16 %v3593
    %v3628 = vunpack.c.l.b16 %v3594
    %v3629 = vunpack.c.l.b16 %v3595
    %v3630 = vunpack.c.l.b16 %v3596
    %v3631 = vunpack.c.l.b16 %v3597
    %v3632 = vunpack.c.l.b16 %v3598
    %v3633 = vunpack.c.l.b16 %v3599
    %v3634 = vunpack.c.l.b16 %v3600
    %v3635 = vunpack.c.l.b16 %v3601
    %v3636 = vpack.c.b16 %v3621, %v3620
    %v3637 = vpack.c.b16 %v3623, %v3622
    %v3638 = vpack.c.b16 %v3625, %v3624
    %v3639 = vpack.c.b16 %v3627, %v3626
    %v3640 = vpack.c.b16 %v3629, %v3628
    %v3641 = vpack.c.b16 %v3631, %v3630
    %v3642 = vpack.c.b16 %v3633, %v3632
    %v3643 = vpack.c.b16 %v3635, %v3634
    %3652 = vmatprep.subr.bf16.mxu0 0
    %3653 = vmatpush1.bf16.msra.mxu0 %v3636
    %3654 = vmatprep.subr.bf16.mxu0 0
    %3655 = vmatpush1.bf16.msra.mxu0 %v3637
    %3656 = vmatprep.subr.bf16.mxu0 0
    %3657 = vmatpush1.bf16.msra.mxu0 %v3638
    %3658 = vmatprep.subr.bf16.mxu0 0
    %3659 = vmatpush1.bf16.msra.mxu0 %v3639
    %3660 = vmatprep.subr.bf16.mxu0 0
    %3661 = vmatpush1.bf16.msra.mxu0 %v3640
    %3662 = vmatprep.subr.bf16.mxu0 0
    %3663 = vmatpush1.bf16.msra.mxu0 %v3641
    %3664 = vmatprep.subr.bf16.mxu0 0
    %3665 = vmatpush1.bf16.msra.mxu0 %v3642
    %3666 = vmatprep.subr.bf16.mxu0 0
    %3667 = vmatpush1.bf16.msra.mxu0 %v3643
    %3668 = vmatprep.subr.bf16.mxu0 0
    %3669 = vmatpush1.bf16.msra.mxu0 0
    %3670 = vmatprep.subr.bf16.mxu0 0
    %3671 = vmatpush1.bf16.msra.mxu0 0
    %3672 = vmatprep.subr.bf16.mxu0 0
    %3673 = vmatpush1.bf16.msra.mxu0 0
    %3674 = vmatprep.subr.bf16.mxu0 0
    %3675 = vmatpush1.bf16.msra.mxu0 0
    %3676 = vmatprep.subr.bf16.mxu0 0
    %3677 = vmatpush1.bf16.msra.mxu0 0
    %3678 = vmatprep.subr.bf16.mxu0 0
    %3679 = vmatpush1.bf16.msra.mxu0 0
    %3680 = vmatprep.subr.bf16.mxu0 0
    %3681 = vmatpush1.bf16.msra.mxu0 0
    %3682 = vmatprep.subr.bf16.mxu0 0
    %3683 = vmatpush1.bf16.msra.mxu0 0
    %3684 = vmatprep.mubr.bf16.mxu0 0
    %3685 = vmatmul.mubr.bf16.gmra.mrb[0].mxu0 %v3603
    %v3686 = vpop.f32.mrb[0].mxu0
    %v3687 = vadd.f32 %v3602, %v3686
    %v3688 = vpop.f32.mrb[0].mxu0
    %v3689 = vpop.f32.mrb[0].mxu0
    %v3690 = vpop.f32.mrb[0].mxu0
    %3691 = vdwg.mxu0
    %v3692 = vmax.f32 %v3687, 0.0
    %v3693 = vld [vmem:[#allocation11 + $0xac] ss:$0 sm:$0xff]
    %v3694 = vld [vmem:[#allocation11 + $0xad] ss:$0 sm:$0xff]
    %v3695 = vrot.slane %v3692, 4
    %v3696 = vadd.f32 %v3692, %v3695
    %v3697 = vrot.slane %v3696, 2
    %v3698 = vadd.f32 %v3696, %v3697
    %v3699 = vrot.slane %v3698, 1
    %v3700 = vadd.f32 %v3698, %v3699
    %v3701 = vmul.f32 %v3700, %v1845
    %v3702 = vmul.f32 %v3692, %v3692
    %v3703 = vrot.slane %v3702, 4
    %v3704 = vadd.f32 %v3702, %v3703
    %v3705 = vrot.slane %v3704, 2
    %v3706 = vadd.f32 %v3704, %v3705
    %v3707 = vrot.slane %v3706, 1
    %v3708 = vadd.f32 %v3706, %v3707
    %v3709 = vmul.f32 %v3708, %v1845
    %v3710 = vmul.f32 %v3701, %v3701
    %v3711 = vsub.f32 %v3709, %v3710
    %v3712 = vmax.f32 %v3711, 0.0
    %v3713 = vadd.f32 %v3712, 1e-05
    %v3714 = vrsqrt.pop %v3713
    %v3715 = vmul.f32 %v3693, %v3714
    %v3716 = vmul.f32 %v3701, %v3715
    %v3717 = vsub.f32 %v3694, %v3716
    %v3718 = vmul.f32 %v3692, %v3715
    %v3719 = vadd.f32 %v3718, %v3717
    %v3720 = vld [vmem:[#allocation5 + $0x240] sm:$0xf]
    %v3721 = vld [vmem:[#allocation5 + $0x244] sm:$0xf]
    %v3722 = vld [vmem:[#allocation5 + $0x248] sm:$0xf]
    %v3723 = vld [vmem:[#allocation5 + $0x24c] sm:$0xf]
    %v3724 = vld [vmem:[#allocation5 + $0x250] sm:$0xf]
    %v3725 = vld [vmem:[#allocation5 + $0x254] sm:$0xf]
    %v3726 = vld [vmem:[#allocation5 + $0x258] sm:$0xf]
    %v3727 = vld [vmem:[#allocation5 + $0x25c] sm:$0xf]
    %v3728 = vld [vmem:[#allocation5 + $0x260] sm:$0xf]
    %v3729 = vld [vmem:[#allocation5 + $0x264] sm:$0xf]
    %v3730 = vld [vmem:[#allocation5 + $0x268] sm:$0xf]
    %v3731 = vld [vmem:[#allocation5 + $0x26c] sm:$0xf]
    %v3732 = vld [vmem:[#allocation5 + $0x270] sm:$0xf]
    %v3733 = vld [vmem:[#allocation5 + $0x274] sm:$0xf]
    %v3734 = vld [vmem:[#allocation5 + $0x278] sm:$0xf]
    %v3735 = vld [vmem:[#allocation5 + $0x27c] sm:$0xf]
    %v3736 = vld [vmem:[#allocation11 + $0xae] ss:$0 sm:$0xff]
    %v3737 = vpack.c.bf16 %v3719, %v3719
    %v3754 = vunpack.c.l.b16 %v3720
    %v3755 = vunpack.c.l.b16 %v3721
    %v3756 = vunpack.c.l.b16 %v3722
    %v3757 = vunpack.c.l.b16 %v3723
    %v3758 = vunpack.c.l.b16 %v3724
    %v3759 = vunpack.c.l.b16 %v3725
    %v3760 = vunpack.c.l.b16 %v3726
    %v3761 = vunpack.c.l.b16 %v3727
    %v3762 = vunpack.c.l.b16 %v3728
    %v3763 = vunpack.c.l.b16 %v3729
    %v3764 = vunpack.c.l.b16 %v3730
    %v3765 = vunpack.c.l.b16 %v3731
    %v3766 = vunpack.c.l.b16 %v3732
    %v3767 = vunpack.c.l.b16 %v3733
    %v3768 = vunpack.c.l.b16 %v3734
    %v3769 = vunpack.c.l.b16 %v3735
    %v3770 = vpack.c.b16 %v3755, %v3754
    %v3771 = vpack.c.b16 %v3757, %v3756
    %v3772 = vpack.c.b16 %v3759, %v3758
    %v3773 = vpack.c.b16 %v3761, %v3760
    %v3774 = vpack.c.b16 %v3763, %v3762
    %v3775 = vpack.c.b16 %v3765, %v3764
    %v3776 = vpack.c.b16 %v3767, %v3766
    %v3777 = vpack.c.b16 %v3769, %v3768
    %3786 = vmatprep.subr.bf16.mxu0 0
    %3787 = vmatpush1.bf16.msra.mxu0 %v3770
    %3788 = vmatprep.subr.bf16.mxu0 0
    %3789 = vmatpush1.bf16.msra.mxu0 %v3771
    %3790 = vmatprep.subr.bf16.mxu0 0
    %3791 = vmatpush1.bf16.msra.mxu0 %v3772
    %3792 = vmatprep.subr.bf16.mxu0 0
    %3793 = vmatpush1.bf16.msra.mxu0 %v3773
    %3794 = vmatprep.subr.bf16.mxu0 0
    %3795 = vmatpush1.bf16.msra.mxu0 %v3774
    %3796 = vmatprep.subr.bf16.mxu0 0
    %3797 = vmatpush1.bf16.msra.mxu0 %v3775
    %3798 = vmatprep.subr.bf16.mxu0 0
    %3799 = vmatpush1.bf16.msra.mxu0 %v3776
    %3800 = vmatprep.subr.bf16.mxu0 0
    %3801 = vmatpush1.bf16.msra.mxu0 %v3777
    %3802 = vmatprep.subr.bf16.mxu0 0
    %3803 = vmatpush1.bf16.msra.mxu0 0
    %3804 = vmatprep.subr.bf16.mxu0 0
    %3805 = vmatpush1.bf16.msra.mxu0 0
    %3806 = vmatprep.subr.bf16.mxu0 0
    %3807 = vmatpush1.bf16.msra.mxu0 0
    %3808 = vmatprep.subr.bf16.mxu0 0
    %3809 = vmatpush1.bf16.msra.mxu0 0
    %3810 = vmatprep.subr.bf16.mxu0 0
    %3811 = vmatpush1.bf16.msra.mxu0 0
    %3812 = vmatprep.subr.bf16.mxu0 0
    %3813 = vmatpush1.bf16.msra.mxu0 0
    %3814 = vmatprep.subr.bf16.mxu0 0
    %3815 = vmatpush1.bf16.msra.mxu0 0
    %3816 = vmatprep.subr.bf16.mxu0 0
    %3817 = vmatpush1.bf16.msra.mxu0 0
    %3818 = vmatprep.mubr.bf16.mxu0 0
    %3819 = vmatmul.mubr.bf16.gmra.mrb[0].mxu0 %v3737
    %v3820 = vpop.f32.mrb[0].mxu0
    %v3821 = vadd.f32 %v3736, %v3820
    %v3822 = vpop.f32.mrb[0].mxu0
    %v3823 = vpop.f32.mrb[0].mxu0
    %v3824 = vpop.f32.mrb[0].mxu0
    %3825 = vdwg.mxu0
    %v3826 = vmax.f32 %v3821, 0.0
    %v3827 = vld [vmem:[#allocation11 + $0xaf] ss:$0 sm:$0xff]
    %v3828 = vld [vmem:[#allocation11 + $0xe0] ss:$0 sm:$0xff]
    %v3829 = vrot.slane %v3826, 4
    %v3830 = vadd.f32 %v3826, %v3829
    %v3831 = vrot.slane %v3830, 2
    %v3832 = vadd.f32 %v3830, %v3831
    %v3833 = vrot.slane %v3832, 1
    %v3834 = vadd.f32 %v3832, %v3833
    %v3835 = vmul.f32 %v3834, %v1845
    %v3836 = vmul.f32 %v3826, %v3826
    %v3837 = vrot.slane %v3836, 4
    %v3838 = vadd.f32 %v3836, %v3837
    %v3839 = vrot.slane %v3838, 2
    %v3840 = vadd.f32 %v3838, %v3839
    %v3841 = vrot.slane %v3840, 1
    %v3842 = vadd.f32 %v3840, %v3841
    %v3843 = vmul.f32 %v3842, %v1845
    %v3844 = vmul.f32 %v3835, %v3835
    %v3845 = vsub.f32 %v3843, %v3844
    %v3846 = vmax.f32 %v3845, 0.0
    %v3847 = vadd.f32 %v3846, 1e-05
    %v3848 = vrsqrt.pop %v3847
    %v3849 = vmul.f32 %v3827, %v3848
    %v3850 = vmul.f32 %v3835, %v3849
    %v3851 = vsub.f32 %v3828, %v3850
    %v3852 = vmul.f32 %v3826, %v3849
    %v3853 = vadd.f32 %v3852, %v3851
    %v3854 = vld [vmem:[#allocation7 + $0x200] sm:$0xff]
    %v3855 = vld [vmem:[#allocation7 + $0x208] sm:$0xff]
    %v3856 = vld [vmem:[#allocation7 + $0x210] sm:$0xff]
    %v3857 = vld [vmem:[#allocation7 + $0x218] sm:$0xff]
    %v3858 = vld [vmem:[#allocation7 + $0x220] sm:$0xff]
    %v3859 = vld [vmem:[#allocation7 + $0x228] sm:$0xff]
    %v3860 = vld [vmem:[#allocation7 + $0x230] sm:$0xff]
    %v3861 = vld [vmem:[#allocation7 + $0x238] sm:$0xff]
    %v3862 = vld [vmem:[#allocation7 + $0x240] sm:$0xff]
    %v3863 = vld [vmem:[#allocation7 + $0x248] sm:$0xff]
    %v3864 = vld [vmem:[#allocation7 + $0x250] sm:$0xff]
    %v3865 = vld [vmem:[#allocation7 + $0x258] sm:$0xff]
    %v3866 = vld [vmem:[#allocation7 + $0x260] sm:$0xff]
    %v3867 = vld [vmem:[#allocation7 + $0x268] sm:$0xff]
    %v3868 = vld [vmem:[#allocation7 + $0x270] sm:$0xff]
    %v3869 = vld [vmem:[#allocation7 + $0x278] sm:$0xff]
    %s3870 = scalar_lea.vmem [#allocation11], 225
    %v3871 = vld [vmem:[%s3870] ss:$8 sm:$0x3]
    %v3872 = vpack.c.bf16 %v3853, %v3853
    %v3874 = vlaneseq
    %v3875 = vshrl.u32 %v3874, 7
    %v3876 = vsub.s32 0, %v3875
    %v3877 = vrot.slane %v3871, %v3876
    %v3878 = vlaneseq
    %v3879 = vshrl.u32 %v3878, 7
    %v3880 = vsub.s32 1, %v3879
    %v3881 = vrot.slane %v3871, %v3880
    %v3900 = vunpack.c.l.b16 %v3854
    %v3901 = vunpack.c.h.b16 %v3854
    %v3902 = vunpack.c.l.b16 %v3855
    %v3903 = vunpack.c.h.b16 %v3855
    %v3904 = vunpack.c.l.b16 %v3856
    %v3905 = vunpack.c.h.b16 %v3856
    %v3906 = vunpack.c.l.b16 %v3857
    %v3907 = vunpack.c.h.b16 %v3857
    %v3908 = vunpack.c.l.b16 %v3858
    %v3909 = vunpack.c.h.b16 %v3858
    %v3910 = vunpack.c.l.b16 %v3859
    %v3911 = vunpack.c.h.b16 %v3859
    %v3912 = vunpack.c.l.b16 %v3860
    %v3913 = vunpack.c.h.b16 %v3860
    %v3914 = vunpack.c.l.b16 %v3861
    %v3915 = vunpack.c.h.b16 %v3861
    %v3916 = vunpack.c.l.b16 %v3862
    %v3917 = vunpack.c.h.b16 %v3862
    %v3918 = vunpack.c.l.b16 %v3863
    %v3919 = vunpack.c.h.b16 %v3863
    %v3920 = vunpack.c.l.b16 %v3864
    %v3921 = vunpack.c.h.b16 %v3864
    %v3922 = vunpack.c.l.b16 %v3865
    %v3923 = vunpack.c.h.b16 %v3865
    %v3924 = vunpack.c.l.b16 %v3866
    %v3925 = vunpack.c.h.b16 %v3866
    %v3926 = vunpack.c.l.b16 %v3867
    %v3927 = vunpack.c.h.b16 %v3867
    %v3928 = vunpack.c.l.b16 %v3868
    %v3929 = vunpack.c.h.b16 %v3868
    %v3930 = vunpack.c.l.b16 %v3869
    %v3931 = vunpack.c.h.b16 %v3869
    %v3932 = vpack.c.b16 %v3902, %v3900
    %v3933 = vpack.c.b16 %v3903, %v3901
    %v3934 = vpack.c.b16 %v3906, %v3904
    %v3935 = vpack.c.b16 %v3907, %v3905
    %v3936 = vpack.c.b16 %v3910, %v3908
    %v3937 = vpack.c.b16 %v3911, %v3909
    %v3938 = vpack.c.b16 %v3914, %v3912
    %v3939 = vpack.c.b16 %v3915, %v3913
    %v3940 = vpack.c.b16 %v3918, %v3916
    %v3941 = vpack.c.b16 %v3919, %v3917
    %v3942 = vpack.c.b16 %v3922, %v3920
    %v3943 = vpack.c.b16 %v3923, %v3921
    %v3944 = vpack.c.b16 %v3926, %v3924
    %v3945 = vpack.c.b16 %v3927, %v3925
    %v3946 = vpack.c.b16 %v3930, %v3928
    %v3947 = vpack.c.b16 %v3931, %v3929
    %3964 = vmatprep.subr.bf16.mxu0 %v3933
    %3965 = vmatpush1.bf16.msra.mxu0 %v3932
    %3966 = vmatprep.subr.bf16.mxu0 %v3935
    %3967 = vmatpush1.bf16.msra.mxu0 %v3934
    %3968 = vmatprep.subr.bf16.mxu0 %v3937
    %3969 = vmatpush1.bf16.msra.mxu0 %v3936
    %3970 = vmatprep.subr.bf16.mxu0 %v3939
    %3971 = vmatpush1.bf16.msra.mxu0 %v3938
    %3972 = vmatprep.subr.bf16.mxu0 %v3941
    %3973 = vmatpush1.bf16.msra.mxu0 %v3940
    %3974 = vmatprep.subr.bf16.mxu0 %v3943
    %3975 = vmatpush1.bf16.msra.mxu0 %v3942
    %3976 = vmatprep.subr.bf16.mxu0 %v3945
    %3977 = vmatpush1.bf16.msra.mxu0 %v3944
    %3978 = vmatprep.subr.bf16.mxu0 %v3947
    %3979 = vmatpush1.bf16.msra.mxu0 %v3946
    %3980 = vmatprep.subr.bf16.mxu0 0
    %3981 = vmatpush1.bf16.msra.mxu0 0
    %3982 = vmatprep.subr.bf16.mxu0 0
    %3983 = vmatpush1.bf16.msra.mxu0 0
    %3984 = vmatprep.subr.bf16.mxu0 0
    %3985 = vmatpush1.bf16.msra.mxu0 0
    %3986 = vmatprep.subr.bf16.mxu0 0
    %3987 = vmatpush1.bf16.msra.mxu0 0
    %3988 = vmatprep.subr.bf16.mxu0 0
    %3989 = vmatpush1.bf16.msra.mxu0 0
    %3990 = vmatprep.subr.bf16.mxu0 0
    %3991 = vmatpush1.bf16.msra.mxu0 0
    %3992 = vmatprep.subr.bf16.mxu0 0
    %3993 = vmatpush1.bf16.msra.mxu0 0
    %3994 = vmatprep.subr.bf16.mxu0 0
    %3995 = vmatpush1.bf16.msra.mxu0 0
    %3996 = vmatprep.mubr.bf16.mxu0 0
    %3997 = vmatmul.mubr.bf16.gmra.mrb[0].mxu0 %v3872
    %v3998 = vpop.f32.mrb[0].mxu0
    %v3999 = vadd.f32 %v3877, %v3998
    %v4000 = vpop.f32.mrb[0].mxu0
    %v4001 = vadd.f32 %v3881, %v4000
    %v4002 = vpop.f32.mrb[0].mxu0
    %v4003 = vpop.f32.mrb[0].mxu0
    %4004 = vdwg.mxu0
    %v4005 = vmax.f32 %v3999, 0.0
    %v4006 = vmax.f32 %v4001, 0.0
    %s4007 = scalar_lea.vmem [#allocation11], 226
    %v4008 = vld [vmem:[%s4007] ss:$8 sm:$0x3]
    %s4009 = scalar_lea.vmem [#allocation11], 227
    %v4010 = vld [vmem:[%s4009] ss:$8 sm:$0x3]
    %v4011 = vrot.slane %v4005, 4
    %v4012 = vadd.f32 %v4005, %v4011
    %v4013 = vrot.slane %v4012, 2
    %v4014 = vadd.f32 %v4012, %v4013
    %v4015 = vrot.slane %v4014, 1
    %v4016 = vadd.f32 %v4014, %v4015
    %v4017 = vrot.slane %v4006, 4
    %v4018 = vadd.f32 %v4006, %v4017
    %v4019 = vrot.slane %v4018, 2
    %v4020 = vadd.f32 %v4018, %v4019
    %v4021 = vrot.slane %v4020, 1
    %v4022 = vadd.f32 %v4020, %v4021
    %v4023 = vmul.f32 %v4016, %v1845
    %v4024 = vmul.f32 %v4022, %v1845
    %v4025 = vmul.f32 %v4005, %v4005
    %v4026 = vmul.f32 %v4006, %v4006
    %v4027 = vrot.slane %v4025, 4
    %v4028 = vadd.f32 %v4025, %v4027
    %v4029 = vrot.slane %v4028, 2
    %v4030 = vadd.f32 %v4028, %v4029
    %v4031 = vrot.slane %v4030, 1
    %v4032 = vadd.f32 %v4030, %v4031
    %v4033 = vrot.slane %v4026, 4
    %v4034 = vadd.f32 %v4026, %v4033
    %v4035 = vrot.slane %v4034, 2
    %v4036 = vadd.f32 %v4034, %v4035
    %v4037 = vrot.slane %v4036, 1
    %v4038 = vadd.f32 %v4036, %v4037
    %v4039 = vmul.f32 %v4032, %v1845
    %v4040 = vmul.f32 %v4038, %v1845
    %v4041 = vmul.f32 %v4023, %v4023
    %v4042 = vmul.f32 %v4024, %v4024
    %v4043 = vsub.f32 %v4039, %v4041
    %v4044 = vsub.f32 %v4040, %v4042
    %v4045 = vmax.f32 %v4043, 0.0
    %v4046 = vmax.f32 %v4044, 0.0
    %v4047 = vadd.f32 %v4045, 1e-05
    %v4048 = vadd.f32 %v4046, 1e-05
    %v4049 = vrsqrt.pop %v4047
    %v4050 = vrsqrt.pop %v4048
    %v4053 = vcombine.low %v4049, %v4050
    %v4055 = vunpack.c.l.s4 1966171168
    %v4056 = vunpack.c.0.s8 %v4055
    %v4057 = vlaneseq
    %v4058 = vshrl.u32 %v4057, 7
    %v4059 = vsub.s32 %v4056, %v4058
    %v4060 = vrot.slane %v4053, %v4059
    %v4062 = vunpack.c.l.s4 1966171168
    %v4063 = vunpack.c.0.s8 %v4062
    %v4064 = vlaneseq
    %v4065 = vshrl.u32 %v4064, 7
    %v4066 = vsub.s32 %v4063, %v4065
    %v4067 = vrot.slane %v4060, %v4066
    %v4069 = vmul.f32 %v4008, %v4067
    %v4071 = vlaneseq
    %v4072 = vshrl.u32 %v4071, 7
    %v4073 = vsub.s32 0, %v4072
    %v4074 = vrot.slane %v4069, %v4073
    %v4075 = vlaneseq
    %v4076 = vshrl.u32 %v4075, 7
    %v4077 = vsub.s32 1, %v4076
    %v4078 = vrot.slane %v4069, %v4077
    %v4081 = vmul.f32 %v4023, %v4074
    %v4082 = vmul.f32 %v4024, %v4078
    %v4085 = vcombine.low %v4081, %v4082
    %v4087 = vunpack.c.l.s4 1966171168
    %v4088 = vunpack.c.0.s8 %v4087
    %v4089 = vlaneseq
    %v4090 = vshrl.u32 %v4089, 7
    %v4091 = vsub.s32 %v4088, %v4090
    %v4092 = vrot.slane %v4085, %v4091
    %v4094 = vunpack.c.l.s4 1966171168
    %v4095 = vunpack.c.0.s8 %v4094
    %v4096 = vlaneseq
    %v4097 = vshrl.u32 %v4096, 7
    %v4098 = vsub.s32 %v4095, %v4097
    %v4099 = vrot.slane %v4092, %v4098
    %v4101 = vsub.f32 %v4010, %v4099
    %v4102 = vmul.f32 %v4005, %v4074
    %v4103 = vmul.f32 %v4006, %v4078
    %v4105 = vlaneseq
    %v4106 = vshrl.u32 %v4105, 7
    %v4107 = vsub.s32 0, %v4106
    %v4108 = vrot.slane %v4101, %v4107
    %v4109 = vlaneseq
    %v4110 = vshrl.u32 %v4109, 7
    %v4111 = vsub.s32 1, %v4110
    %v4112 = vrot.slane %v4101, %v4111
    %v4115 = vadd.f32 %v4102, %v4108
    %v4116 = vadd.f32 %v4103, %v4112
    %v4117 = vld [vmem:[#allocation8 + $0x700] sm:$0xff]
    %v4118 = vld [vmem:[#allocation8 + $0x708] sm:$0xff]
    %v4119 = vld [vmem:[#allocation8 + $0x710] sm:$0xff]
    %v4120 = vld [vmem:[#allocation8 + $0x718] sm:$0xff]
    %v4121 = vld [vmem:[#allocation8 + $0x720] sm:$0xff]
    %v4122 = vld [vmem:[#allocation8 + $0x728] sm:$0xff]
    %v4123 = vld [vmem:[#allocation8 + $0x730] sm:$0xff]
    %v4124 = vld [vmem:[#allocation8 + $0x738] sm:$0xff]
    %v4125 = vld [vmem:[#allocation8 + $0x740] sm:$0xff]
    %v4126 = vld [vmem:[#allocation8 + $0x748] sm:$0xff]
    %v4127 = vld [vmem:[#allocation8 + $0x750] sm:$0xff]
    %v4128 = vld [vmem:[#allocation8 + $0x758] sm:$0xff]
    %v4129 = vld [vmem:[#allocation8 + $0x760] sm:$0xff]
    %v4130 = vld [vmem:[#allocation8 + $0x768] sm:$0xff]
    %v4131 = vld [vmem:[#allocation8 + $0x770] sm:$0xff]
    %v4132 = vld [vmem:[#allocation8 + $0x778] sm:$0xff]
    %v4133 = vld [vmem:[#allocation8 + $0x780] sm:$0xff]
    %v4134 = vld [vmem:[#allocation8 + $0x788] sm:$0xff]
    %v4135 = vld [vmem:[#allocation8 + $0x790] sm:$0xff]
    %v4136 = vld [vmem:[#allocation8 + $0x798] sm:$0xff]
    %v4137 = vld [vmem:[#allocation8 + $0x7a0] sm:$0xff]
    %v4138 = vld [vmem:[#allocation8 + $0x7a8] sm:$0xff]
    %v4139 = vld [vmem:[#allocation8 + $0x7b0] sm:$0xff]
    %v4140 = vld [vmem:[#allocation8 + $0x7b8] sm:$0xff]
    %v4141 = vld [vmem:[#allocation8 + $0x7c0] sm:$0xff]
    %v4142 = vld [vmem:[#allocation8 + $0x7c8] sm:$0xff]
    %v4143 = vld [vmem:[#allocation8 + $0x7d0] sm:$0xff]
    %v4144 = vld [vmem:[#allocation8 + $0x7d8] sm:$0xff]
    %v4145 = vld [vmem:[#allocation8 + $0x7e0] sm:$0xff]
    %v4146 = vld [vmem:[#allocation8 + $0x7e8] sm:$0xff]
    %v4147 = vld [vmem:[#allocation8 + $0x7f0] sm:$0xff]
    %v4148 = vld [vmem:[#allocation8 + $0x7f8] sm:$0xff]
    %v4149 = vld [vmem:[#allocation8 + $0x800] sm:$0xff]
    %v4150 = vld [vmem:[#allocation8 + $0x808] sm:$0xff]
    %v4151 = vld [vmem:[#allocation8 + $0x810] sm:$0xff]
    %v4152 = vld [vmem:[#allocation8 + $0x818] sm:$0xff]
    %v4153 = vld [vmem:[#allocation8 + $0x820] sm:$0xff]
    %v4154 = vld [vmem:[#allocation8 + $0x828] sm:$0xff]
    %v4155 = vld [vmem:[#allocation8 + $0x830] sm:$0xff]
    %v4156 = vld [vmem:[#allocation8 + $0x838] sm:$0xff]
    %v4157 = vld [vmem:[#allocation8 + $0x840] sm:$0xff]
    %v4158 = vld [vmem:[#allocation8 + $0x848] sm:$0xff]
    %v4159 = vld [vmem:[#allocation8 + $0x850] sm:$0xff]
    %v4160 = vld [vmem:[#allocation8 + $0x858] sm:$0xff]
    %v4161 = vld [vmem:[#allocation8 + $0x860] sm:$0xff]
    %v4162 = vld [vmem:[#allocation8 + $0x868] sm:$0xff]
    %v4163 = vld [vmem:[#allocation8 + $0x870] sm:$0xff]
    %v4164 = vld [vmem:[#allocation8 + $0x878] sm:$0xff]
    %v4165 = vld [vmem:[#allocation8 + $0x880] sm:$0xff]
    %v4166 = vld [vmem:[#allocation8 + $0x888] sm:$0xff]
    %v4167 = vld [vmem:[#allocation8 + $0x890] sm:$0xff]
    %v4168 = vld [vmem:[#allocation8 + $0x898] sm:$0xff]
    %v4169 = vld [vmem:[#allocation8 + $0x8a0] sm:$0xff]
    %v4170 = vld [vmem:[#allocation8 + $0x8a8] sm:$0xff]
    %v4171 = vld [vmem:[#allocation8 + $0x8b0] sm:$0xff]
    %v4172 = vld [vmem:[#allocation8 + $0x8b8] sm:$0xff]
    %v4173 = vld [vmem:[#allocation8 + $0x8c0] sm:$0xff]
    %v4174 = vld [vmem:[#allocation8 + $0x8c8] sm:$0xff]
    %v4175 = vld [vmem:[#allocation8 + $0x8d0] sm:$0xff]
    %v4176 = vld [vmem:[#allocation8 + $0x8d8] sm:$0xff]
    %v4177 = vld [vmem:[#allocation8 + $0x8e0] sm:$0xff]
    %v4178 = vld [vmem:[#allocation8 + $0x8e8] sm:$0xff]
    %v4179 = vld [vmem:[#allocation8 + $0x8f0] sm:$0xff]
    %v4180 = vld [vmem:[#allocation8 + $0x8f8] sm:$0xff]
    %s4181 = scalar_lea.vmem [#allocation11], 228
    %v4182 = vld [vmem:[%s4181] ss:$8 sm:$0xf]
    %v4183 = vpack.c.bf16 %v4115, %v4115
    %v4184 = vpack.c.bf16 %v4116, %v4116
    %v4186 = vlaneseq
    %v4187 = vshrl.u32 %v4186, 7
    %v4188 = vsub.s32 0, %v4187
    %v4189 = vrot.slane %v4182, %v4188
    %v4190 = vlaneseq
    %v4191 = vshrl.u32 %v4190, 7
    %v4192 = vsub.s32 1, %v4191
    %v4193 = vrot.slane %v4182, %v4192
    %v4194 = vlaneseq
    %v4195 = vshrl.u32 %v4194, 7
    %v4196 = vsub.s32 2, %v4195
    %v4197 = vrot.slane %v4182, %v4196
    %v4198 = vlaneseq
    %v4199 = vshrl.u32 %v4198, 7
    %v4200 = vsub.s32 3, %v4199
    %v4201 = vrot.slane %v4182, %v4200
    %v4270 = vunpack.c.l.b16 %v4117
    %v4271 = vunpack.c.h.b16 %v4117
    %v4272 = vunpack.c.l.b16 %v4118
    %v4273 = vunpack.c.h.b16 %v4118
    %v4274 = vunpack.c.l.b16 %v4119
    %v4275 = vunpack.c.h.b16 %v4119
    %v4276 = vunpack.c.l.b16 %v4120
    %v4277 = vunpack.c.h.b16 %v4120
    %v4278 = vunpack.c.l.b16 %v4121
    %v4279 = vunpack.c.h.b16 %v4121
    %v4280 = vunpack.c.l.b16 %v4122
    %v4281 = vunpack.c.h.b16 %v4122
    %v4282 = vunpack.c.l.b16 %v4123
    %v4283 = vunpack.c.h.b16 %v4123
    %v4284 = vunpack.c.l.b16 %v4124
    %v4285 = vunpack.c.h.b16 %v4124
    %v4286 = vunpack.c.l.b16 %v4125
    %v4287 = vunpack.c.h.b16 %v4125
    %v4288 = vunpack.c.l.b16 %v4126
    %v4289 = vunpack.c.h.b16 %v4126
    %v4290 = vunpack.c.l.b16 %v4127
    %v4291 = vunpack.c.h.b16 %v4127
    %v4292 = vunpack.c.l.b16 %v4128
    %v4293 = vunpack.c.h.b16 %v4128
    %v4294 = vunpack.c.l.b16 %v4129
    %v4295 = vunpack.c.h.b16 %v4129
    %v4296 = vunpack.c.l.b16 %v4130
    %v4297 = vunpack.c.h.b16 %v4130
    %v4298 = vunpack.c.l.b16 %v4131
    %v4299 = vunpack.c.h.b16 %v4131
    %v4300 = vunpack.c.l.b16 %v4132
    %v4301 = vunpack.c.h.b16 %v4132
    %v4302 = vunpack.c.l.b16 %v4133
    %v4303 = vunpack.c.h.b16 %v4133
    %v4304 = vunpack.c.l.b16 %v4134
    %v4305 = vunpack.c.h.b16 %v4134
    %v4306 = vunpack.c.l.b16 %v4135
    %v4307 = vunpack.c.h.b16 %v4135
    %v4308 = vunpack.c.l.b16 %v4136
    %v4309 = vunpack.c.h.b16 %v4136
    %v4310 = vunpack.c.l.b16 %v4137
    %v4311 = vunpack.c.h.b16 %v4137
    %v4312 = vunpack.c.l.b16 %v4138
    %v4313 = vunpack.c.h.b16 %v4138
    %v4314 = vunpack.c.l.b16 %v4139
    %v4315 = vunpack.c.h.b16 %v4139
    %v4316 = vunpack.c.l.b16 %v4140
    %v4317 = vunpack.c.h.b16 %v4140
    %v4318 = vunpack.c.l.b16 %v4141
    %v4319 = vunpack.c.h.b16 %v4141
    %v4320 = vunpack.c.l.b16 %v4142
    %v4321 = vunpack.c.h.b16 %v4142
    %v4322 = vunpack.c.l.b16 %v4143
    %v4323 = vunpack.c.h.b16 %v4143
    %v4324 = vunpack.c.l.b16 %v4144
    %v4325 = vunpack.c.h.b16 %v4144
    %v4326 = vunpack.c.l.b16 %v4145
    %v4327 = vunpack.c.h.b16 %v4145
    %v4328 = vunpack.c.l.b16 %v4146
    %v4329 = vunpack.c.h.b16 %v4146
    %v4330 = vunpack.c.l.b16 %v4147
    %v4331 = vunpack.c.h.b16 %v4147
    %v4332 = vunpack.c.l.b16 %v4148
    %v4333 = vunpack.c.h.b16 %v4148
    %v4334 = vunpack.c.l.b16 %v4149
    %v4335 = vunpack.c.h.b16 %v4149
    %v4336 = vunpack.c.l.b16 %v4150
    %v4337 = vunpack.c.h.b16 %v4150
    %v4338 = vunpack.c.l.b16 %v4151
    %v4339 = vunpack.c.h.b16 %v4151
    %v4340 = vunpack.c.l.b16 %v4152
    %v4341 = vunpack.c.h.b16 %v4152
    %v4342 = vunpack.c.l.b16 %v4153
    %v4343 = vunpack.c.h.b16 %v4153
    %v4344 = vunpack.c.l.b16 %v4154
    %v4345 = vunpack.c.h.b16 %v4154
    %v4346 = vunpack.c.l.b16 %v4155
    %v4347 = vunpack.c.h.b16 %v4155
    %v4348 = vunpack.c.l.b16 %v4156
    %v4349 = vunpack.c.h.b16 %v4156
    %v4350 = vunpack.c.l.b16 %v4157
    %v4351 = vunpack.c.h.b16 %v4157
    %v4352 = vunpack.c.l.b16 %v4158
    %v4353 = vunpack.c.h.b16 %v4158
    %v4354 = vunpack.c.l.b16 %v4159
    %v4355 = vunpack.c.h.b16 %v4159
    %v4356 = vunpack.c.l.b16 %v4160
    %v4357 = vunpack.c.h.b16 %v4160
    %v4358 = vunpack.c.l.b16 %v4161
    %v4359 = vunpack.c.h.b16 %v4161
    %v4360 = vunpack.c.l.b16 %v4162
    %v4361 = vunpack.c.h.b16 %v4162
    %v4362 = vunpack.c.l.b16 %v4163
    %v4363 = vunpack.c.h.b16 %v4163
    %v4364 = vunpack.c.l.b16 %v4164
    %v4365 = vunpack.c.h.b16 %v4164
    %v4366 = vunpack.c.l.b16 %v4165
    %v4367 = vunpack.c.h.b16 %v4165
    %v4368 = vunpack.c.l.b16 %v4166
    %v4369 = vunpack.c.h.b16 %v4166
    %v4370 = vunpack.c.l.b16 %v4167
    %v4371 = vunpack.c.h.b16 %v4167
    %v4372 = vunpack.c.l.b16 %v4168
    %v4373 = vunpack.c.h.b16 %v4168
    %v4374 = vunpack.c.l.b16 %v4169
    %v4375 = vunpack.c.h.b16 %v4169
    %v4376 = vunpack.c.l.b16 %v4170
    %v4377 = vunpack.c.h.b16 %v4170
    %v4378 = vunpack.c.l.b16 %v4171
    %v4379 = vunpack.c.h.b16 %v4171
    %v4380 = vunpack.c.l.b16 %v4172
    %v4381 = vunpack.c.h.b16 %v4172
    %v4382 = vunpack.c.l.b16 %v4173
    %v4383 = vunpack.c.h.b16 %v4173
    %v4384 = vunpack.c.l.b16 %v4174
    %v4385 = vunpack.c.h.b16 %v4174
    %v4386 = vunpack.c.l.b16 %v4175
    %v4387 = vunpack.c.h.b16 %v4175
    %v4388 = vunpack.c.l.b16 %v4176
    %v4389 = vunpack.c.h.b16 %v4176
    %v4390 = vunpack.c.l.b16 %v4177
    %v4391 = vunpack.c.h.b16 %v4177
    %v4392 = vunpack.c.l.b16 %v4178
    %v4393 = vunpack.c.h.b16 %v4178
    %v4394 = vunpack.c.l.b16 %v4179
    %v4395 = vunpack.c.h.b16 %v4179
    %v4396 = vunpack.c.l.b16 %v4180
    %v4397 = vunpack.c.h.b16 %v4180
    %v4398 = vpack.c.b16 %v4274, %v4270
    %v4399 = vpack.c.b16 %v4275, %v4271
    %v4400 = vpack.c.b16 %v4276, %v4272
    %v4401 = vpack.c.b16 %v4277, %v4273
    %v4402 = vpack.c.b16 %v4282, %v4278
    %v4403 = vpack.c.b16 %v4283, %v4279
    %v4404 = vpack.c.b16 %v4284, %v4280
    %v4405 = vpack.c.b16 %v4285, %v4281
    %v4406 = vpack.c.b16 %v4290, %v4286
    %v4407 = vpack.c.b16 %v4291, %v4287
    %v4408 = vpack.c.b16 %v4292, %v4288
    %v4409 = vpack.c.b16 %v4293, %v4289
    %v4410 = vpack.c.b16 %v4298, %v4294
    %v4411 = vpack.c.b16 %v4299, %v4295
    %v4412 = vpack.c.b16 %v4300, %v4296
    %v4413 = vpack.c.b16 %v4301, %v4297
    %v4414 = vpack.c.b16 %v4306, %v4302
    %v4415 = vpack.c.b16 %v4307, %v4303
    %v4416 = vpack.c.b16 %v4308, %v4304
    %v4417 = vpack.c.b16 %v4309, %v4305
    %v4418 = vpack.c.b16 %v4314, %v4310
    %v4419 = vpack.c.b16 %v4315, %v4311
    %v4420 = vpack.c.b16 %v4316, %v4312
    %v4421 = vpack.c.b16 %v4317, %v4313
    %v4422 = vpack.c.b16 %v4322, %v4318
    %v4423 = vpack.c.b16 %v4323, %v4319
    %v4424 = vpack.c.b16 %v4324, %v4320
    %v4425 = vpack.c.b16 %v4325, %v4321
    %v4426 = vpack.c.b16 %v4330, %v4326
    %v4427 = vpack.c.b16 %v4331, %v4327
    %v4428 = vpack.c.b16 %v4332, %v4328
    %v4429 = vpack.c.b16 %v4333, %v4329
    %v4430 = vpack.c.b16 %v4338, %v4334
    %v4431 = vpack.c.b16 %v4339, %v4335
    %v4432 = vpack.c.b16 %v4340, %v4336
    %v4433 = vpack.c.b16 %v4341, %v4337
    %v4434 = vpack.c.b16 %v4346, %v4342
    %v4435 = vpack.c.b16 %v4347, %v4343
    %v4436 = vpack.c.b16 %v4348, %v4344
    %v4437 = vpack.c.b16 %v4349, %v4345
    %v4438 = vpack.c.b16 %v4354, %v4350
    %v4439 = vpack.c.b16 %v4355, %v4351
    %v4440 = vpack.c.b16 %v4356, %v4352
    %v4441 = vpack.c.b16 %v4357, %v4353
    %v4442 = vpack.c.b16 %v4362, %v4358
    %v4443 = vpack.c.b16 %v4363, %v4359
    %v4444 = vpack.c.b16 %v4364, %v4360
    %v4445 = vpack.c.b16 %v4365, %v4361
    %v4446 = vpack.c.b16 %v4370, %v4366
    %v4447 = vpack.c.b16 %v4371, %v4367
    %v4448 = vpack.c.b16 %v4372, %v4368
    %v4449 = vpack.c.b16 %v4373, %v4369
    %v4450 = vpack.c.b16 %v4378, %v4374
    %v4451 = vpack.c.b16 %v4379, %v4375
    %v4452 = vpack.c.b16 %v4380, %v4376
    %v4453 = vpack.c.b16 %v4381, %v4377
    %v4454 = vpack.c.b16 %v4386, %v4382
    %v4455 = vpack.c.b16 %v4387, %v4383
    %v4456 = vpack.c.b16 %v4388, %v4384
    %v4457 = vpack.c.b16 %v4389, %v4385
    %v4458 = vpack.c.b16 %v4394, %v4390
    %v4459 = vpack.c.b16 %v4395, %v4391
    %v4460 = vpack.c.b16 %v4396, %v4392
    %v4461 = vpack.c.b16 %v4397, %v4393
    %4526 = vmatprep.subr.bf16.mxu0 %v4399
    %4527 = vmatpush1.bf16.msra.mxu0 %v4398
    %4528 = vmatprep.subr.bf16.mxu0 %v4403
    %4529 = vmatpush1.bf16.msra.mxu0 %v4402
    %4530 = vmatprep.subr.bf16.mxu0 %v4407
    %4531 = vmatpush1.bf16.msra.mxu0 %v4406
    %4532 = vmatprep.subr.bf16.mxu0 %v4411
    %4533 = vmatpush1.bf16.msra.mxu0 %v4410
    %4534 = vmatprep.subr.bf16.mxu0 %v4415
    %4535 = vmatpush1.bf16.msra.mxu0 %v4414
    %4536 = vmatprep.subr.bf16.mxu0 %v4419
    %4537 = vmatpush1.bf16.msra.mxu0 %v4418
    %4538 = vmatprep.subr.bf16.mxu0 %v4423
    %4539 = vmatpush1.bf16.msra.mxu0 %v4422
    %4540 = vmatprep.subr.bf16.mxu0 %v4427
    %4541 = vmatpush1.bf16.msra.mxu0 %v4426
    %4542 = vmatprep.subr.bf16.mxu0 %v4431
    %4543 = vmatpush1.bf16.msra.mxu0 %v4430
    %4544 = vmatprep.subr.bf16.mxu0 %v4435
    %4545 = vmatpush1.bf16.msra.mxu0 %v4434
    %4546 = vmatprep.subr.bf16.mxu0 %v4439
    %4547 = vmatpush1.bf16.msra.mxu0 %v4438
    %4548 = vmatprep.subr.bf16.mxu0 %v4443
    %4549 = vmatpush1.bf16.msra.mxu0 %v4442
    %4550 = vmatprep.subr.bf16.mxu0 %v4447
    %4551 = vmatpush1.bf16.msra.mxu0 %v4446
    %4552 = vmatprep.subr.bf16.mxu0 %v4451
    %4553 = vmatpush1.bf16.msra.mxu0 %v4450
    %4554 = vmatprep.subr.bf16.mxu0 %v4455
    %4555 = vmatpush1.bf16.msra.mxu0 %v4454
    %4556 = vmatprep.subr.bf16.mxu0 %v4459
    %4557 = vmatpush1.bf16.msra.mxu0 %v4458
    %4558 = vmatprep.mubr.bf16.mxu0 %v4184
    %4559 = vmatmul.mubr.bf16.gmra.mrb[0].mxu0 %v4183
    %v4560 = vpop.f32.mrb[0].mxu0
    %v4561 = vadd.f32 %v4189, %v4560
    %v4562 = vpop.f32.mrb[0].mxu0
    %v4563 = vadd.f32 %v4193, %v4562
    %v4564 = vpop.f32.mrb[0].mxu0
    %v4565 = vpop.f32.mrb[0].mxu0
    %4566 = vdwg.mxu0
    %4567 = vmatprep.subr.bf16.mxu0 %v4401
    %4568 = vmatpush1.bf16.msra.mxu0 %v4400
    %4569 = vmatprep.subr.bf16.mxu0 %v4405
    %4570 = vmatpush1.bf16.msra.mxu0 %v4404
    %4571 = vmatprep.subr.bf16.mxu0 %v4409
    %4572 = vmatpush1.bf16.msra.mxu0 %v4408
    %4573 = vmatprep.subr.bf16.mxu0 %v4413
    %4574 = vmatpush1.bf16.msra.mxu0 %v4412
    %4575 = vmatprep.subr.bf16.mxu0 %v4417
    %4576 = vmatpush1.bf16.msra.mxu0 %v4416
    %4577 = vmatprep.subr.bf16.mxu0 %v4421
    %4578 = vmatpush1.bf16.msra.mxu0 %v4420
    %4579 = vmatprep.subr.bf16.mxu0 %v4425
    %4580 = vmatpush1.bf16.msra.mxu0 %v4424
    %4581 = vmatprep.subr.bf16.mxu0 %v4429
    %4582 = vmatpush1.bf16.msra.mxu0 %v4428
    %4583 = vmatprep.subr.bf16.mxu0 %v4433
    %4584 = vmatpush1.bf16.msra.mxu0 %v4432
    %4585 = vmatprep.subr.bf16.mxu0 %v4437
    %4586 = vmatpush1.bf16.msra.mxu0 %v4436
    %4587 = vmatprep.subr.bf16.mxu0 %v4441
    %4588 = vmatpush1.bf16.msra.mxu0 %v4440
    %4589 = vmatprep.subr.bf16.mxu0 %v4445
    %4590 = vmatpush1.bf16.msra.mxu0 %v4444
    %4591 = vmatprep.subr.bf16.mxu0 %v4449
    %4592 = vmatpush1.bf16.msra.mxu0 %v4448
    %4593 = vmatprep.subr.bf16.mxu0 %v4453
    %4594 = vmatpush1.bf16.msra.mxu0 %v4452
    %4595 = vmatprep.subr.bf16.mxu0 %v4457
    %4596 = vmatpush1.bf16.msra.mxu0 %v4456
    %4597 = vmatprep.subr.bf16.mxu0 %v4461
    %4598 = vmatpush1.bf16.msra.mxu0 %v4460
    %4599 = vmatprep.mubr.bf16.mxu0 %v4184
    %4600 = vmatmul.mubr.bf16.gmra.mrb[0].mxu0 %v4183
    %v4601 = vpop.f32.mrb[0].mxu0
    %v4602 = vadd.f32 %v4197, %v4601
    %v4603 = vpop.f32.mrb[0].mxu0
    %v4604 = vadd.f32 %v4201, %v4603
    %v4605 = vpop.f32.mrb[0].mxu0
    %v4606 = vpop.f32.mrb[0].mxu0
    %4607 = vdwg.mxu0
    %v4608 = vmax.f32 %v4561, 0.0
    %v4609 = vmax.f32 %v4563, 0.0
    %v4610 = vmax.f32 %v4602, 0.0
    %v4611 = vmax.f32 %v4604, 0.0
    %s4612 = scalar_lea.vmem [#allocation11], 229
    %v4613 = vld [vmem:[%s4612] ss:$8 sm:$0xf]
    %s4614 = scalar_lea.vmem [#allocation11], 230
    %v4615 = vld [vmem:[%s4614] ss:$8 sm:$0xf]
    %v4616 = vrot.slane %v4608, 4
    %v4617 = vadd.f32 %v4608, %v4616
    %v4618 = vrot.slane %v4617, 2
    %v4619 = vadd.f32 %v4617, %v4618
    %v4620 = vrot.slane %v4619, 1
    %v4621 = vadd.f32 %v4619, %v4620
    %v4622 = vrot.slane %v4609, 4
    %v4623 = vadd.f32 %v4609, %v4622
    %v4624 = vrot.slane %v4623, 2
    %v4625 = vadd.f32 %v4623, %v4624
    %v4626 = vrot.slane %v4625, 1
    %v4627 = vadd.f32 %v4625, %v4626
    %v4628 = vrot.slane %v4610, 4
    %v4629 = vadd.f32 %v4610, %v4628
    %v4630 = vrot.slane %v4629, 2
    %v4631 = vadd.f32 %v4629, %v4630
    %v4632 = vrot.slane %v4631, 1
    %v4633 = vadd.f32 %v4631, %v4632
    %v4634 = vrot.slane %v4611, 4
    %v4635 = vadd.f32 %v4611, %v4634
    %v4636 = vrot.slane %v4635, 2
    %v4637 = vadd.f32 %v4635, %v4636
    %v4638 = vrot.slane %v4637, 1
    %v4639 = vadd.f32 %v4637, %v4638
    %v4640 = vmul.f32 %v4621, %v1845
    %v4641 = vmul.f32 %v4627, %v1845
    %v4642 = vmul.f32 %v4633, %v1845
    %v4643 = vmul.f32 %v4639, %v1845
    %v4644 = vmul.f32 %v4608, %v4608
    %v4645 = vmul.f32 %v4609, %v4609
    %v4646 = vmul.f32 %v4610, %v4610
    %v4647 = vmul.f32 %v4611, %v4611
    %v4648 = vrot.slane %v4644, 4
    %v4649 = vadd.f32 %v4644, %v4648
    %v4650 = vrot.slane %v4649, 2
    %v4651 = vadd.f32 %v4649, %v4650
    %v4652 = vrot.slane %v4651, 1
    %v4653 = vadd.f32 %v4651, %v4652
    %v4654 = vrot.slane %v4645, 4
    %v4655 = vadd.f32 %v4645, %v4654
    %v4656 = vrot.slane %v4655, 2
    %v4657 = vadd.f32 %v4655, %v4656
    %v4658 = vrot.slane %v4657, 1
    %v4659 = vadd.f32 %v4657, %v4658
    %v4660 = vrot.slane %v4646, 4
    %v4661 = vadd.f32 %v4646, %v4660
    %v4662 = vrot.slane %v4661, 2
    %v4663 = vadd.f32 %v4661, %v4662
    %v4664 = vrot.slane %v4663, 1
    %v4665 = vadd.f32 %v4663, %v4664
    %v4666 = vrot.slane %v4647, 4
    %v4667 = vadd.f32 %v4647, %v4666
    %v4668 = vrot.slane %v4667, 2
    %v4669 = vadd.f32 %v4667, %v4668
    %v4670 = vrot.slane %v4669, 1
    %v4671 = vadd.f32 %v4669, %v4670
    %v4672 = vmul.f32 %v4653, %v1845
    %v4673 = vmul.f32 %v4659, %v1845
    %v4674 = vmul.f32 %v4665, %v1845
    %v4675 = vmul.f32 %v4671, %v1845
    %v4676 = vmul.f32 %v4640, %v4640
    %v4677 = vmul.f32 %v4641, %v4641
    %v4678 = vmul.f32 %v4642, %v4642
    %v4679 = vmul.f32 %v4643, %v4643
    %v4680 = vsub.f32 %v4672, %v4676
    %v4681 = vsub.f32 %v4673, %v4677
    %v4682 = vsub.f32 %v4674, %v4678
    %v4683 = vsub.f32 %v4675, %v4679
    %v4684 = vmax.f32 %v4680, 0.0
    %v4685 = vmax.f32 %v4681, 0.0
    %v4686 = vmax.f32 %v4682, 0.0
    %v4687 = vmax.f32 %v4683, 0.0
    %v4688 = vadd.f32 %v4684, 1e-05
    %v4689 = vadd.f32 %v4685, 1e-05
    %v4690 = vadd.f32 %v4686, 1e-05
    %v4691 = vadd.f32 %v4687, 1e-05
    %v4692 = vrsqrt.pop %v4688
    %v4693 = vrsqrt.pop %v4689
    %v4694 = vrsqrt.pop %v4690
    %v4695 = vrsqrt.pop %v4691
    %v4700 = vcombine.low %v4692, %v4693
    %v4701 = vcombine.low %v4694, %v4695
    %v4703 = vunpack.c.l.s4 1966171168
    %v4704 = vunpack.c.0.s8 %v4703
    %v4705 = vlaneseq
    %v4706 = vshrl.u32 %v4705, 7
    %v4707 = vsub.s32 %v4704, %v4706
    %v4708 = vrot.slane %v4700, %v4707
    %v4710 = vunpack.c.l.s4 1966171168
    %v4711 = vunpack.c.0.s8 %v4710
    %v4712 = vlaneseq
    %v4713 = vshrl.u32 %v4712, 7
    %v4714 = vsub.s32 %v4711, %v4713
    %v4715 = vrot.slane %v4701, %v4714
    %v4716 = vcombine.low %v4708, %v4715
    %v4718 = vunpack.c.l.s4 1966171168
    %v4719 = vunpack.c.0.s8 %v4718
    %v4720 = vlaneseq
    %v4721 = vshrl.u32 %v4720, 7
    %v4722 = vsub.s32 %v4719, %v4721
    %v4723 = vrot.slane %v4716, %v4722
    %v4725 = vmul.f32 %v4613, %v4723
    %v4727 = vlaneseq
    %v4728 = vshrl.u32 %v4727, 7
    %v4729 = vsub.s32 0, %v4728
    %v4730 = vrot.slane %v4725, %v4729
    %v4731 = vlaneseq
    %v4732 = vshrl.u32 %v4731, 7
    %v4733 = vsub.s32 1, %v4732
    %v4734 = vrot.slane %v4725, %v4733
    %v4735 = vlaneseq
    %v4736 = vshrl.u32 %v4735, 7
    %v4737 = vsub.s32 2, %v4736
    %v4738 = vrot.slane %v4725, %v4737
    %v4739 = vlaneseq
    %v4740 = vshrl.u32 %v4739, 7
    %v4741 = vsub.s32 3, %v4740
    %v4742 = vrot.slane %v4725, %v4741
    %v4747 = vmul.f32 %v4640, %v4730
    %v4748 = vmul.f32 %v4641, %v4734
    %v4749 = vmul.f32 %v4642, %v4738
    %v4750 = vmul.f32 %v4643, %v4742
    %v4755 = vcombine.low %v4747, %v4748
    %v4756 = vcombine.low %v4749, %v4750
    %v4758 = vunpack.c.l.s4 1966171168
    %v4759 = vunpack.c.0.s8 %v4758
    %v4760 = vlaneseq
    %v4761 = vshrl.u32 %v4760, 7
    %v4762 = vsub.s32 %v4759, %v4761
    %v4763 = vrot.slane %v4755, %v4762
    %v4765 = vunpack.c.l.s4 1966171168
    %v4766 = vunpack.c.0.s8 %v4765
    %v4767 = vlaneseq
    %v4768 = vshrl.u32 %v4767, 7
    %v4769 = vsub.s32 %v4766, %v4768
    %v4770 = vrot.slane %v4756, %v4769
    %v4771 = vcombine.low %v4763, %v4770
    %v4773 = vunpack.c.l.s4 1966171168
    %v4774 = vunpack.c.0.s8 %v4773
    %v4775 = vlaneseq
    %v4776 = vshrl.u32 %v4775, 7
    %v4777 = vsub.s32 %v4774, %v4776
    %v4778 = vrot.slane %v4771, %v4777
    %v4780 = vsub.f32 %v4615, %v4778
    %v4781 = vmul.f32 %v4608, %v4730
    %v4782 = vmul.f32 %v4609, %v4734
    %v4783 = vmul.f32 %v4610, %v4738
    %v4784 = vmul.f32 %v4611, %v4742
    %v4786 = vlaneseq
    %v4787 = vshrl.u32 %v4786, 7
    %v4788 = vsub.s32 0, %v4787
    %v4789 = vrot.slane %v4780, %v4788
    %v4790 = vlaneseq
    %v4791 = vshrl.u32 %v4790, 7
    %v4792 = vsub.s32 1, %v4791
    %v4793 = vrot.slane %v4780, %v4792
    %v4794 = vlaneseq
    %v4795 = vshrl.u32 %v4794, 7
    %v4796 = vsub.s32 2, %v4795
    %v4797 = vrot.slane %v4780, %v4796
    %v4798 = vlaneseq
    %v4799 = vshrl.u32 %v4798, 7
    %v4800 = vsub.s32 3, %v4799
    %v4801 = vrot.slane %v4780, %v4800
    %v4806 = vadd.f32 %v4781, %v4789
    %v4807 = vadd.f32 %v4782, %v4793
    %v4808 = vadd.f32 %v4783, %v4797
    %v4809 = vadd.f32 %v4784, %v4801
    %v4810 = vld [vmem:[#allocation10] sm:$0xff]
    %v4811 = vld [vmem:[#allocation10 + $0x8] sm:$0xff]
    %v4812 = vld [vmem:[#allocation10 + $0x10] sm:$0xff]
    %v4813 = vld [vmem:[#allocation10 + $0x18] sm:$0xf]
    %v4814 = vld [vmem:[#allocation10 + $0x1c] sm:$0xff]
    %v4815 = vld [vmem:[#allocation10 + $0x24] sm:$0xff]
    %v4816 = vld [vmem:[#allocation10 + $0x2c] sm:$0xff]
    %v4817 = vld [vmem:[#allocation10 + $0x34] sm:$0xf]
    %v4818 = vld [vmem:[#allocation10 + $0x38] sm:$0xff]
    %v4819 = vld [vmem:[#allocation10 + $0x40] sm:$0xff]
    %v4820 = vld [vmem:[#allocation10 + $0x48] sm:$0xff]
    %v4821 = vld [vmem:[#allocation10 + $0x50] sm:$0xf]
    %v4822 = vld [vmem:[#allocation10 + $0x54] sm:$0xff]
    %v4823 = vld [vmem:[#allocation10 + $0x5c] sm:$0xff]
    %v4824 = vld [vmem:[#allocation10 + $0x64] sm:$0xff]
    %v4825 = vld [vmem:[#allocation10 + $0x6c] sm:$0xf]
    %v4826 = vld [vmem:[#allocation10 + $0x70] sm:$0xff]
    %v4827 = vld [vmem:[#allocation10 + $0x78] sm:$0xff]
    %v4828 = vld [vmem:[#allocation10 + $0x80] sm:$0xff]
    %v4829 = vld [vmem:[#allocation10 + $0x88] sm:$0xf]
    %v4830 = vld [vmem:[#allocation10 + $0x8c] sm:$0xff]
    %v4831 = vld [vmem:[#allocation10 + $0x94] sm:$0xff]
    %v4832 = vld [vmem:[#allocation10 + $0x9c] sm:$0xff]
    %v4833 = vld [vmem:[#allocation10 + $0xa4] sm:$0xf]
    %v4834 = vld [vmem:[#allocation10 + $0xa8] sm:$0xff]
    %v4835 = vld [vmem:[#allocation10 + $0xb0] sm:$0xff]
    %v4836 = vld [vmem:[#allocation10 + $0xb8] sm:$0xff]
    %v4837 = vld [vmem:[#allocation10 + $0xc0] sm:$0xf]
    %v4838 = vld [vmem:[#allocation10 + $0xc4] sm:$0xff]
    %v4839 = vld [vmem:[#allocation10 + $0xcc] sm:$0xff]
    %v4840 = vld [vmem:[#allocation10 + $0xd4] sm:$0xff]
    %v4841 = vld [vmem:[#allocation10 + $0xdc] sm:$0xf]
    %v4842 = vld [vmem:[#allocation10 + $0xe0] sm:$0xff]
    %v4843 = vld [vmem:[#allocation10 + $0xe8] sm:$0xff]
    %v4844 = vld [vmem:[#allocation10 + $0xf0] sm:$0xff]
    %v4845 = vld [vmem:[#allocation10 + $0xf8] sm:$0xf]
    %v4846 = vld [vmem:[#allocation10 + $0xfc] sm:$0xff]
    %v4847 = vld [vmem:[#allocation10 + $0x104] sm:$0xff]
    %v4848 = vld [vmem:[#allocation10 + $0x10c] sm:$0xff]
    %v4849 = vld [vmem:[#allocation10 + $0x114] sm:$0xf]
    %v4850 = vld [vmem:[#allocation10 + $0x118] sm:$0xff]
    %v4851 = vld [vmem:[#allocation10 + $0x120] sm:$0xff]
    %v4852 = vld [vmem:[#allocation10 + $0x128] sm:$0xff]
    %v4853 = vld [vmem:[#allocation10 + $0x130] sm:$0xf]
    %v4854 = vld [vmem:[#allocation10 + $0x134] sm:$0xff]
    %v4855 = vld [vmem:[#allocation10 + $0x13c] sm:$0xff]
    %v4856 = vld [vmem:[#allocation10 + $0x144] sm:$0xff]
    %v4857 = vld [vmem:[#allocation10 + $0x14c] sm:$0xf]
    %v4858 = vld [vmem:[#allocation10 + $0x150] sm:$0xff]
    %v4859 = vld [vmem:[#allocation10 + $0x158] sm:$0xff]
    %v4860 = vld [vmem:[#allocation10 + $0x160] sm:$0xff]
    %v4861 = vld [vmem:[#allocation10 + $0x168] sm:$0xf]
    %v4862 = vld [vmem:[#allocation10 + $0x16c] sm:$0xff]
    %v4863 = vld [vmem:[#allocation10 + $0x174] sm:$0xff]
    %v4864 = vld [vmem:[#allocation10 + $0x17c] sm:$0xff]
    %v4865 = vld [vmem:[#allocation10 + $0x184] sm:$0xf]
    %v4866 = vld [vmem:[#allocation10 + $0x188] sm:$0xff]
    %v4867 = vld [vmem:[#allocation10 + $0x190] sm:$0xff]
    %v4868 = vld [vmem:[#allocation10 + $0x198] sm:$0xff]
    %v4869 = vld [vmem:[#allocation10 + $0x1a0] sm:$0xf]
    %v4870 = vld [vmem:[#allocation10 + $0x1a4] sm:$0xff]
    %v4871 = vld [vmem:[#allocation10 + $0x1ac] sm:$0xff]
    %v4872 = vld [vmem:[#allocation10 + $0x1b4] sm:$0xff]
    %v4873 = vld [vmem:[#allocation10 + $0x1bc] sm:$0xf]
    %v4874 = vld [vmem:[#allocation10 + $0x1c0] sm:$0xff]
    %v4875 = vld [vmem:[#allocation10 + $0x1c8] sm:$0xff]
    %v4876 = vld [vmem:[#allocation10 + $0x1d0] sm:$0xff]
    %v4877 = vld [vmem:[#allocation10 + $0x1d8] sm:$0xf]
    %v4878 = vld [vmem:[#allocation10 + $0x1dc] sm:$0xff]
    %v4879 = vld [vmem:[#allocation10 + $0x1e4] sm:$0xff]
    %v4880 = vld [vmem:[#allocation10 + $0x1ec] sm:$0xff]
    %v4881 = vld [vmem:[#allocation10 + $0x1f4] sm:$0xf]
    %v4882 = vld [vmem:[#allocation10 + $0x1f8] sm:$0xff]
    %v4883 = vld [vmem:[#allocation10 + $0x200] sm:$0xff]
    %v4884 = vld [vmem:[#allocation10 + $0x208] sm:$0xff]
    %v4885 = vld [vmem:[#allocation10 + $0x210] sm:$0xf]
    %v4886 = vld [vmem:[#allocation10 + $0x214] sm:$0xff]
    %v4887 = vld [vmem:[#allocation10 + $0x21c] sm:$0xff]
    %v4888 = vld [vmem:[#allocation10 + $0x224] sm:$0xff]
    %v4889 = vld [vmem:[#allocation10 + $0x22c] sm:$0xf]
    %v4890 = vld [vmem:[#allocation10 + $0x230] sm:$0xff]
    %v4891 = vld [vmem:[#allocation10 + $0x238] sm:$0xff]
    %v4892 = vld [vmem:[#allocation10 + $0x240] sm:$0xff]
    %v4893 = vld [vmem:[#allocation10 + $0x248] sm:$0xf]
    %v4894 = vld [vmem:[#allocation10 + $0x24c] sm:$0xff]
    %v4895 = vld [vmem:[#allocation10 + $0x254] sm:$0xff]
    %v4896 = vld [vmem:[#allocation10 + $0x25c] sm:$0xff]
    %v4897 = vld [vmem:[#allocation10 + $0x264] sm:$0xf]
    %v4898 = vld [vmem:[#allocation10 + $0x268] sm:$0xff]
    %v4899 = vld [vmem:[#allocation10 + $0x270] sm:$0xff]
    %v4900 = vld [vmem:[#allocation10 + $0x278] sm:$0xff]
    %v4901 = vld [vmem:[#allocation10 + $0x280] sm:$0xf]
    %v4902 = vld [vmem:[#allocation10 + $0x284] sm:$0xff]
    %v4903 = vld [vmem:[#allocation10 + $0x28c] sm:$0xff]
    %v4904 = vld [vmem:[#allocation10 + $0x294] sm:$0xff]
    %v4905 = vld [vmem:[#allocation10 + $0x29c] sm:$0xf]
    %v4906 = vld [vmem:[#allocation10 + $0x2a0] sm:$0xff]
    %v4907 = vld [vmem:[#allocation10 + $0x2a8] sm:$0xff]
    %v4908 = vld [vmem:[#allocation10 + $0x2b0] sm:$0xff]
    %v4909 = vld [vmem:[#allocation10 + $0x2b8] sm:$0xf]
    %v4910 = vld [vmem:[#allocation10 + $0x2bc] sm:$0xff]
    %v4911 = vld [vmem:[#allocation10 + $0x2c4] sm:$0xff]
    %v4912 = vld [vmem:[#allocation10 + $0x2cc] sm:$0xff]
    %v4913 = vld [vmem:[#allocation10 + $0x2d4] sm:$0xf]
    %v4914 = vld [vmem:[#allocation10 + $0x2d8] sm:$0xff]
    %v4915 = vld [vmem:[#allocation10 + $0x2e0] sm:$0xff]
    %v4916 = vld [vmem:[#allocation10 + $0x2e8] sm:$0xff]
    %v4917 = vld [vmem:[#allocation10 + $0x2f0] sm:$0xf]
    %v4918 = vld [vmem:[#allocation10 + $0x2f4] sm:$0xff]
    %v4919 = vld [vmem:[#allocation10 + $0x2fc] sm:$0xff]
    %v4920 = vld [vmem:[#allocation10 + $0x304] sm:$0xff]
    %v4921 = vld [vmem:[#allocation10 + $0x30c] sm:$0xf]
    %v4922 = vld [vmem:[#allocation10 + $0x310] sm:$0xff]
    %v4923 = vld [vmem:[#allocation10 + $0x318] sm:$0xff]
    %v4924 = vld [vmem:[#allocation10 + $0x320] sm:$0xff]
    %v4925 = vld [vmem:[#allocation10 + $0x328] sm:$0xf]
    %v4926 = vld [vmem:[#allocation10 + $0x32c] sm:$0xff]
    %v4927 = vld [vmem:[#allocation10 + $0x334] sm:$0xff]
    %v4928 = vld [vmem:[#allocation10 + $0x33c] sm:$0xff]
    %v4929 = vld [vmem:[#allocation10 + $0x344] sm:$0xf]
    %v4930 = vld [vmem:[#allocation10 + $0x348] sm:$0xff]
    %v4931 = vld [vmem:[#allocation10 + $0x350] sm:$0xff]
    %v4932 = vld [vmem:[#allocation10 + $0x358] sm:$0xff]
    %v4933 = vld [vmem:[#allocation10 + $0x360] sm:$0xf]
    %v4934 = vld [vmem:[#allocation10 + $0x364] sm:$0xff]
    %v4935 = vld [vmem:[#allocation10 + $0x36c] sm:$0xff]
    %v4936 = vld [vmem:[#allocation10 + $0x374] sm:$0xff]
    %v4937 = vld [vmem:[#allocation10 + $0x37c] sm:$0xf]
    %v4938 = vld [vmem:[#allocation10 + $0x380] sm:$0xff]
    %v4939 = vld [vmem:[#allocation10 + $0x388] sm:$0xff]
    %v4940 = vld [vmem:[#allocation10 + $0x390] sm:$0xff]
    %v4941 = vld [vmem:[#allocation10 + $0x398] sm:$0xf]
    %v4942 = vld [vmem:[#allocation10 + $0x39c] sm:$0xff]
    %v4943 = vld [vmem:[#allocation10 + $0x3a4] sm:$0xff]
    %v4944 = vld [vmem:[#allocation10 + $0x3ac] sm:$0xff]
    %v4945 = vld [vmem:[#allocation10 + $0x3b4] sm:$0xf]
    %v4946 = vld [vmem:[#allocation10 + $0x3b8] sm:$0xff]
    %v4947 = vld [vmem:[#allocation10 + $0x3c0] sm:$0xff]
    %v4948 = vld [vmem:[#allocation10 + $0x3c8] sm:$0xff]
    %v4949 = vld [vmem:[#allocation10 + $0x3d0] sm:$0xf]
    %v4950 = vld [vmem:[#allocation10 + $0x3d4] sm:$0xff]
    %v4951 = vld [vmem:[#allocation10 + $0x3dc] sm:$0xff]
    %v4952 = vld [vmem:[#allocation10 + $0x3e4] sm:$0xff]
    %v4953 = vld [vmem:[#allocation10 + $0x3ec] sm:$0xf]
    %v4954 = vld [vmem:[#allocation10 + $0x3f0] sm:$0xff]
    %v4955 = vld [vmem:[#allocation10 + $0x3f8] sm:$0xff]
    %v4956 = vld [vmem:[#allocation10 + $0x400] sm:$0xff]
    %v4957 = vld [vmem:[#allocation10 + $0x408] sm:$0xf]
    %v4958 = vld [vmem:[#allocation10 + $0x40c] sm:$0xff]
    %v4959 = vld [vmem:[#allocation10 + $0x414] sm:$0xff]
    %v4960 = vld [vmem:[#allocation10 + $0x41c] sm:$0xff]
    %v4961 = vld [vmem:[#allocation10 + $0x424] sm:$0xf]
    %v4962 = vld [vmem:[#allocation10 + $0x428] sm:$0xff]
    %v4963 = vld [vmem:[#allocation10 + $0x430] sm:$0xff]
    %v4964 = vld [vmem:[#allocation10 + $0x438] sm:$0xff]
    %v4965 = vld [vmem:[#allocation10 + $0x440] sm:$0xf]
    %v4966 = vld [vmem:[#allocation10 + $0x444] sm:$0xff]
    %v4967 = vld [vmem:[#allocation10 + $0x44c] sm:$0xff]
    %v4968 = vld [vmem:[#allocation10 + $0x454] sm:$0xff]
    %v4969 = vld [vmem:[#allocation10 + $0x45c] sm:$0xf]
    %v4970 = vld [vmem:[#allocation10 + $0x460] sm:$0xff]
    %v4971 = vld [vmem:[#allocation10 + $0x468] sm:$0xff]
    %v4972 = vld [vmem:[#allocation10 + $0x470] sm:$0xff]
    %v4973 = vld [vmem:[#allocation10 + $0x478] sm:$0xf]
    %v4974 = vld [vmem:[#allocation10 + $0x47c] sm:$0xff]
    %v4975 = vld [vmem:[#allocation10 + $0x484] sm:$0xff]
    %v4976 = vld [vmem:[#allocation10 + $0x48c] sm:$0xff]
    %v4977 = vld [vmem:[#allocation10 + $0x494] sm:$0xf]
    %v4978 = vld [vmem:[#allocation10 + $0x498] sm:$0xff]
    %v4979 = vld [vmem:[#allocation10 + $0x4a0] sm:$0xff]
    %v4980 = vld [vmem:[#allocation10 + $0x4a8] sm:$0xff]
    %v4981 = vld [vmem:[#allocation10 + $0x4b0] sm:$0xf]
    %v4982 = vld [vmem:[#allocation10 + $0x4b4] sm:$0xff]
    %v4983 = vld [vmem:[#allocation10 + $0x4bc] sm:$0xff]
    %v4984 = vld [vmem:[#allocation10 + $0x4c4] sm:$0xff]
    %v4985 = vld [vmem:[#allocation10 + $0x4cc] sm:$0xf]
    %v4986 = vld [vmem:[#allocation10 + $0x4d0] sm:$0xff]
    %v4987 = vld [vmem:[#allocation10 + $0x4d8] sm:$0xff]
    %v4988 = vld [vmem:[#allocation10 + $0x4e0] sm:$0xff]
    %v4989 = vld [vmem:[#allocation10 + $0x4e8] sm:$0xf]
    %v4990 = vld [vmem:[#allocation10 + $0x4ec] sm:$0xff]
    %v4991 = vld [vmem:[#allocation10 + $0x4f4] sm:$0xff]
    %v4992 = vld [vmem:[#allocation10 + $0x4fc] sm:$0xff]
    %v4993 = vld [vmem:[#allocation10 + $0x504] sm:$0xf]
    %v4994 = vld [vmem:[#allocation10 + $0x508] sm:$0xff]
    %v4995 = vld [vmem:[#allocation10 + $0x510] sm:$0xff]
    %v4996 = vld [vmem:[#allocation10 + $0x518] sm:$0xff]
    %v4997 = vld [vmem:[#allocation10 + $0x520] sm:$0xf]
    %v4998 = vld [vmem:[#allocation10 + $0x524] sm:$0xff]
    %v4999 = vld [vmem:[#allocation10 + $0x52c] sm:$0xff]
    %v5000 = vld [vmem:[#allocation10 + $0x534] sm:$0xff]
    %v5001 = vld [vmem:[#allocation10 + $0x53c] sm:$0xf]
    %v5002 = vld [vmem:[#allocation10 + $0x540] sm:$0xff]
    %v5003 = vld [vmem:[#allocation10 + $0x548] sm:$0xff]
    %v5004 = vld [vmem:[#allocation10 + $0x550] sm:$0xff]
    %v5005 = vld [vmem:[#allocation10 + $0x558] sm:$0xf]
    %v5006 = vld [vmem:[#allocation10 + $0x55c] sm:$0xff]
    %v5007 = vld [vmem:[#allocation10 + $0x564] sm:$0xff]
    %v5008 = vld [vmem:[#allocation10 + $0x56c] sm:$0xff]
    %v5009 = vld [vmem:[#allocation10 + $0x574] sm:$0xf]
    %v5010 = vld [vmem:[#allocation10 + $0x578] sm:$0xff]
    %v5011 = vld [vmem:[#allocation10 + $0x580] sm:$0xff]
    %v5012 = vld [vmem:[#allocation10 + $0x588] sm:$0xff]
    %v5013 = vld [vmem:[#allocation10 + $0x590] sm:$0xf]
    %v5014 = vld [vmem:[#allocation10 + $0x594] sm:$0xff]
    %v5015 = vld [vmem:[#allocation10 + $0x59c] sm:$0xff]
    %v5016 = vld [vmem:[#allocation10 + $0x5a4] sm:$0xff]
    %v5017 = vld [vmem:[#allocation10 + $0x5ac] sm:$0xf]
    %v5018 = vld [vmem:[#allocation10 + $0x5b0] sm:$0xff]
    %v5019 = vld [vmem:[#allocation10 + $0x5b8] sm:$0xff]
    %v5020 = vld [vmem:[#allocation10 + $0x5c0] sm:$0xff]
    %v5021 = vld [vmem:[#allocation10 + $0x5c8] sm:$0xf]
    %v5022 = vld [vmem:[#allocation10 + $0x5cc] sm:$0xff]
    %v5023 = vld [vmem:[#allocation10 + $0x5d4] sm:$0xff]
    %v5024 = vld [vmem:[#allocation10 + $0x5dc] sm:$0xff]
    %v5025 = vld [vmem:[#allocation10 + $0x5e4] sm:$0xf]
    %v5026 = vld [vmem:[#allocation10 + $0x5e8] sm:$0xff]
    %v5027 = vld [vmem:[#allocation10 + $0x5f0] sm:$0xff]
    %v5028 = vld [vmem:[#allocation10 + $0x5f8] sm:$0xff]
    %v5029 = vld [vmem:[#allocation10 + $0x600] sm:$0xf]
    %v5030 = vld [vmem:[#allocation10 + $0x604] sm:$0xff]
    %v5031 = vld [vmem:[#allocation10 + $0x60c] sm:$0xff]
    %v5032 = vld [vmem:[#allocation10 + $0x614] sm:$0xff]
    %v5033 = vld [vmem:[#allocation10 + $0x61c] sm:$0xf]
    %v5034 = vld [vmem:[#allocation10 + $0x620] sm:$0xff]
    %v5035 = vld [vmem:[#allocation10 + $0x628] sm:$0xff]
    %v5036 = vld [vmem:[#allocation10 + $0x630] sm:$0xff]
    %v5037 = vld [vmem:[#allocation10 + $0x638] sm:$0xf]
    %v5038 = vld [vmem:[#allocation10 + $0x63c] sm:$0xff]
    %v5039 = vld [vmem:[#allocation10 + $0x644] sm:$0xff]
    %v5040 = vld [vmem:[#allocation10 + $0x64c] sm:$0xff]
    %v5041 = vld [vmem:[#allocation10 + $0x654] sm:$0xf]
    %v5042 = vld [vmem:[#allocation10 + $0x658] sm:$0xff]
    %v5043 = vld [vmem:[#allocation10 + $0x660] sm:$0xff]
    %v5044 = vld [vmem:[#allocation10 + $0x668] sm:$0xff]
    %v5045 = vld [vmem:[#allocation10 + $0x670] sm:$0xf]
    %v5046 = vld [vmem:[#allocation10 + $0x674] sm:$0xff]
    %v5047 = vld [vmem:[#allocation10 + $0x67c] sm:$0xff]
    %v5048 = vld [vmem:[#allocation10 + $0x684] sm:$0xff]
    %v5049 = vld [vmem:[#allocation10 + $0x68c] sm:$0xf]
    %v5050 = vld [vmem:[#allocation10 + $0x690] sm:$0xff]
    %v5051 = vld [vmem:[#allocation10 + $0x698] sm:$0xff]
    %v5052 = vld [vmem:[#allocation10 + $0x6a0] sm:$0xff]
    %v5053 = vld [vmem:[#allocation10 + $0x6a8] sm:$0xf]
    %v5054 = vld [vmem:[#allocation10 + $0x6ac] sm:$0xff]
    %v5055 = vld [vmem:[#allocation10 + $0x6b4] sm:$0xff]
    %v5056 = vld [vmem:[#allocation10 + $0x6bc] sm:$0xff]
    %v5057 = vld [vmem:[#allocation10 + $0x6c4] sm:$0xf]
    %v5058 = vld [vmem:[#allocation10 + $0x6c8] sm:$0xff]
    %v5059 = vld [vmem:[#allocation10 + $0x6d0] sm:$0xff]
    %v5060 = vld [vmem:[#allocation10 + $0x6d8] sm:$0xff]
    %v5061 = vld [vmem:[#allocation10 + $0x6e0] sm:$0xf]
    %v5062 = vld [vmem:[#allocation10 + $0x6e4] sm:$0xff]
    %v5063 = vld [vmem:[#allocation10 + $0x6ec] sm:$0xff]
    %v5064 = vld [vmem:[#allocation10 + $0x6f4] sm:$0xff]
    %v5065 = vld [vmem:[#allocation10 + $0x6fc] sm:$0xf]
    %s5066 = scalar_lea.vmem [#allocation11], 231
    %v5067 = vld [vmem:[%s5066] ss:$8 sm:$0xf]
    %v5068 = vld [vmem:[%s5066] ss:$8 sm:$0xf0]
    %v5069 = vor.u32 %v5067, %v5068
    %v5070 = vpack.c.bf16 %v4806, %v4806
    %v5071 = vpack.c.bf16 %v4807, %v4807
    %v5072 = vpack.c.bf16 %v4808, %v4808
    %v5073 = vpack.c.bf16 %v4809, %v4809
    %v5075 = vlaneseq
    %v5076 = vshrl.u32 %v5075, 7
    %v5077 = vsub.s32 0, %v5076
    %v5078 = vrot.slane %v5069, %v5077
    %v5079 = vlaneseq
    %v5080 = vshrl.u32 %v5079, 7
    %v5081 = vsub.s32 1, %v5080
    %v5082 = vrot.slane %v5069, %v5081
    %v5083 = vlaneseq
    %v5084 = vshrl.u32 %v5083, 7
    %v5085 = vsub.s32 2, %v5084
    %v5086 = vrot.slane %v5069, %v5085
    %v5087 = vlaneseq
    %v5088 = vshrl.u32 %v5087, 7
    %v5089 = vsub.s32 3, %v5088
    %v5090 = vrot.slane %v5069, %v5089
    %v5091 = vlaneseq
    %v5092 = vshrl.u32 %v5091, 7
    %v5093 = vsub.s32 4, %v5092
    %v5094 = vrot.slane %v5069, %v5093
    %v5095 = vlaneseq
    %v5096 = vshrl.u32 %v5095, 7
    %v5097 = vsub.s32 5, %v5096
    %v5098 = vrot.slane %v5069, %v5097
    %v5099 = vlaneseq
    %v5100 = vshrl.u32 %v5099, 7
    %v5101 = vsub.s32 6, %v5100
    %v5102 = vrot.slane %v5069, %v5101
    %v5366 = vunpack.c.l.b16 %v4810
    %v5367 = vunpack.c.h.b16 %v4810
    %v5368 = vunpack.c.l.b16 %v4811
    %v5369 = vunpack.c.h.b16 %v4811
    %v5370 = vunpack.c.l.b16 %v4812
    %v5371 = vunpack.c.h.b16 %v4812
    %v5372 = vunpack.c.l.b16 %v4813
    %v5373 = vunpack.c.l.b16 %v4814
    %v5374 = vunpack.c.h.b16 %v4814
    %v5375 = vunpack.c.l.b16 %v4815
    %v5376 = vunpack.c.h.b16 %v4815
    %v5377 = vunpack.c.l.b16 %v4816
    %v5378 = vunpack.c.h.b16 %v4816
    %v5379 = vunpack.c.l.b16 %v4817
    %v5380 = vunpack.c.l.b16 %v4818
    %v5381 = vunpack.c.h.b16 %v4818
    %v5382 = vunpack.c.l.b16 %v4819
    %v5383 = vunpack.c.h.b16 %v4819
    %v5384 = vunpack.c.l.b16 %v4820
    %v5385 = vunpack.c.h.b16 %v4820
    %v5386 = vunpack.c.l.b16 %v4821
    %v5387 = vunpack.c.l.b16 %v4822
    %v5388 = vunpack.c.h.b16 %v4822
    %v5389 = vunpack.c.l.b16 %v4823
    %v5390 = vunpack.c.h.b16 %v4823
    %v5391 = vunpack.c.l.b16 %v4824
    %v5392 = vunpack.c.h.b16 %v4824
    %v5393 = vunpack.c.l.b16 %v4825
    %v5394 = vunpack.c.l.b16 %v4826
    %v5395 = vunpack.c.h.b16 %v4826
    %v5396 = vunpack.c.l.b16 %v4827
    %v5397 = vunpack.c.h.b16 %v4827
    %v5398 = vunpack.c.l.b16 %v4828
    %v5399 = vunpack.c.h.b16 %v4828
    %v5400 = vunpack.c.l.b16 %v4829
    %v5401 = vunpack.c.l.b16 %v4830
    %v5402 = vunpack.c.h.b16 %v4830
    %v5403 = vunpack.c.l.b16 %v4831
    %v5404 = vunpack.c.h.b16 %v4831
    %v5405 = vunpack.c.l.b16 %v4832
    %v5406 = vunpack.c.h.b16 %v4832
    %v5407 = vunpack.c.l.b16 %v4833
    %v5408 = vunpack.c.l.b16 %v4834
    %v5409 = vunpack.c.h.b16 %v4834
    %v5410 = vunpack.c.l.b16 %v4835
    %v5411 = vunpack.c.h.b16 %v4835
    %v5412 = vunpack.c.l.b16 %v4836
    %v5413 = vunpack.c.h.b16 %v4836
    %v5414 = vunpack.c.l.b16 %v4837
    %v5415 = vunpack.c.l.b16 %v4838
    %v5416 = vunpack.c.h.b16 %v4838
    %v5417 = vunpack.c.l.b16 %v4839
    %v5418 = vunpack.c.h.b16 %v4839
    %v5419 = vunpack.c.l.b16 %v4840
    %v5420 = vunpack.c.h.b16 %v4840
    %v5421 = vunpack.c.l.b16 %v4841
    %v5422 = vunpack.c.l.b16 %v4842
    %v5423 = vunpack.c.h.b16 %v4842
    %v5424 = vunpack.c.l.b16 %v4843
    %v5425 = vunpack.c.h.b16 %v4843
    %v5426 = vunpack.c.l.b16 %v4844
    %v5427 = vunpack.c.h.b16 %v4844
    %v5428 = vunpack.c.l.b16 %v4845
    %v5429 = vunpack.c.l.b16 %v4846
    %v5430 = vunpack.c.h.b16 %v4846
    %v5431 = vunpack.c.l.b16 %v4847
    %v5432 = vunpack.c.h.b16 %v4847
    %v5433 = vunpack.c.l.b16 %v4848
    %v5434 = vunpack.c.h.b16 %v4848
    %v5435 = vunpack.c.l.b16 %v4849
    %v5436 = vunpack.c.l.b16 %v4850
    %v5437 = vunpack.c.h.b16 %v4850
    %v5438 = vunpack.c.l.b16 %v4851
    %v5439 = vunpack.c.h.b16 %v4851
    %v5440 = vunpack.c.l.b16 %v4852
    %v5441 = vunpack.c.h.b16 %v4852
    %v5442 = vunpack.c.l.b16 %v4853
    %v5443 = vunpack.c.l.b16 %v4854
    %v5444 = vunpack.c.h.b16 %v4854
    %v5445 = vunpack.c.l.b16 %v4855
    %v5446 = vunpack.c.h.b16 %v4855
    %v5447 = vunpack.c.l.b16 %v4856
    %v5448 = vunpack.c.h.b16 %v4856
    %v5449 = vunpack.c.l.b16 %v4857
    %v5450 = vunpack.c.l.b16 %v4858
    %v5451 = vunpack.c.h.b16 %v4858
    %v5452 = vunpack.c.l.b16 %v4859
    %v5453 = vunpack.c.h.b16 %v4859
    %v5454 = vunpack.c.l.b16 %v4860
    %v5455 = vunpack.c.h.b16 %v4860
    %v5456 = vunpack.c.l.b16 %v4861
    %v5457 = vunpack.c.l.b16 %v4862
    %v5458 = vunpack.c.h.b16 %v4862
    %v5459 = vunpack.c.l.b16 %v4863
    %v5460 = vunpack.c.h.b16 %v4863
    %v5461 = vunpack.c.l.b16 %v4864
    %v5462 = vunpack.c.h.b16 %v4864
    %v5463 = vunpack.c.l.b16 %v4865
    %v5464 = vunpack.c.l.b16 %v4866
    %v5465 = vunpack.c.h.b16 %v4866
    %v5466 = vunpack.c.l.b16 %v4867
    %v5467 = vunpack.c.h.b16 %v4867
    %v5468 = vunpack.c.l.b16 %v4868
    %v5469 = vunpack.c.h.b16 %v4868
    %v5470 = vunpack.c.l.b16 %v4869
    %v5471 = vunpack.c.l.b16 %v4870
    %v5472 = vunpack.c.h.b16 %v4870
    %v5473 = vunpack.c.l.b16 %v4871
    %v5474 = vunpack.c.h.b16 %v4871
    %v5475 = vunpack.c.l.b16 %v4872
    %v5476 = vunpack.c.h.b16 %v4872
    %v5477 = vunpack.c.l.b16 %v4873
    %v5478 = vunpack.c.l.b16 %v4874
    %v5479 = vunpack.c.h.b16 %v4874
    %v5480 = vunpack.c.l.b16 %v4875
    %v5481 = vunpack.c.h.b16 %v4875
    %v5482 = vunpack.c.l.b16 %v4876
    %v5483 = vunpack.c.h.b16 %v4876
    %v5484 = vunpack.c.l.b16 %v4877
    %v5485 = vunpack.c.l.b16 %v4878
    %v5486 = vunpack.c.h.b16 %v4878
    %v5487 = vunpack.c.l.b16 %v4879
    %v5488 = vunpack.c.h.b16 %v4879
    %v5489 = vunpack.c.l.b16 %v4880
    %v5490 = vunpack.c.h.b16 %v4880
    %v5491 = vunpack.c.l.b16 %v4881
    %v5492 = vunpack.c.l.b16 %v4882
    %v5493 = vunpack.c.h.b16 %v4882
    %v5494 = vunpack.c.l.b16 %v4883
    %v5495 = vunpack.c.h.b16 %v4883
    %v5496 = vunpack.c.l.b16 %v4884
    %v5497 = vunpack.c.h.b16 %v4884
    %v5498 = vunpack.c.l.b16 %v4885
    %v5499 = vunpack.c.l.b16 %v4886
    %v5500 = vunpack.c.h.b16 %v4886
    %v5501 = vunpack.c.l.b16 %v4887
    %v5502 = vunpack.c.h.b16 %v4887
    %v5503 = vunpack.c.l.b16 %v4888
    %v5504 = vunpack.c.h.b16 %v4888
    %v5505 = vunpack.c.l.b16 %v4889
    %v5506 = vunpack.c.l.b16 %v4890
    %v5507 = vunpack.c.h.b16 %v4890
    %v5508 = vunpack.c.l.b16 %v4891
    %v5509 = vunpack.c.h.b16 %v4891
    %v5510 = vunpack.c.l.b16 %v4892
    %v5511 = vunpack.c.h.b16 %v4892
    %v5512 = vunpack.c.l.b16 %v4893
    %v5513 = vunpack.c.l.b16 %v4894
    %v5514 = vunpack.c.h.b16 %v4894
    %v5515 = vunpack.c.l.b16 %v4895
    %v5516 = vunpack.c.h.b16 %v4895
    %v5517 = vunpack.c.l.b16 %v4896
    %v5518 = vunpack.c.h.b16 %v4896
    %v5519 = vunpack.c.l.b16 %v4897
    %v5520 = vunpack.c.l.b16 %v4898
    %v5521 = vunpack.c.h.b16 %v4898
    %v5522 = vunpack.c.l.b16 %v4899
    %v5523 = vunpack.c.h.b16 %v4899
    %v5524 = vunpack.c.l.b16 %v4900
    %v5525 = vunpack.c.h.b16 %v4900
    %v5526 = vunpack.c.l.b16 %v4901
    %v5527 = vunpack.c.l.b16 %v4902
    %v5528 = vunpack.c.h.b16 %v4902
    %v5529 = vunpack.c.l.b16 %v4903
    %v5530 = vunpack.c.h.b16 %v4903
    %v5531 = vunpack.c.l.b16 %v4904
    %v5532 = vunpack.c.h.b16 %v4904
    %v5533 = vunpack.c.l.b16 %v4905
    %v5534 = vunpack.c.l.b16 %v4906
    %v5535 = vunpack.c.h.b16 %v4906
    %v5536 = vunpack.c.l.b16 %v4907
    %v5537 = vunpack.c.h.b16 %v4907
    %v5538 = vunpack.c.l.b16 %v4908
    %v5539 = vunpack.c.h.b16 %v4908
    %v5540 = vunpack.c.l.b16 %v4909
    %v5541 = vunpack.c.l.b16 %v4910
    %v5542 = vunpack.c.h.b16 %v4910
    %v5543 = vunpack.c.l.b16 %v4911
    %v5544 = vunpack.c.h.b16 %v4911
    %v5545 = vunpack.c.l.b16 %v4912
    %v5546 = vunpack.c.h.b16 %v4912
    %v5547 = vunpack.c.l.b16 %v4913
    %v5548 = vunpack.c.l.b16 %v4914
    %v5549 = vunpack.c.h.b16 %v4914
    %v5550 = vunpack.c.l.b16 %v4915
    %v5551 = vunpack.c.h.b16 %v4915
    %v5552 = vunpack.c.l.b16 %v4916
    %v5553 = vunpack.c.h.b16 %v4916
    %v5554 = vunpack.c.l.b16 %v4917
    %v5555 = vunpack.c.l.b16 %v4918
    %v5556 = vunpack.c.h.b16 %v4918
    %v5557 = vunpack.c.l.b16 %v4919
    %v5558 = vunpack.c.h.b16 %v4919
    %v5559 = vunpack.c.l.b16 %v4920
    %v5560 = vunpack.c.h.b16 %v4920
    %v5561 = vunpack.c.l.b16 %v4921
    %v5562 = vunpack.c.l.b16 %v4922
    %v5563 = vunpack.c.h.b16 %v4922
    %v5564 = vunpack.c.l.b16 %v4923
    %v5565 = vunpack.c.h.b16 %v4923
    %v5566 = vunpack.c.l.b16 %v4924
    %v5567 = vunpack.c.h.b16 %v4924
    %v5568 = vunpack.c.l.b16 %v4925
    %v5569 = vunpack.c.l.b16 %v4926
    %v5570 = vunpack.c.h.b16 %v4926
    %v5571 = vunpack.c.l.b16 %v4927
    %v5572 = vunpack.c.h.b16 %v4927
    %v5573 = vunpack.c.l.b16 %v4928
    %v5574 = vunpack.c.h.b16 %v4928
    %v5575 = vunpack.c.l.b16 %v4929
    %v5576 = vunpack.c.l.b16 %v4930
    %v5577 = vunpack.c.h.b16 %v4930
    %v5578 = vunpack.c.l.b16 %v4931
    %v5579 = vunpack.c.h.b16 %v4931
    %v5580 = vunpack.c.l.b16 %v4932
    %v5581 = vunpack.c.h.b16 %v4932
    %v5582 = vunpack.c.l.b16 %v4933
    %v5583 = vunpack.c.l.b16 %v4934
    %v5584 = vunpack.c.h.b16 %v4934
    %v5585 = vunpack.c.l.b16 %v4935
    %v5586 = vunpack.c.h.b16 %v4935
    %v5587 = vunpack.c.l.b16 %v4936
    %v5588 = vunpack.c.h.b16 %v4936
    %v5589 = vunpack.c.l.b16 %v4937
    %v5590 = vunpack.c.l.b16 %v4938
    %v5591 = vunpack.c.h.b16 %v4938
    %v5592 = vunpack.c.l.b16 %v4939
    %v5593 = vunpack.c.h.b16 %v4939
    %v5594 = vunpack.c.l.b16 %v4940
    %v5595 = vunpack.c.h.b16 %v4940
    %v5596 = vunpack.c.l.b16 %v4941
    %v5597 = vunpack.c.l.b16 %v4942
    %v5598 = vunpack.c.h.b16 %v4942
    %v5599 = vunpack.c.l.b16 %v4943
    %v5600 = vunpack.c.h.b16 %v4943
    %v5601 = vunpack.c.l.b16 %v4944
    %v5602 = vunpack.c.h.b16 %v4944
    %v5603 = vunpack.c.l.b16 %v4945
    %v5604 = vunpack.c.l.b16 %v4946
    %v5605 = vunpack.c.h.b16 %v4946
    %v5606 = vunpack.c.l.b16 %v4947
    %v5607 = vunpack.c.h.b16 %v4947
    %v5608 = vunpack.c.l.b16 %v4948
    %v5609 = vunpack.c.h.b16 %v4948
    %v5610 = vunpack.c.l.b16 %v4949
    %v5611 = vunpack.c.l.b16 %v4950
    %v5612 = vunpack.c.h.b16 %v4950
    %v5613 = vunpack.c.l.b16 %v4951
    %v5614 = vunpack.c.h.b16 %v4951
    %v5615 = vunpack.c.l.b16 %v4952
    %v5616 = vunpack.c.h.b16 %v4952
    %v5617 = vunpack.c.l.b16 %v4953
    %v5618 = vunpack.c.l.b16 %v4954
    %v5619 = vunpack.c.h.b16 %v4954
    %v5620 = vunpack.c.l.b16 %v4955
    %v5621 = vunpack.c.h.b16 %v4955
    %v5622 = vunpack.c.l.b16 %v4956
    %v5623 = vunpack.c.h.b16 %v4956
    %v5624 = vunpack.c.l.b16 %v4957
    %v5625 = vunpack.c.l.b16 %v4958
    %v5626 = vunpack.c.h.b16 %v4958
    %v5627 = vunpack.c.l.b16 %v4959
    %v5628 = vunpack.c.h.b16 %v4959
    %v5629 = vunpack.c.l.b16 %v4960
    %v5630 = vunpack.c.h.b16 %v4960
    %v5631 = vunpack.c.l.b16 %v4961
    %v5632 = vunpack.c.l.b16 %v4962
    %v5633 = vunpack.c.h.b16 %v4962
    %v5634 = vunpack.c.l.b16 %v4963
    %v5635 = vunpack.c.h.b16 %v4963
    %v5636 = vunpack.c.l.b16 %v4964
    %v5637 = vunpack.c.h.b16 %v4964
    %v5638 = vunpack.c.l.b16 %v4965
    %v5639 = vunpack.c.l.b16 %v4966
    %v5640 = vunpack.c.h.b16 %v4966
    %v5641 = vunpack.c.l.b16 %v4967
    %v5642 = vunpack.c.h.b16 %v4967
    %v5643 = vunpack.c.l.b16 %v4968
    %v5644 = vunpack.c.h.b16 %v4968
    %v5645 = vunpack.c.l.b16 %v4969
    %v5646 = vunpack.c.l.b16 %v4970
    %v5647 = vunpack.c.h.b16 %v4970
    %v5648 = vunpack.c.l.b16 %v4971
    %v5649 = vunpack.c.h.b16 %v4971
    %v5650 = vunpack.c.l.b16 %v4972
    %v5651 = vunpack.c.h.b16 %v4972
    %v5652 = vunpack.c.l.b16 %v4973
    %v5653 = vunpack.c.l.b16 %v4974
    %v5654 = vunpack.c.h.b16 %v4974
    %v5655 = vunpack.c.l.b16 %v4975
    %v5656 = vunpack.c.h.b16 %v4975
    %v5657 = vunpack.c.l.b16 %v4976
    %v5658 = vunpack.c.h.b16 %v4976
    %v5659 = vunpack.c.l.b16 %v4977
    %v5660 = vunpack.c.l.b16 %v4978
    %v5661 = vunpack.c.h.b16 %v4978
    %v5662 = vunpack.c.l.b16 %v4979
    %v5663 = vunpack.c.h.b16 %v4979
    %v5664 = vunpack.c.l.b16 %v4980
    %v5665 = vunpack.c.h.b16 %v4980
    %v5666 = vunpack.c.l.b16 %v4981
    %v5667 = vunpack.c.l.b16 %v4982
    %v5668 = vunpack.c.h.b16 %v4982
    %v5669 = vunpack.c.l.b16 %v4983
    %v5670 = vunpack.c.h.b16 %v4983
    %v5671 = vunpack.c.l.b16 %v4984
    %v5672 = vunpack.c.h.b16 %v4984
    %v5673 = vunpack.c.l.b16 %v4985
    %v5674 = vunpack.c.l.b16 %v4986
    %v5675 = vunpack.c.h.b16 %v4986
    %v5676 = vunpack.c.l.b16 %v4987
    %v5677 = vunpack.c.h.b16 %v4987
    %v5678 = vunpack.c.l.b16 %v4988
    %v5679 = vunpack.c.h.b16 %v4988
    %v5680 = vunpack.c.l.b16 %v4989
    %v5681 = vunpack.c.l.b16 %v4990
    %v5682 = vunpack.c.h.b16 %v4990
    %v5683 = vunpack.c.l.b16 %v4991
    %v5684 = vunpack.c.h.b16 %v4991
    %v5685 = vunpack.c.l.b16 %v4992
    %v5686 = vunpack.c.h.b16 %v4992
    %v5687 = vunpack.c.l.b16 %v4993
    %v5688 = vunpack.c.l.b16 %v4994
    %v5689 = vunpack.c.h.b16 %v4994
    %v5690 = vunpack.c.l.b16 %v4995
    %v5691 = vunpack.c.h.b16 %v4995
    %v5692 = vunpack.c.l.b16 %v4996
    %v5693 = vunpack.c.h.b16 %v4996
    %v5694 = vunpack.c.l.b16 %v4997
    %v5695 = vunpack.c.l.b16 %v4998
    %v5696 = vunpack.c.h.b16 %v4998
    %v5697 = vunpack.c.l.b16 %v4999
    %v5698 = vunpack.c.h.b16 %v4999
    %v5699 = vunpack.c.l.b16 %v5000
    %v5700 = vunpack.c.h.b16 %v5000
    %v5701 = vunpack.c.l.b16 %v5001
    %v5702 = vunpack.c.l.b16 %v5002
    %v5703 = vunpack.c.h.b16 %v5002
    %v5704 = vunpack.c.l.b16 %v5003
    %v5705 = vunpack.c.h.b16 %v5003
    %v5706 = vunpack.c.l.b16 %v5004
    %v5707 = vunpack.c.h.b16 %v5004
    %v5708 = vunpack.c.l.b16 %v5005
    %v5709 = vunpack.c.l.b16 %v5006
    %v5710 = vunpack.c.h.b16 %v5006
    %v5711 = vunpack.c.l.b16 %v5007
    %v5712 = vunpack.c.h.b16 %v5007
    %v5713 = vunpack.c.l.b16 %v5008
    %v5714 = vunpack.c.h.b16 %v5008
    %v5715 = vunpack.c.l.b16 %v5009
    %v5716 = vunpack.c.l.b16 %v5010
    %v5717 = vunpack.c.h.b16 %v5010
    %v5718 = vunpack.c.l.b16 %v5011
    %v5719 = vunpack.c.h.b16 %v5011
    %v5720 = vunpack.c.l.b16 %v5012
    %v5721 = vunpack.c.h.b16 %v5012
    %v5722 = vunpack.c.l.b16 %v5013
    %v5723 = vunpack.c.l.b16 %v5014
    %v5724 = vunpack.c.h.b16 %v5014
    %v5725 = vunpack.c.l.b16 %v5015
    %v5726 = vunpack.c.h.b16 %v5015
    %v5727 = vunpack.c.l.b16 %v5016
    %v5728 = vunpack.c.h.b16 %v5016
    %v5729 = vunpack.c.l.b16 %v5017
    %v5730 = vunpack.c.l.b16 %v5018
    %v5731 = vunpack.c.h.b16 %v5018
    %v5732 = vunpack.c.l.b16 %v5019
    %v5733 = vunpack.c.h.b16 %v5019
    %v5734 = vunpack.c.l.b16 %v5020
    %v5735 = vunpack.c.h.b16 %v5020
    %v5736 = vunpack.c.l.b16 %v5021
    %v5737 = vunpack.c.l.b16 %v5022
    %v5738 = vunpack.c.h.b16 %v5022
    %v5739 = vunpack.c.l.b16 %v5023
    %v5740 = vunpack.c.h.b16 %v5023
    %v5741 = vunpack.c.l.b16 %v5024
    %v5742 = vunpack.c.h.b16 %v5024
    %v5743 = vunpack.c.l.b16 %v5025
    %v5744 = vunpack.c.l.b16 %v5026
    %v5745 = vunpack.c.h.b16 %v5026
    %v5746 = vunpack.c.l.b16 %v5027
    %v5747 = vunpack.c.h.b16 %v5027
    %v5748 = vunpack.c.l.b16 %v5028
    %v5749 = vunpack.c.h.b16 %v5028
    %v5750 = vunpack.c.l.b16 %v5029
    %v5751 = vunpack.c.l.b16 %v5030
    %v5752 = vunpack.c.h.b16 %v5030
    %v5753 = vunpack.c.l.b16 %v5031
    %v5754 = vunpack.c.h.b16 %v5031
    %v5755 = vunpack.c.l.b16 %v5032
    %v5756 = vunpack.c.h.b16 %v5032
    %v5757 = vunpack.c.l.b16 %v5033
    %v5758 = vunpack.c.l.b16 %v5034
    %v5759 = vunpack.c.h.b16 %v5034
    %v5760 = vunpack.c.l.b16 %v5035
    %v5761 = vunpack.c.h.b16 %v5035
    %v5762 = vunpack.c.l.b16 %v5036
    %v5763 = vunpack.c.h.b16 %v5036
    %v5764 = vunpack.c.l.b16 %v5037
    %v5765 = vunpack.c.l.b16 %v5038
    %v5766 = vunpack.c.h.b16 %v5038
    %v5767 = vunpack.c.l.b16 %v5039
    %v5768 = vunpack.c.h.b16 %v5039
    %v5769 = vunpack.c.l.b16 %v5040
    %v5770 = vunpack.c.h.b16 %v5040
    %v5771 = vunpack.c.l.b16 %v5041
    %v5772 = vunpack.c.l.b16 %v5042
    %v5773 = vunpack.c.h.b16 %v5042
    %v5774 = vunpack.c.l.b16 %v5043
    %v5775 = vunpack.c.h.b16 %v5043
    %v5776 = vunpack.c.l.b16 %v5044
    %v5777 = vunpack.c.h.b16 %v5044
    %v5778 = vunpack.c.l.b16 %v5045
    %v5779 = vunpack.c.l.b16 %v5046
    %v5780 = vunpack.c.h.b16 %v5046
    %v5781 = vunpack.c.l.b16 %v5047
    %v5782 = vunpack.c.h.b16 %v5047
    %v5783 = vunpack.c.l.b16 %v5048
    %v5784 = vunpack.c.h.b16 %v5048
    %v5785 = vunpack.c.l.b16 %v5049
    %v5786 = vunpack.c.l.b16 %v5050
    %v5787 = vunpack.c.h.b16 %v5050
    %v5788 = vunpack.c.l.b16 %v5051
    %v5789 = vunpack.c.h.b16 %v5051
    %v5790 = vunpack.c.l.b16 %v5052
    %v5791 = vunpack.c.h.b16 %v5052
    %v5792 = vunpack.c.l.b16 %v5053
    %v5793 = vunpack.c.l.b16 %v5054
    %v5794 = vunpack.c.h.b16 %v5054
    %v5795 = vunpack.c.l.b16 %v5055
    %v5796 = vunpack.c.h.b16 %v5055
    %v5797 = vunpack.c.l.b16 %v5056
    %v5798 = vunpack.c.h.b16 %v5056
    %v5799 = vunpack.c.l.b16 %v5057
    %v5800 = vunpack.c.l.b16 %v5058
    %v5801 = vunpack.c.h.b16 %v5058
    %v5802 = vunpack.c.l.b16 %v5059
    %v5803 = vunpack.c.h.b16 %v5059
    %v5804 = vunpack.c.l.b16 %v5060
    %v5805 = vunpack.c.h.b16 %v5060
    %v5806 = vunpack.c.l.b16 %v5061
    %v5807 = vunpack.c.l.b16 %v5062
    %v5808 = vunpack.c.h.b16 %v5062
    %v5809 = vunpack.c.l.b16 %v5063
    %v5810 = vunpack.c.h.b16 %v5063
    %v5811 = vunpack.c.l.b16 %v5064
    %v5812 = vunpack.c.h.b16 %v5064
    %v5813 = vunpack.c.l.b16 %v5065
    %v5814 = vpack.c.b16 %v5373, %v5366
    %v5815 = vpack.c.b16 %v5374, %v5367
    %v5816 = vpack.c.b16 %v5375, %v5368
    %v5817 = vpack.c.b16 %v5376, %v5369
    %v5818 = vpack.c.b16 %v5377, %v5370
    %v5819 = vpack.c.b16 %v5378, %v5371
    %v5820 = vpack.c.b16 %v5379, %v5372
    %v5821 = vpack.c.b16 %v5387, %v5380
    %v5822 = vpack.c.b16 %v5388, %v5381
    %v5823 = vpack.c.b16 %v5389, %v5382
    %v5824 = vpack.c.b16 %v5390, %v5383
    %v5825 = vpack.c.b16 %v5391, %v5384
    %v5826 = vpack.c.b16 %v5392, %v5385
    %v5827 = vpack.c.b16 %v5393, %v5386
    %v5828 = vpack.c.b16 %v5401, %v5394
    %v5829 = vpack.c.b16 %v5402, %v5395
    %v5830 = vpack.c.b16 %v5403, %v5396
    %v5831 = vpack.c.b16 %v5404, %v5397
    %v5832 = vpack.c.b16 %v5405, %v5398
    %v5833 = vpack.c.b16 %v5406, %v5399
    %v5834 = vpack.c.b16 %v5407, %v5400
    %v5835 = vpack.c.b16 %v5415, %v5408
    %v5836 = vpack.c.b16 %v5416, %v5409
    %v5837 = vpack.c.b16 %v5417, %v5410
    %v5838 = vpack.c.b16 %v5418, %v5411
    %v5839 = vpack.c.b16 %v5419, %v5412
    %v5840 = vpack.c.b16 %v5420, %v5413
    %v5841 = vpack.c.b16 %v5421, %v5414
    %v5842 = vpack.c.b16 %v5429, %v5422
    %v5843 = vpack.c.b16 %v5430, %v5423
    %v5844 = vpack.c.b16 %v5431, %v5424
    %v5845 = vpack.c.b16 %v5432, %v5425
    %v5846 = vpack.c.b16 %v5433, %v5426
    %v5847 = vpack.c.b16 %v5434, %v5427
    %v5848 = vpack.c.b16 %v5435, %v5428
    %v5849 = vpack.c.b16 %v5443, %v5436
    %v5850 = vpack.c.b16 %v5444, %v5437
    %v5851 = vpack.c.b16 %v5445, %v5438
    %v5852 = vpack.c.b16 %v5446, %v5439
    %v5853 = vpack.c.b16 %v5447, %v5440
    %v5854 = vpack.c.b16 %v5448, %v5441
    %v5855 = vpack.c.b16 %v5449, %v5442
    %v5856 = vpack.c.b16 %v5457, %v5450
    %v5857 = vpack.c.b16 %v5458, %v5451
    %v5858 = vpack.c.b16 %v5459, %v5452
    %v5859 = vpack.c.b16 %v5460, %v5453
    %v5860 = vpack.c.b16 %v5461, %v5454
    %v5861 = vpack.c.b16 %v5462, %v5455
    %v5862 = vpack.c.b16 %v5463, %v5456
    %v5863 = vpack.c.b16 %v5471, %v5464
    %v5864 = vpack.c.b16 %v5472, %v5465
    %v5865 = vpack.c.b16 %v5473, %v5466
    %v5866 = vpack.c.b16 %v5474, %v5467
    %v5867 = vpack.c.b16 %v5475, %v5468
    %v5868 = vpack.c.b16 %v5476, %v5469
    %v5869 = vpack.c.b16 %v5477, %v5470
    %v5870 = vpack.c.b16 %v5485, %v5478
    %v5871 = vpack.c.b16 %v5486, %v5479
    %v5872 = vpack.c.b16 %v5487, %v5480
    %v5873 = vpack.c.b16 %v5488, %v5481
    %v5874 = vpack.c.b16 %v5489, %v5482
    %v5875 = vpack.c.b16 %v5490, %v5483
    %v5876 = vpack.c.b16 %v5491, %v5484
    %v5877 = vpack.c.b16 %v5499, %v5492
    %v5878 = vpack.c.b16 %v5500, %v5493
    %v5879 = vpack.c.b16 %v5501, %v5494
    %v5880 = vpack.c.b16 %v5502, %v5495
    %v5881 = vpack.c.b16 %v5503, %v5496
    %v5882 = vpack.c.b16 %v5504, %v5497
    %v5883 = vpack.c.b16 %v5505, %v5498
    %v5884 = vpack.c.b16 %v5513, %v5506
    %v5885 = vpack.c.b16 %v5514, %v5507
    %v5886 = vpack.c.b16 %v5515, %v5508
    %v5887 = vpack.c.b16 %v5516, %v5509
    %v5888 = vpack.c.b16 %v5517, %v5510
    %v5889 = vpack.c.b16 %v5518, %v5511
    %v5890 = vpack.c.b16 %v5519, %v5512
    %v5891 = vpack.c.b16 %v5527, %v5520
    %v5892 = vpack.c.b16 %v5528, %v5521
    %v5893 = vpack.c.b16 %v5529, %v5522
    %v5894 = vpack.c.b16 %v5530, %v5523
    %v5895 = vpack.c.b16 %v5531, %v5524
    %v5896 = vpack.c.b16 %v5532, %v5525
    %v5897 = vpack.c.b16 %v5533, %v5526
    %v5898 = vpack.c.b16 %v5541, %v5534
    %v5899 = vpack.c.b16 %v5542, %v5535
    %v5900 = vpack.c.b16 %v5543, %v5536
    %v5901 = vpack.c.b16 %v5544, %v5537
    %v5902 = vpack.c.b16 %v5545, %v5538
    %v5903 = vpack.c.b16 %v5546, %v5539
    %v5904 = vpack.c.b16 %v5547, %v5540
    %v5905 = vpack.c.b16 %v5555, %v5548
    %v5906 = vpack.c.b16 %v5556, %v5549
    %v5907 = vpack.c.b16 %v5557, %v5550
    %v5908 = vpack.c.b16 %v5558, %v5551
    %v5909 = vpack.c.b16 %v5559, %v5552
    %v5910 = vpack.c.b16 %v5560, %v5553
    %v5911 = vpack.c.b16 %v5561, %v5554
    %v5912 = vpack.c.b16 %v5569, %v5562
    %v5913 = vpack.c.b16 %v5570, %v5563
    %v5914 = vpack.c.b16 %v5571, %v5564
    %v5915 = vpack.c.b16 %v5572, %v5565
    %v5916 = vpack.c.b16 %v5573, %v5566
    %v5917 = vpack.c.b16 %v5574, %v5567
    %v5918 = vpack.c.b16 %v5575, %v5568
    %v5919 = vpack.c.b16 %v5583, %v5576
    %v5920 = vpack.c.b16 %v5584, %v5577
    %v5921 = vpack.c.b16 %v5585, %v5578
    %v5922 = vpack.c.b16 %v5586, %v5579
    %v5923 = vpack.c.b16 %v5587, %v5580
    %v5924 = vpack.c.b16 %v5588, %v5581
    %v5925 = vpack.c.b16 %v5589, %v5582
    %v5926 = vpack.c.b16 %v5597, %v5590
    %v5927 = vpack.c.b16 %v5598, %v5591
    %v5928 = vpack.c.b16 %v5599, %v5592
    %v5929 = vpack.c.b16 %v5600, %v5593
    %v5930 = vpack.c.b16 %v5601, %v5594
    %v5931 = vpack.c.b16 %v5602, %v5595
    %v5932 = vpack.c.b16 %v5603, %v5596
    %v5933 = vpack.c.b16 %v5611, %v5604
    %v5934 = vpack.c.b16 %v5612, %v5605
    %v5935 = vpack.c.b16 %v5613, %v5606
    %v5936 = vpack.c.b16 %v5614, %v5607
    %v5937 = vpack.c.b16 %v5615, %v5608
    %v5938 = vpack.c.b16 %v5616, %v5609
    %v5939 = vpack.c.b16 %v5617, %v5610
    %v5940 = vpack.c.b16 %v5625, %v5618
    %v5941 = vpack.c.b16 %v5626, %v5619
    %v5942 = vpack.c.b16 %v5627, %v5620
    %v5943 = vpack.c.b16 %v5628, %v5621
    %v5944 = vpack.c.b16 %v5629, %v5622
    %v5945 = vpack.c.b16 %v5630, %v5623
    %v5946 = vpack.c.b16 %v5631, %v5624
    %v5947 = vpack.c.b16 %v5639, %v5632
    %v5948 = vpack.c.b16 %v5640, %v5633
    %v5949 = vpack.c.b16 %v5641, %v5634
    %v5950 = vpack.c.b16 %v5642, %v5635
    %v5951 = vpack.c.b16 %v5643, %v5636
    %v5952 = vpack.c.b16 %v5644, %v5637
    %v5953 = vpack.c.b16 %v5645, %v5638
    %v5954 = vpack.c.b16 %v5653, %v5646
    %v5955 = vpack.c.b16 %v5654, %v5647
    %v5956 = vpack.c.b16 %v5655, %v5648
    %v5957 = vpack.c.b16 %v5656, %v5649
    %v5958 = vpack.c.b16 %v5657, %v5650
    %v5959 = vpack.c.b16 %v5658, %v5651
    %v5960 = vpack.c.b16 %v5659, %v5652
    %v5961 = vpack.c.b16 %v5667, %v5660
    %v5962 = vpack.c.b16 %v5668, %v5661
    %v5963 = vpack.c.b16 %v5669, %v5662
    %v5964 = vpack.c.b16 %v5670, %v5663
    %v5965 = vpack.c.b16 %v5671, %v5664
    %v5966 = vpack.c.b16 %v5672, %v5665
    %v5967 = vpack.c.b16 %v5673, %v5666
    %v5968 = vpack.c.b16 %v5681, %v5674
    %v5969 = vpack.c.b16 %v5682, %v5675
    %v5970 = vpack.c.b16 %v5683, %v5676
    %v5971 = vpack.c.b16 %v5684, %v5677
    %v5972 = vpack.c.b16 %v5685, %v5678
    %v5973 = vpack.c.b16 %v5686, %v5679
    %v5974 = vpack.c.b16 %v5687, %v5680
    %v5975 = vpack.c.b16 %v5695, %v5688
    %v5976 = vpack.c.b16 %v5696, %v5689
    %v5977 = vpack.c.b16 %v5697, %v5690
    %v5978 = vpack.c.b16 %v5698, %v5691
    %v5979 = vpack.c.b16 %v5699, %v5692
    %v5980 = vpack.c.b16 %v5700, %v5693
    %v5981 = vpack.c.b16 %v5701, %v5694
    %v5982 = vpack.c.b16 %v5709, %v5702
    %v5983 = vpack.c.b16 %v5710, %v5703
    %v5984 = vpack.c.b16 %v5711, %v5704
    %v5985 = vpack.c.b16 %v5712, %v5705
    %v5986 = vpack.c.b16 %v5713, %v5706
    %v5987 = vpack.c.b16 %v5714, %v5707
    %v5988 = vpack.c.b16 %v5715, %v5708
    %v5989 = vpack.c.b16 %v5723, %v5716
    %v5990 = vpack.c.b16 %v5724, %v5717
    %v5991 = vpack.c.b16 %v5725, %v5718
    %v5992 = vpack.c.b16 %v5726, %v5719
    %v5993 = vpack.c.b16 %v5727, %v5720
    %v5994 = vpack.c.b16 %v5728, %v5721
    %v5995 = vpack.c.b16 %v5729, %v5722
    %v5996 = vpack.c.b16 %v5737, %v5730
    %v5997 = vpack.c.b16 %v5738, %v5731
    %v5998 = vpack.c.b16 %v5739, %v5732
    %v5999 = vpack.c.b16 %v5740, %v5733
    %v6000 = vpack.c.b16 %v5741, %v5734
    %v6001 = vpack.c.b16 %v5742, %v5735
    %v6002 = vpack.c.b16 %v5743, %v5736
    %v6003 = vpack.c.b16 %v5751, %v5744
    %v6004 = vpack.c.b16 %v5752, %v5745
    %v6005 = vpack.c.b16 %v5753, %v5746
    %v6006 = vpack.c.b16 %v5754, %v5747
    %v6007 = vpack.c.b16 %v5755, %v5748
    %v6008 = vpack.c.b16 %v5756, %v5749
    %v6009 = vpack.c.b16 %v5757, %v5750
    %v6010 = vpack.c.b16 %v5765, %v5758
    %v6011 = vpack.c.b16 %v5766, %v5759
    %v6012 = vpack.c.b16 %v5767, %v5760
    %v6013 = vpack.c.b16 %v5768, %v5761
    %v6014 = vpack.c.b16 %v5769, %v5762
    %v6015 = vpack.c.b16 %v5770, %v5763
    %v6016 = vpack.c.b16 %v5771, %v5764
    %v6017 = vpack.c.b16 %v5779, %v5772
    %v6018 = vpack.c.b16 %v5780, %v5773
    %v6019 = vpack.c.b16 %v5781, %v5774
    %v6020 = vpack.c.b16 %v5782, %v5775
    %v6021 = vpack.c.b16 %v5783, %v5776
    %v6022 = vpack.c.b16 %v5784, %v5777
    %v6023 = vpack.c.b16 %v5785, %v5778
    %v6024 = vpack.c.b16 %v5793, %v5786
    %v6025 = vpack.c.b16 %v5794, %v5787
    %v6026 = vpack.c.b16 %v5795, %v5788
    %v6027 = vpack.c.b16 %v5796, %v5789
    %v6028 = vpack.c.b16 %v5797, %v5790
    %v6029 = vpack.c.b16 %v5798, %v5791
    %v6030 = vpack.c.b16 %v5799, %v5792
    %v6031 = vpack.c.b16 %v5807, %v5800
    %v6032 = vpack.c.b16 %v5808, %v5801
    %v6033 = vpack.c.b16 %v5809, %v5802
    %v6034 = vpack.c.b16 %v5810, %v5803
    %v6035 = vpack.c.b16 %v5811, %v5804
    %v6036 = vpack.c.b16 %v5812, %v5805
    %v6037 = vpack.c.b16 %v5813, %v5806
    %6262 = vmatprep.subr.bf16.mxu0 %v5815
    %6263 = vmatpush1.bf16.msra.mxu0 %v5814
    %6264 = vmatprep.subr.bf16.mxu0 %v5822
    %6265 = vmatpush1.bf16.msra.mxu0 %v5821
    %6266 = vmatprep.subr.bf16.mxu0 %v5829
    %6267 = vmatpush1.bf16.msra.mxu0 %v5828
    %6268 = vmatprep.subr.bf16.mxu0 %v5836
    %6269 = vmatpush1.bf16.msra.mxu0 %v5835
    %6270 = vmatprep.subr.bf16.mxu0 %v5843
    %6271 = vmatpush1.bf16.msra.mxu0 %v5842
    %6272 = vmatprep.subr.bf16.mxu0 %v5850
    %6273 = vmatpush1.bf16.msra.mxu0 %v5849
    %6274 = vmatprep.subr.bf16.mxu0 %v5857
    %6275 = vmatpush1.bf16.msra.mxu0 %v5856
    %6276 = vmatprep.subr.bf16.mxu0 %v5864
    %6277 = vmatpush1.bf16.msra.mxu0 %v5863
    %6278 = vmatprep.subr.bf16.mxu0 %v5871
    %6279 = vmatpush1.bf16.msra.mxu0 %v5870
    %6280 = vmatprep.subr.bf16.mxu0 %v5878
    %6281 = vmatpush1.bf16.msra.mxu0 %v5877
    %6282 = vmatprep.subr.bf16.mxu0 %v5885
    %6283 = vmatpush1.bf16.msra.mxu0 %v5884
    %6284 = vmatprep.subr.bf16.mxu0 %v5892
    %6285 = vmatpush1.bf16.msra.mxu0 %v5891
    %6286 = vmatprep.subr.bf16.mxu0 %v5899
    %6287 = vmatpush1.bf16.msra.mxu0 %v5898
    %6288 = vmatprep.subr.bf16.mxu0 %v5906
    %6289 = vmatpush1.bf16.msra.mxu0 %v5905
    %6290 = vmatprep.subr.bf16.mxu0 %v5913
    %6291 = vmatpush1.bf16.msra.mxu0 %v5912
    %6292 = vmatprep.subr.bf16.mxu0 %v5920
    %6293 = vmatpush1.bf16.msra.mxu0 %v5919
    %6294 = vmatprep.mubr.bf16.mxu0 %v5071
    %6295 = vmatmul.mubr.bf16.gmra.mrb[0].mxu0 %v5070
    %v6296 = vpop.f32.mrb[0].mxu0
    %v6297 = vadd.f32 %v5078, %v6296
    %v6298 = vpop.f32.mrb[0].mxu0
    %v6299 = vadd.f32 %v5082, %v6298
    %v6300 = vpop.f32.mrb[0].mxu0
    %v6301 = vpop.f32.mrb[0].mxu0
    %6302 = vdwg.mxu0
    %6303 = vmatprep.subr.bf16.mxu0 %v5927
    %6304 = vmatpush1.bf16.msra.mxu0 %v5926
    %6305 = vmatprep.subr.bf16.mxu0 %v5934
    %6306 = vmatpush1.bf16.msra.mxu0 %v5933
    %6307 = vmatprep.subr.bf16.mxu0 %v5941
    %6308 = vmatpush1.bf16.msra.mxu0 %v5940
    %6309 = vmatprep.subr.bf16.mxu0 %v5948
    %6310 = vmatpush1.bf16.msra.mxu0 %v5947
    %6311 = vmatprep.subr.bf16.mxu0 %v5955
    %6312 = vmatpush1.bf16.msra.mxu0 %v5954
    %6313 = vmatprep.subr.bf16.mxu0 %v5962
    %6314 = vmatpush1.bf16.msra.mxu0 %v5961
    %6315 = vmatprep.subr.bf16.mxu0 %v5969
    %6316 = vmatpush1.bf16.msra.mxu0 %v5968
    %6317 = vmatprep.subr.bf16.mxu0 %v5976
    %6318 = vmatpush1.bf16.msra.mxu0 %v5975
    %6319 = vmatprep.subr.bf16.mxu0 %v5983
    %6320 = vmatpush1.bf16.msra.mxu0 %v5982
    %6321 = vmatprep.subr.bf16.mxu0 %v5990
    %6322 = vmatpush1.bf16.msra.mxu0 %v5989
    %6323 = vmatprep.subr.bf16.mxu0 %v5997
    %6324 = vmatpush1.bf16.msra.mxu0 %v5996
    %6325 = vmatprep.subr.bf16.mxu0 %v6004
    %6326 = vmatpush1.bf16.msra.mxu0 %v6003
    %6327 = vmatprep.subr.bf16.mxu0 %v6011
    %6328 = vmatpush1.bf16.msra.mxu0 %v6010
    %6329 = vmatprep.subr.bf16.mxu0 %v6018
    %6330 = vmatpush1.bf16.msra.mxu0 %v6017
    %6331 = vmatprep.subr.bf16.mxu0 %v6025
    %6332 = vmatpush1.bf16.msra.mxu0 %v6024
    %6333 = vmatprep.subr.bf16.mxu0 %v6032
    %6334 = vmatpush1.bf16.msra.mxu0 %v6031
    %6335 = vmatprep.mubr.bf16.mxu0 %v5073
    %6336 = vmatmul.mubr.bf16.gmra.mrb[0].mxu0 %v5072
    %v6337 = vpop.f32.mrb[0].mxu0
    %v6338 = vadd.f32 %v6297, %v6337
    %v6339 = vpop.f32.mrb[0].mxu0
    %v6340 = vadd.f32 %v6299, %v6339
    %v6341 = vpop.f32.mrb[0].mxu0
    %v6342 = vpop.f32.mrb[0].mxu0
    %6343 = vdwg.mxu0
    %6344 = vmatprep.subr.bf16.mxu0 %v5817
    %6345 = vmatpush1.bf16.msra.mxu0 %v5816
    %6346 = vmatprep.subr.bf16.mxu0 %v5824
    %6347 = vmatpush1.bf16.msra.mxu0 %v5823
    %6348 = vmatprep.subr.bf16.mxu0 %v5831
    %6349 = vmatpush1.bf16.msra.mxu0 %v5830
    %6350 = vmatprep.subr.bf16.mxu0 %v5838
    %6351 = vmatpush1.bf16.msra.mxu0 %v5837
    %6352 = vmatprep.subr.bf16.mxu0 %v5845
    %6353 = vmatpush1.bf16.msra.mxu0 %v5844
    %6354 = vmatprep.subr.bf16.mxu0 %v5852
    %6355 = vmatpush1.bf16.msra.mxu0 %v5851
    %6356 = vmatprep.subr.bf16.mxu0 %v5859
    %6357 = vmatpush1.bf16.msra.mxu0 %v5858
    %6358 = vmatprep.subr.bf16.mxu0 %v5866
    %6359 = vmatpush1.bf16.msra.mxu0 %v5865
    %6360 = vmatprep.subr.bf16.mxu0 %v5873
    %6361 = vmatpush1.bf16.msra.mxu0 %v5872
    %6362 = vmatprep.subr.bf16.mxu0 %v5880
    %6363 = vmatpush1.bf16.msra.mxu0 %v5879
    %6364 = vmatprep.subr.bf16.mxu0 %v5887
    %6365 = vmatpush1.bf16.msra.mxu0 %v5886
    %6366 = vmatprep.subr.bf16.mxu0 %v5894
    %6367 = vmatpush1.bf16.msra.mxu0 %v5893
    %6368 = vmatprep.subr.bf16.mxu0 %v5901
    %6369 = vmatpush1.bf16.msra.mxu0 %v5900
    %6370 = vmatprep.subr.bf16.mxu0 %v5908
    %6371 = vmatpush1.bf16.msra.mxu0 %v5907
    %6372 = vmatprep.subr.bf16.mxu0 %v5915
    %6373 = vmatpush1.bf16.msra.mxu0 %v5914
    %6374 = vmatprep.subr.bf16.mxu0 %v5922
    %6375 = vmatpush1.bf16.msra.mxu0 %v5921
    %6376 = vmatprep.mubr.bf16.mxu0 %v5071
    %6377 = vmatmul.mubr.bf16.gmra.mrb[0].mxu0 %v5070
    %v6378 = vpop.f32.mrb[0].mxu0
    %v6379 = vadd.f32 %v5086, %v6378
    %v6380 = vpop.f32.mrb[0].mxu0
    %v6381 = vadd.f32 %v5090, %v6380
    %v6382 = vpop.f32.mrb[0].mxu0
    %v6383 = vpop.f32.mrb[0].mxu0
    %6384 = vdwg.mxu0
    %6385 = vmatprep.subr.bf16.mxu0 %v5929
    %6386 = vmatpush1.bf16.msra.mxu0 %v5928
    %6387 = vmatprep.subr.bf16.mxu0 %v5936
    %6388 = vmatpush1.bf16.msra.mxu0 %v5935
    %6389 = vmatprep.subr.bf16.mxu0 %v5943
    %6390 = vmatpush1.bf16.msra.mxu0 %v5942
    %6391 = vmatprep.subr.bf16.mxu0 %v5950
    %6392 = vmatpush1.bf16.msra.mxu0 %v5949
    %6393 = vmatprep.subr.bf16.mxu0 %v5957
    %6394 = vmatpush1.bf16.msra.mxu0 %v5956
    %6395 = vmatprep.subr.bf16.mxu0 %v5964
    %6396 = vmatpush1.bf16.msra.mxu0 %v5963
    %6397 = vmatprep.subr.bf16.mxu0 %v5971
    %6398 = vmatpush1.bf16.msra.mxu0 %v5970
    %6399 = vmatprep.subr.bf16.mxu0 %v5978
    %6400 = vmatpush1.bf16.msra.mxu0 %v5977
    %6401 = vmatprep.subr.bf16.mxu0 %v5985
    %6402 = vmatpush1.bf16.msra.mxu0 %v5984
    %6403 = vmatprep.subr.bf16.mxu0 %v5992
    %6404 = vmatpush1.bf16.msra.mxu0 %v5991
    %6405 = vmatprep.subr.bf16.mxu0 %v5999
    %6406 = vmatpush1.bf16.msra.mxu0 %v5998
    %6407 = vmatprep.subr.bf16.mxu0 %v6006
    %6408 = vmatpush1.bf16.msra.mxu0 %v6005
    %6409 = vmatprep.subr.bf16.mxu0 %v6013
    %6410 = vmatpush1.bf16.msra.mxu0 %v6012
    %6411 = vmatprep.subr.bf16.mxu0 %v6020
    %6412 = vmatpush1.bf16.msra.mxu0 %v6019
    %6413 = vmatprep.subr.bf16.mxu0 %v6027
    %6414 = vmatpush1.bf16.msra.mxu0 %v6026
    %6415 = vmatprep.subr.bf16.mxu0 %v6034
    %6416 = vmatpush1.bf16.msra.mxu0 %v6033
    %6417 = vmatprep.mubr.bf16.mxu0 %v5073
    %6418 = vmatmul.mubr.bf16.gmra.mrb[0].mxu0 %v5072
    %v6419 = vpop.f32.mrb[0].mxu0
    %v6420 = vadd.f32 %v6379, %v6419
    %v6421 = vpop.f32.mrb[0].mxu0
    %v6422 = vadd.f32 %v6381, %v6421
    %v6423 = vpop.f32.mrb[0].mxu0
    %v6424 = vpop.f32.mrb[0].mxu0
    %6425 = vdwg.mxu0
    %6426 = vmatprep.subr.bf16.mxu0 %v5819
    %6427 = vmatpush1.bf16.msra.mxu0 %v5818
    %6428 = vmatprep.subr.bf16.mxu0 %v5826
    %6429 = vmatpush1.bf16.msra.mxu0 %v5825
    %6430 = vmatprep.subr.bf16.mxu0 %v5833
    %6431 = vmatpush1.bf16.msra.mxu0 %v5832
    %6432 = vmatprep.subr.bf16.mxu0 %v5840
    %6433 = vmatpush1.bf16.msra.mxu0 %v5839
    %6434 = vmatprep.subr.bf16.mxu0 %v5847
    %6435 = vmatpush1.bf16.msra.mxu0 %v5846
    %6436 = vmatprep.subr.bf16.mxu0 %v5854
    %6437 = vmatpush1.bf16.msra.mxu0 %v5853
    %6438 = vmatprep.subr.bf16.mxu0 %v5861
    %6439 = vmatpush1.bf16.msra.mxu0 %v5860
    %6440 = vmatprep.subr.bf16.mxu0 %v5868
    %6441 = vmatpush1.bf16.msra.mxu0 %v5867
    %6442 = vmatprep.subr.bf16.mxu0 %v5875
    %6443 = vmatpush1.bf16.msra.mxu0 %v5874
    %6444 = vmatprep.subr.bf16.mxu0 %v5882
    %6445 = vmatpush1.bf16.msra.mxu0 %v5881
    %6446 = vmatprep.subr.bf16.mxu0 %v5889
    %6447 = vmatpush1.bf16.msra.mxu0 %v5888
    %6448 = vmatprep.subr.bf16.mxu0 %v5896
    %6449 = vmatpush1.bf16.msra.mxu0 %v5895
    %6450 = vmatprep.subr.bf16.mxu0 %v5903
    %6451 = vmatpush1.bf16.msra.mxu0 %v5902
    %6452 = vmatprep.subr.bf16.mxu0 %v5910
    %6453 = vmatpush1.bf16.msra.mxu0 %v5909
    %6454 = vmatprep.subr.bf16.mxu0 %v5917
    %6455 = vmatpush1.bf16.msra.mxu0 %v5916
    %6456 = vmatprep.subr.bf16.mxu0 %v5924
    %6457 = vmatpush1.bf16.msra.mxu0 %v5923
    %6458 = vmatprep.mubr.bf16.mxu0 %v5071
    %6459 = vmatmul.mubr.bf16.gmra.mrb[0].mxu0 %v5070
    %v6460 = vpop.f32.mrb[0].mxu0
    %v6461 = vadd.f32 %v5094, %v6460
    %v6462 = vpop.f32.mrb[0].mxu0
    %v6463 = vadd.f32 %v5098, %v6462
    %v6464 = vpop.f32.mrb[0].mxu0
    %v6465 = vpop.f32.mrb[0].mxu0
    %6466 = vdwg.mxu0
    %6467 = vmatprep.subr.bf16.mxu0 %v5931
    %6468 = vmatpush1.bf16.msra.mxu0 %v5930
    %6469 = vmatprep.subr.bf16.mxu0 %v5938
    %6470 = vmatpush1.bf16.msra.mxu0 %v5937
    %6471 = vmatprep.subr.bf16.mxu0 %v5945
    %6472 = vmatpush1.bf16.msra.mxu0 %v5944
    %6473 = vmatprep.subr.bf16.mxu0 %v5952
    %6474 = vmatpush1.bf16.msra.mxu0 %v5951
    %6475 = vmatprep.subr.bf16.mxu0 %v5959
    %6476 = vmatpush1.bf16.msra.mxu0 %v5958
    %6477 = vmatprep.subr.bf16.mxu0 %v5966
    %6478 = vmatpush1.bf16.msra.mxu0 %v5965
    %6479 = vmatprep.subr.bf16.mxu0 %v5973
    %6480 = vmatpush1.bf16.msra.mxu0 %v5972
    %6481 = vmatprep.subr.bf16.mxu0 %v5980
    %6482 = vmatpush1.bf16.msra.mxu0 %v5979
    %6483 = vmatprep.subr.bf16.mxu0 %v5987
    %6484 = vmatpush1.bf16.msra.mxu0 %v5986
    %6485 = vmatprep.subr.bf16.mxu0 %v5994
    %6486 = vmatpush1.bf16.msra.mxu0 %v5993
    %6487 = vmatprep.subr.bf16.mxu0 %v6001
    %6488 = vmatpush1.bf16.msra.mxu0 %v6000
    %6489 = vmatprep.subr.bf16.mxu0 %v6008
    %6490 = vmatpush1.bf16.msra.mxu0 %v6007
    %6491 = vmatprep.subr.bf16.mxu0 %v6015
    %6492 = vmatpush1.bf16.msra.mxu0 %v6014
    %6493 = vmatprep.subr.bf16.mxu0 %v6022
    %6494 = vmatpush1.bf16.msra.mxu0 %v6021
    %6495 = vmatprep.subr.bf16.mxu0 %v6029
    %6496 = vmatpush1.bf16.msra.mxu0 %v6028
    %6497 = vmatprep.subr.bf16.mxu0 %v6036
    %6498 = vmatpush1.bf16.msra.mxu0 %v6035
    %6499 = vmatprep.mubr.bf16.mxu0 %v5073
    %6500 = vmatmul.mubr.bf16.gmra.mrb[0].mxu0 %v5072
    %v6501 = vpop.f32.mrb[0].mxu0
    %v6502 = vadd.f32 %v6461, %v6501
    %v6503 = vpop.f32.mrb[0].mxu0
    %v6504 = vadd.f32 %v6463, %v6503
    %v6505 = vpop.f32.mrb[0].mxu0
    %v6506 = vpop.f32.mrb[0].mxu0
    %6507 = vdwg.mxu0
    %6508 = vmatprep.subr.bf16.mxu0 0
    %6509 = vmatpush1.bf16.msra.mxu0 %v5820
    %6510 = vmatprep.subr.bf16.mxu0 0
    %6511 = vmatpush1.bf16.msra.mxu0 %v5827
    %6512 = vmatprep.subr.bf16.mxu0 0
    %6513 = vmatpush1.bf16.msra.mxu0 %v5834
    %6514 = vmatprep.subr.bf16.mxu0 0
    %6515 = vmatpush1.bf16.msra.mxu0 %v5841
    %6516 = vmatprep.subr.bf16.mxu0 0
    %6517 = vmatpush1.bf16.msra.mxu0 %v5848
    %6518 = vmatprep.subr.bf16.mxu0 0
    %6519 = vmatpush1.bf16.msra.mxu0 %v5855
    %6520 = vmatprep.subr.bf16.mxu0 0
    %6521 = vmatpush1.bf16.msra.mxu0 %v5862
    %6522 = vmatprep.subr.bf16.mxu0 0
    %6523 = vmatpush1.bf16.msra.mxu0 %v5869
    %6524 = vmatprep.subr.bf16.mxu0 0
    %6525 = vmatpush1.bf16.msra.mxu0 %v5876
    %6526 = vmatprep.subr.bf16.mxu0 0
    %6527 = vmatpush1.bf16.msra.mxu0 %v5883
    %6528 = vmatprep.subr.bf16.mxu0 0
    %6529 = vmatpush1.bf16.msra.mxu0 %v5890
    %6530 = vmatprep.subr.bf16.mxu0 0
    %6531 = vmatpush1.bf16.msra.mxu0 %v5897
    %6532 = vmatprep.subr.bf16.mxu0 0
    %6533 = vmatpush1.bf16.msra.mxu0 %v5904
    %6534 = vmatprep.subr.bf16.mxu0 0
    %6535 = vmatpush1.bf16.msra.mxu0 %v5911
    %6536 = vmatprep.subr.bf16.mxu0 0
    %6537 = vmatpush1.bf16.msra.mxu0 %v5918
    %6538 = vmatprep.subr.bf16.mxu0 0
    %6539 = vmatpush1.bf16.msra.mxu0 %v5925
    %6540 = vmatprep.mubr.bf16.mxu0 %v5071
    %6541 = vmatmul.mubr.bf16.gmra.mrb[0].mxu0 %v5070
    %v6542 = vpop.f32.mrb[0].mxu0
    %v6543 = vadd.f32 %v5102, %v6542
    %v6544 = vpop.f32.mrb[0].mxu0
    %v6545 = vpop.f32.mrb[0].mxu0
    %v6546 = vpop.f32.mrb[0].mxu0
    %6547 = vdwg.mxu0
    %6548 = vmatprep.subr.bf16.mxu0 0
    %6549 = vmatpush1.bf16.msra.mxu0 %v5932
    %6550 = vmatprep.subr.bf16.mxu0 0
    %6551 = vmatpush1.bf16.msra.mxu0 %v5939
    %6552 = vmatprep.subr.bf16.mxu0 0
    %6553 = vmatpush1.bf16.msra.mxu0 %v5946
    %6554 = vmatprep.subr.bf16.mxu0 0
    %6555 = vmatpush1.bf16.msra.mxu0 %v5953
    %6556 = vmatprep.subr.bf16.mxu0 0
    %6557 = vmatpush1.bf16.msra.mxu0 %v5960
    %6558 = vmatprep.subr.bf16.mxu0 0
    %6559 = vmatpush1.bf16.msra.mxu0 %v5967
    %6560 = vmatprep.subr.bf16.mxu0 0
    %6561 = vmatpush1.bf16.msra.mxu0 %v5974
    %6562 = vmatprep.subr.bf16.mxu0 0
    %6563 = vmatpush1.bf16.msra.mxu0 %v5981
    %6564 = vmatprep.subr.bf16.mxu0 0
    %6565 = vmatpush1.bf16.msra.mxu0 %v5988
    %6566 = vmatprep.subr.bf16.mxu0 0
    %6567 = vmatpush1.bf16.msra.mxu0 %v5995
    %6568 = vmatprep.subr.bf16.mxu0 0
    %6569 = vmatpush1.bf16.msra.mxu0 %v6002
    %6570 = vmatprep.subr.bf16.mxu0 0
    %6571 = vmatpush1.bf16.msra.mxu0 %v6009
    %6572 = vmatprep.subr.bf16.mxu0 0
    %6573 = vmatpush1.bf16.msra.mxu0 %v6016
    %6574 = vmatprep.subr.bf16.mxu0 0
    %6575 = vmatpush1.bf16.msra.mxu0 %v6023
    %6576 = vmatprep.subr.bf16.mxu0 0
    %6577 = vmatpush1.bf16.msra.mxu0 %v6030
    %6578 = vmatprep.subr.bf16.mxu0 0
    %6579 = vmatpush1.bf16.msra.mxu0 %v6037
    %6580 = vmatprep.mubr.bf16.mxu0 %v5073
    %6581 = vmatmul.mubr.bf16.gmra.mrb[0].mxu0 %v5072
    %v6582 = vpop.f32.mrb[0].mxu0
    %v6583 = vadd.f32 %v6543, %v6582
    %v6584 = vpop.f32.mrb[0].mxu0
    %v6585 = vpop.f32.mrb[0].mxu0
    %v6586 = vpop.f32.mrb[0].mxu0
    %6587 = vdwg.mxu0
    %6588 = vst [vmem:[#allocation13] sm:$0xff] %v6338
    %6589 = vst [vmem:[#allocation13 + $0x8] sm:$0xff] %v6340
    %6590 = vst [vmem:[#allocation13 + $0x10] sm:$0xff] %v6420
    %6591 = vst [vmem:[#allocation13 + $0x18] sm:$0xff] %v6422
    %6592 = vst [vmem:[#allocation13 + $0x20] sm:$0xff] %v6502
    %6593 = vst [vmem:[#allocation13 + $0x28] sm:$0xff] %v6504
    %6594 = vst [vmem:[#allocation13 + $0x30] sm:$0xff] %v6583
    // Predicated region
    $region50: #{tpu_custom_call.1} parent=1 // pred_check
      _
    $region51: #{tpu_custom_call.1} parent=1 // pred_check_branch
      %6596 = sbr.rel (0) target = $region53
    $region52: #{tpu_custom_call.1} parent=1 // pred_region
      %s6598 = ssub.s32 896, 896
      %6599 = vsyncadd [#allocation4], %s6598
      %s6601 = sshll.u32 [#allocation13], 4
      %s6602 = int_to_ptr.vmem [resolvable:$true] %s6601
      %6604 = dma.vmem_to_hbm [thread:$0]  %s6602, 896, %s6, [#allocation4]
    $region53: #{tpu_custom_call.1} parent=1 // pred_fallthru
      _
    // Predicated region
    $region54: #{tpu_custom_call.1} parent=1 // pred_check
      _
    $region55: #{tpu_custom_call.1} parent=1 // pred_check_branch
      %6606 = sbr.rel (0) target = $region57
    $region56: #{tpu_custom_call.1} parent=1 // pred_region
      %6607 = dma.done [#allocation4], 896
    $region57: #{tpu_custom_call.1} parent=1 // pred_fallthru
      _
    %6608 = vsyncpa [#allocation3], 1
    %6609 = vsyncpa [#allocation6], 1
    %6610 = vsyncpa [#allocation9], 1
    %6611 = vsyncpa [#allocation12], 1
    %6612 = vsyncpa [#allocation4], 1

</llo_original>
